<compile_context>
chip_gen: v7x
topology: tpu7x:2x2x1
jax: 0.10.0
libtpu: 0.0.40
codegen_flags: <defaults>
</compile_context>

<pallas_src>
import jax
import jax.numpy as jnp
from jax.experimental import pallas as pl
from jax.experimental.pallas import tpu as pltpu

LN_EPS = 1e-5  # PyTorch nn.LayerNorm default


def adapted_xvec_kernel(ref_ref, wenc_ref,
                        w1_ref, b1_ref, g1_ref, be1_ref,
                        w2_ref, b2_ref, g2_ref, be2_ref,
                        out_ref, acc_ref):
    """Grid = (batch tiles, K tiles over waveform length R)."""
    k = pl.program_id(1)

    @pl.when(k == 0)
    def _():
        acc_ref[...] = jnp.zeros_like(acc_ref)

    # --- encoder projection (stand-in x-vector), bf16 in / f32 accumulate ---
    # TODO(synk): the pretrained speechbrain x-vector TDNN (EncoderClassifier)
    # cannot be reproduced without its checkpoint; the encoder here is a single
    # deterministic linear projection of the waveform to a 512-d embedding.
    acc_ref[...] += jnp.dot(ref_ref[...].astype(jnp.bfloat16), wenc_ref[...],
                            preferred_element_type=jnp.float32)

    @pl.when(k == pl.num_programs(1) - 1)
    def _():
        emb = acc_ref[...]                                       # (TB, 512) f32

        # --- adaptor: Linear(512, hidden) ---
        h = jnp.dot(emb.astype(jnp.bfloat16), w1_ref[...],
                    preferred_element_type=jnp.float32) + b1_ref[...]
        # --- LayerNorm(hidden): one-pass variance, clamped at 0 ---
        mu = jnp.mean(h, axis=-1, keepdims=True)
        var = jnp.maximum(jnp.mean(h * h, axis=-1, keepdims=True) - mu * mu, 0.0)
        h = (h - mu) * jax.lax.rsqrt(var + LN_EPS) * g1_ref[...] + be1_ref[...]
        # --- Swish ---
        h = h * jax.nn.sigmoid(h)
        # --- Linear(hidden, out) ---
        y = jnp.dot(h.astype(jnp.bfloat16), w2_ref[...],
                    preferred_element_type=jnp.float32) + b2_ref[...]
        # --- LayerNorm(out) ---
        mu2 = jnp.mean(y, axis=-1, keepdims=True)
        var2 = jnp.maximum(jnp.mean(y * y, axis=-1, keepdims=True) - mu2 * mu2, 0.0)
        out_ref[...] = (y - mu2) * jax.lax.rsqrt(var2 + LN_EPS) * g2_ref[...] + be2_ref[...]


def adapted_x_vector(ref, params, *, tk=2048, tb_max=128):
    """ref: (B, R) waveform -> (B, 1, F) adapted speaker embedding.

    params["w_enc"] must already be row-padded to a multiple of tk (done once
    in init_params); only the small waveform is padded here if needed.
    """
    B, R = ref.shape
    RP, EMB = params["w_enc"].shape
    HID = params["w1"].shape[1]
    F = params["w2"].shape[1]

    tk = min(tk, RP)
    assert RP % tk == 0, "w_enc must be pre-padded to a multiple of tk at init"

    # Batch tile: up to 128 rows per tile (full MXU height, modest epilogue
    # registers), padded to a multiple of 8 (f32 sublane tile).
    if B >= tb_max:
        tb = tb_max
        BP = pl.cdiv(B, tb) * tb
    else:
        tb = max(8, pl.cdiv(B, 8) * 8)   # single batch tile
        BP = tb

    ref_p = ref
    if BP != B or RP != R:
        ref_p = jnp.pad(ref, ((0, BP - B), (0, RP - R)))

    grid = (BP // tb, RP // tk)

    inputs = [ref_p, params["w_enc"],
              params["w1"], params["b1"], params["g1"], params["be1"],
              params["w2"], params["b2"], params["g2"], params["be2"]]

    const = lambda i, k: (0, 0)   # resident small tensors: DMA'd once
    in_specs = [
        pl.BlockSpec((tb, tk), lambda i, k: (i, k)),     # ref stream (f32)
        pl.BlockSpec((tk, EMB), lambda i, k: (k, 0)),    # w_enc stream (bf16)
        pl.BlockSpec((EMB, HID), const),                 # w1
        pl.BlockSpec((1, HID), const),                   # b1
        pl.BlockSpec((1, HID), const),                   # g1
        pl.BlockSpec((1, HID), const),                   # be1
        pl.BlockSpec((HID, F), const),                   # w2
        pl.BlockSpec((1, F), const),                     # b2
        pl.BlockSpec((1, F), const),                     # g2
        pl.BlockSpec((1, F), const),                     # be2
    ]

    out = pl.pallas_call(
        adapted_xvec_kernel,
        out_shape=jax.ShapeDtypeStruct((BP, F), jnp.float32),
        grid=grid,
        in_specs=in_specs,
        out_specs=pl.BlockSpec((tb, F), lambda i, k: (i, 0)),
        scratch_shapes=[pltpu.VMEM((tb, EMB), jnp.float32)],
        compiler_params=pltpu.CompilerParams(
            dimension_semantics=("parallel", "arbitrary"),
            vmem_limit_bytes=32 * 1024 * 1024),
    )(*inputs)

    return out[:B, None, :]  # B x 1 x F (matches module's return shape)


def init_params(key, r, emb_dim=512, hidden=256, out=256, k_align=2048):
    """Deterministic synthetic parameters (shapes follow the module __init__).

    w_enc is padded ONCE here to a multiple of k_align so the per-call wrapper
    never has to re-pad the large encoder weight.
    """
    k0, k1, k2, k3, k4 = jax.random.split(key, 5)
    rp = pl.cdiv(r, min(k_align, r)) * min(k_align, r)
    w_enc = (jax.random.normal(k0, (r, emb_dim), jnp.float32)
             / jnp.sqrt(r)).astype(jnp.bfloat16)
    if rp != r:
        w_enc = jnp.pad(w_enc, ((0, rp - r), (0, 0)))
    p = {
        # stand-in x-vector encoder projection (bf16 streamed weight)
        "w_enc": w_enc,
        # nn.Linear(512, hidden)
        "w1": (jax.random.normal(k1, (emb_dim, hidden), jnp.float32)
               / jnp.sqrt(emb_dim)).astype(jnp.bfloat16),
        "b1": (jax.random.normal(k2, (1, hidden), jnp.float32) * 0.01),
        # nn.LayerNorm(hidden)
        "g1": jnp.ones((1, hidden), jnp.float32),
        "be1": jnp.zeros((1, hidden), jnp.float32),
        # nn.Linear(hidden, out)
        "w2": (jax.random.normal(k3, (hidden, out), jnp.float32)
               / jnp.sqrt(hidden)).astype(jnp.bfloat16),
        "b2": (jax.random.normal(k4, (1, out), jnp.float32) * 0.01),
        # nn.LayerNorm(out)
        "g2": jnp.ones((1, out), jnp.float32),
        "be2": jnp.zeros((1, out), jnp.float32),
    }
    return p


def _reference(ref, p):
    """Pure-JAX reference (same bf16-weight / f32-accumulate recipe)."""
    R = ref.shape[1]
    emb = jnp.dot(ref.astype(jnp.bfloat16), p["w_enc"][:R],
                  preferred_element_type=jnp.float32)
    h = jnp.dot(emb.astype(jnp.bfloat16), p["w1"],
                preferred_element_type=jnp.float32) + p["b1"]
    mu = h.mean(-1, keepdims=True)
    var = jnp.maximum((h * h).mean(-1, keepdims=True) - mu * mu, 0.0)
    h = (h - mu) / jnp.sqrt(var + LN_EPS) * p["g1"] + p["be1"]
    h = h * jax.nn.sigmoid(h)
    y = jnp.dot(h.astype(jnp.bfloat16), p["w2"],
                preferred_element_type=jnp.float32) + p["b2"]
    mu2 = y.mean(-1, keepdims=True)
    var2 = jnp.maximum((y * y).mean(-1, keepdims=True) - mu2 * mu2, 0.0)
    y = (y - mu2) / jnp.sqrt(var2 + LN_EPS) * p["g2"] + p["be2"]
    return y[:, None, :]


if __name__ == "__main__":
    B, R = 2, 4096          # small waveform length (2 K-tiles at TK=2048)
    HIDDEN, OUT = 256, 256  # args.hidden_size, args.out_size (small, lane-aligned)

    key = jax.random.PRNGKey(0)
    kx, kp = jax.random.split(key)
    ref_wav = jax.random.normal(kx, (B, R), jnp.float32)
    params = init_params(kp, R, emb_dim=512, hidden=HIDDEN, out=OUT, k_align=2048)

    out = adapted_x_vector(ref_wav, params)
    out = jax.block_until_ready(out)

    assert out.shape == (B, 1, OUT), out.shape

    ref_out = _reference(ref_wav, params)
    assert jnp.allclose(out, ref_out, atol=1e-2, rtol=1e-2), \
        float(jnp.max(jnp.abs(out - ref_out)))

    print("KERNEL_OK")
</pallas_src>

<mosaic_0001>
module attributes {stable_mosaic.version = 11 : i64} {
  func.func @adapted_xvec_kernel(%arg0: i32, %arg1: i32, %arg2: memref<8x2048xf32, #tpu.memory_space<vmem>>, %arg3: memref<2048x512xbf16, #tpu.memory_space<vmem>>, %arg4: memref<512x256xbf16, #tpu.memory_space<vmem>>, %arg5: memref<1x256xf32, #tpu.memory_space<vmem>>, %arg6: memref<1x256xf32, #tpu.memory_space<vmem>>, %arg7: memref<1x256xf32, #tpu.memory_space<vmem>>, %arg8: memref<256x256xbf16, #tpu.memory_space<vmem>>, %arg9: memref<1x256xf32, #tpu.memory_space<vmem>>, %arg10: memref<1x256xf32, #tpu.memory_space<vmem>>, %arg11: memref<1x256xf32, #tpu.memory_space<vmem>>, %arg12: memref<8x256xf32, #tpu.memory_space<vmem>>, %arg13: memref<8x512xf32, #tpu.memory_space<vmem>>) attributes {dimension_semantics = [#tpu.dimension_semantics<parallel>, #tpu.dimension_semantics<arbitrary>], iteration_bounds = array<i64: 1, 2>, scalar_prefetch = 0 : i64, scratch_operands = 1 : i64, tpu.core_type = #tpu.core_type<tc>, window_params = [{transform_indices = @transform_0, window_bounds = array<i64: 8, 2048>}, {transform_indices = @transform_1, window_bounds = array<i64: 2048, 512>}, {pipeline_mode = #tpu.pipeline_mode<synchronous>, transform_indices = @transform_2, window_bounds = array<i64: 512, 256>}, {pipeline_mode = #tpu.pipeline_mode<synchronous>, transform_indices = @transform_3, window_bounds = array<i64: 1, 256>}, {pipeline_mode = #tpu.pipeline_mode<synchronous>, transform_indices = @transform_4, window_bounds = array<i64: 1, 256>}, {pipeline_mode = #tpu.pipeline_mode<synchronous>, transform_indices = @transform_5, window_bounds = array<i64: 1, 256>}, {pipeline_mode = #tpu.pipeline_mode<synchronous>, transform_indices = @transform_6, window_bounds = array<i64: 256, 256>}, {pipeline_mode = #tpu.pipeline_mode<synchronous>, transform_indices = @transform_7, window_bounds = array<i64: 1, 256>}, {pipeline_mode = #tpu.pipeline_mode<synchronous>, transform_indices = @transform_8, window_bounds = array<i64: 1, 256>}, {pipeline_mode = #tpu.pipeline_mode<synchronous>, transform_indices = @transform_9, window_bounds = array<i64: 1, 256>}, {transform_indices = @transform_10, window_bounds = array<i64: 8, 256>}]} {
    %c0_i32 = arith.constant 0 : i32
    %0 = arith.cmpi eq, %arg1, %c0_i32 : i32
    %1 = arith.extui %0 : i1 to i32
    %c0_i32_0 = arith.constant 0 : i32
    %2 = arith.cmpi ne, %1, %c0_i32_0 : i32
    scf.if %2 {
      %cst_9 = arith.constant 0.000000e+00 : f32
      %13 = vector.broadcast %cst_9 : f32 to vector<8x512xf32>
      %c0_10 = arith.constant 0 : index
      %c0_11 = arith.constant 0 : index
      %14 = vector.load %arg13[%c0_10, %c0_11] : memref<8x512xf32, #tpu.memory_space<vmem>>, vector<8x512xf32>
      tpu.vector_store %arg13[%c0_10, %c0_11], %13 {strides = array<i32>} : memref<8x512xf32, #tpu.memory_space<vmem>>, vector<8x512xf32>,
    } else {
    }
    %c0 = arith.constant 0 : index
    %c0_1 = arith.constant 0 : index
    %3 = vector.load %arg13[%c0, %c0_1] : memref<8x512xf32, #tpu.memory_space<vmem>>, vector<8x512xf32>
    %c0_2 = arith.constant 0 : index
    %c0_3 = arith.constant 0 : index
    %4 = vector.load %arg2[%c0_2, %c0_3] : memref<8x2048xf32, #tpu.memory_space<vmem>>, vector<8x2048xf32>
    %5 = arith.truncf %4 : vector<8x2048xf32> to vector<8x2048xbf16>
    %c0_4 = arith.constant 0 : index
    %c0_5 = arith.constant 0 : index
    %6 = vector.load %arg3[%c0_4, %c0_5] : memref<2048x512xbf16, #tpu.memory_space<vmem>>, vector<2048x512xbf16>
    %cst = arith.constant dense<0.000000e+00> : vector<8x512xf32>
    %7 = tpu.matmul %5, %6, %cst {dimension_numbers = #tpu.dot_dimension_numbers<[1], [0], [0], [1], [0, 0, 1, 1], [], []>} : vector<8x2048xbf16>, vector<2048x512xbf16>, vector<8x512xf32> -> vector<8x512xf32>
    %8 = arith.addf %3, %7 : vector<8x512xf32>
    %c0_6 = arith.constant 0 : index
    %c0_7 = arith.constant 0 : index
    %9 = vector.load %arg13[%c0_6, %c0_7] : memref<8x512xf32, #tpu.memory_space<vmem>>, vector<8x512xf32>
    tpu.vector_store %arg13[%c0_6, %c0_7], %8 {strides = array<i32>} : memref<8x512xf32, #tpu.memory_space<vmem>>, vector<8x512xf32>,
    %c1_i32 = arith.constant 1 : i32
    %10 = arith.cmpi eq, %arg1, %c1_i32 : i32
    %11 = arith.extui %10 : i1 to i32
    %c0_i32_8 = arith.constant 0 : i32
    %12 = arith.cmpi ne, %11, %c0_i32_8 : i32
    scf.if %12 {
      %c0_9 = arith.constant 0 : index
      %c0_10 = arith.constant 0 : index
      %13 = vector.load %arg13[%c0_9, %c0_10] : memref<8x512xf32, #tpu.memory_space<vmem>>, vector<8x512xf32>
      %14 = arith.truncf %13 : vector<8x512xf32> to vector<8x512xbf16>
      %c0_11 = arith.constant 0 : index
      %c0_12 = arith.constant 0 : index
      %15 = vector.load %arg4[%c0_11, %c0_12] : memref<512x256xbf16, #tpu.memory_space<vmem>>, vector<512x256xbf16>
      %cst_13 = arith.constant dense<0.000000e+00> : vector<8x256xf32>
      %16 = tpu.matmul %14, %15, %cst_13 {dimension_numbers = #tpu.dot_dimension_numbers<[1], [0], [0], [1], [0, 0, 1, 1], [], []>} : vector<8x512xbf16>, vector<512x256xbf16>, vector<8x256xf32> -> vector<8x256xf32>
      %c0_14 = arith.constant 0 : index
      %c0_15 = arith.constant 0 : index
      %17 = vector.load %arg5[%c0_14, %c0_15] : memref<1x256xf32, #tpu.memory_space<vmem>>, vector<1x256xf32>
      %18 = vector.broadcast %17 : vector<1x256xf32> to vector<8x256xf32>
      %19 = arith.addf %16, %18 : vector<8x256xf32>
      %cst_16 = arith.constant dense<0.000000e+00> : vector<8xf32>
      %20 = vector.multi_reduction <add>, %19, %cst_16 [1] : vector<8x256xf32> to vector<8xf32>
      %21 = vector.shape_cast %20 : vector<8xf32> to vector<8x1xf32>
      %cst_17 = arith.constant 2.560000e+02 : f32
      %22 = vector.broadcast %cst_17 : f32 to vector<8x1xf32>
      %23 = arith.divf %21, %22 : vector<8x1xf32>
      %24 = arith.mulf %19, %19 : vector<8x256xf32>
      %cst_18 = arith.constant dense<0.000000e+00> : vector<8xf32>
      %25 = vector.multi_reduction <add>, %24, %cst_18 [1] : vector<8x256xf32> to vector<8xf32>
      %26 = vector.shape_cast %25 : vector<8xf32> to vector<8x1xf32>
      %cst_19 = arith.constant 2.560000e+02 : f32
      %27 = vector.broadcast %cst_19 : f32 to vector<8x1xf32>
      %28 = arith.divf %26, %27 : vector<8x1xf32>
      %29 = arith.mulf %23, %23 : vector<8x1xf32>
      %30 = arith.subf %28, %29 : vector<8x1xf32>
      %cst_20 = arith.constant 0.000000e+00 : f32
      %31 = vector.broadcast %cst_20 : f32 to vector<8x1xf32>
      %32 = arith.maximumf %30, %31 : vector<8x1xf32>
      %33 = vector.broadcast %23 : vector<8x1xf32> to vector<8x256xf32>
      %34 = arith.subf %19, %33 : vector<8x256xf32>
      %cst_21 = arith.constant 9.99999974E-6 : f32
      %35 = vector.broadcast %cst_21 : f32 to vector<8x1xf32>
      %36 = arith.addf %32, %35 : vector<8x1xf32>
      %37 = math.rsqrt %36 : vector<8x1xf32>
      %38 = vector.broadcast %37 : vector<8x1xf32> to vector<8x256xf32>
      %39 = arith.mulf %34, %38 : vector<8x256xf32>
      %c0_22 = arith.constant 0 : index
      %c0_23 = arith.constant 0 : index
      %40 = vector.load %arg6[%c0_22, %c0_23] : memref<1x256xf32, #tpu.memory_space<vmem>>, vector<1x256xf32>
      %41 = vector.broadcast %40 : vector<1x256xf32> to vector<8x256xf32>
      %42 = arith.mulf %39, %41 : vector<8x256xf32>
      %c0_24 = arith.constant 0 : index
      %c0_25 = arith.constant 0 : index
      %43 = vector.load %arg7[%c0_24, %c0_25] : memref<1x256xf32, #tpu.memory_space<vmem>>, vector<1x256xf32>
      %44 = vector.broadcast %43 : vector<1x256xf32> to vector<8x256xf32>
      %45 = arith.addf %42, %44 : vector<8x256xf32>
      %46 = arith.negf %45 : vector<8x256xf32>
      %47 = math.exp %46 : vector<8x256xf32>
      %cst_26 = arith.constant 1.000000e+00 : f32
      %48 = vector.broadcast %cst_26 : f32 to vector<8x256xf32>
      %49 = arith.addf %48, %47 : vector<8x256xf32>
      %50 = arith.divf %48, %49 : vector<8x256xf32>
      %51 = arith.mulf %45, %50 : vector<8x256xf32>
      %52 = arith.truncf %51 : vector<8x256xf32> to vector<8x256xbf16>
      %c0_27 = arith.constant 0 : index
      %c0_28 = arith.constant 0 : index
      %53 = vector.load %arg8[%c0_27, %c0_28] : memref<256x256xbf16, #tpu.memory_space<vmem>>, vector<256x256xbf16>
      %cst_29 = arith.constant dense<0.000000e+00> : vector<8x256xf32>
      %54 = tpu.matmul %52, %53, %cst_29 {dimension_numbers = #tpu.dot_dimension_numbers<[1], [0], [0], [1], [0, 0, 1, 1], [], []>} : vector<8x256xbf16>, vector<256x256xbf16>, vector<8x256xf32> -> vector<8x256xf32>
      %c0_30 = arith.constant 0 : index
      %c0_31 = arith.constant 0 : index
      %55 = vector.load %arg9[%c0_30, %c0_31] : memref<1x256xf32, #tpu.memory_space<vmem>>, vector<1x256xf32>
      %56 = vector.broadcast %55 : vector<1x256xf32> to vector<8x256xf32>
      %57 = arith.addf %54, %56 : vector<8x256xf32>
      %cst_32 = arith.constant dense<0.000000e+00> : vector<8xf32>
      %58 = vector.multi_reduction <add>, %57, %cst_32 [1] : vector<8x256xf32> to vector<8xf32>
      %59 = vector.shape_cast %58 : vector<8xf32> to vector<8x1xf32>
      %cst_33 = arith.constant 2.560000e+02 : f32
      %60 = vector.broadcast %cst_33 : f32 to vector<8x1xf32>
      %61 = arith.divf %59, %60 : vector<8x1xf32>
      %62 = arith.mulf %57, %57 : vector<8x256xf32>
      %cst_34 = arith.constant dense<0.000000e+00> : vector<8xf32>
      %63 = vector.multi_reduction <add>, %62, %cst_34 [1] : vector<8x256xf32> to vector<8xf32>
      %64 = vector.shape_cast %63 : vector<8xf32> to vector<8x1xf32>
      %cst_35 = arith.constant 2.560000e+02 : f32
      %65 = vector.broadcast %cst_35 : f32 to vector<8x1xf32>
      %66 = arith.divf %64, %65 : vector<8x1xf32>
      %67 = arith.mulf %61, %61 : vector<8x1xf32>
      %68 = arith.subf %66, %67 : vector<8x1xf32>
      %cst_36 = arith.constant 0.000000e+00 : f32
      %69 = vector.broadcast %cst_36 : f32 to vector<8x1xf32>
      %70 = arith.maximumf %68, %69 : vector<8x1xf32>
      %71 = vector.broadcast %61 : vector<8x1xf32> to vector<8x256xf32>
      %72 = arith.subf %57, %71 : vector<8x256xf32>
      %cst_37 = arith.constant 9.99999974E-6 : f32
      %73 = vector.broadcast %cst_37 : f32 to vector<8x1xf32>
      %74 = arith.addf %70, %73 : vector<8x1xf32>
      %75 = math.rsqrt %74 : vector<8x1xf32>
      %76 = vector.broadcast %75 : vector<8x1xf32> to vector<8x256xf32>
      %77 = arith.mulf %72, %76 : vector<8x256xf32>
      %c0_38 = arith.constant 0 : index
      %c0_39 = arith.constant 0 : index
      %78 = vector.load %arg10[%c0_38, %c0_39] : memref<1x256xf32, #tpu.memory_space<vmem>>, vector<1x256xf32>
      %79 = vector.broadcast %78 : vector<1x256xf32> to vector<8x256xf32>
      %80 = arith.mulf %77, %79 : vector<8x256xf32>
      %c0_40 = arith.constant 0 : index
      %c0_41 = arith.constant 0 : index
      %81 = vector.load %arg11[%c0_40, %c0_41] : memref<1x256xf32, #tpu.memory_space<vmem>>, vector<1x256xf32>
      %82 = vector.broadcast %81 : vector<1x256xf32> to vector<8x256xf32>
      %83 = arith.addf %80, %82 : vector<8x256xf32>
      %c0_42 = arith.constant 0 : index
      %c0_43 = arith.constant 0 : index
      %84 = vector.load %arg12[%c0_42, %c0_43] : memref<8x256xf32, #tpu.memory_space<vmem>>, vector<8x256xf32>
      tpu.vector_store %arg12[%c0_42, %c0_43], %83 {strides = array<i32>} : memref<8x256xf32, #tpu.memory_space<vmem>>, vector<8x256xf32>,
    } else {
    }
    return
  }
  func.func @transform_0(%arg0: i32, %arg1: i32) -> (i32, i32) {
    %c0_i32 = arith.constant 0 : i32
    return %arg0, %arg1 : i32, i32
  }
  func.func @transform_1(%arg0: i32, %arg1: i32) -> (i32, i32) {
    %c0_i32 = arith.constant 0 : i32
    %c0_i32_0 = arith.constant 0 : i32
    return %arg1, %c0_i32 : i32, i32
  }
  func.func @transform_2(%arg0: i32, %arg1: i32) -> (i32, i32) {
    %c0_i32 = arith.constant 0 : i32
    %c0_i32_0 = arith.constant 0 : i32
    %c0_i32_1 = arith.constant 0 : i32
    return %c0_i32, %c0_i32_0 : i32, i32
  }
  func.func @transform_3(%arg0: i32, %arg1: i32) -> (i32, i32) {
    %c0_i32 = arith.constant 0 : i32
    %c0_i32_0 = arith.constant 0 : i32
    %c0_i32_1 = arith.constant 0 : i32
    return %c0_i32, %c0_i32_0 : i32, i32
  }
  func.func @transform_4(%arg0: i32, %arg1: i32) -> (i32, i32) {
    %c0_i32 = arith.constant 0 : i32
    %c0_i32_0 = arith.constant 0 : i32
    %c0_i32_1 = arith.constant 0 : i32
    return %c0_i32, %c0_i32_0 : i32, i32
  }
  func.func @transform_5(%arg0: i32, %arg1: i32) -> (i32, i32) {
    %c0_i32 = arith.constant 0 : i32
    %c0_i32_0 = arith.constant 0 : i32
    %c0_i32_1 = arith.constant 0 : i32
    return %c0_i32, %c0_i32_0 : i32, i32
  }
  func.func @transform_6(%arg0: i32, %arg1: i32) -> (i32, i32) {
    %c0_i32 = arith.constant 0 : i32
    %c0_i32_0 = arith.constant 0 : i32
    %c0_i32_1 = arith.constant 0 : i32
    return %c0_i32, %c0_i32_0 : i32, i32
  }
  func.func @transform_7(%arg0: i32, %arg1: i32) -> (i32, i32) {
    %c0_i32 = arith.constant 0 : i32
    %c0_i32_0 = arith.constant 0 : i32
    %c0_i32_1 = arith.constant 0 : i32
    return %c0_i32, %c0_i32_0 : i32, i32
  }
  func.func @transform_8(%arg0: i32, %arg1: i32) -> (i32, i32) {
    %c0_i32 = arith.constant 0 : i32
    %c0_i32_0 = arith.constant 0 : i32
    %c0_i32_1 = arith.constant 0 : i32
    return %c0_i32, %c0_i32_0 : i32, i32
  }
  func.func @transform_9(%arg0: i32, %arg1: i32) -> (i32, i32) {
    %c0_i32 = arith.constant 0 : i32
    %c0_i32_0 = arith.constant 0 : i32
    %c0_i32_1 = arith.constant 0 : i32
    return %c0_i32, %c0_i32_0 : i32, i32
  }
  func.func @transform_10(%arg0: i32, %arg1: i32) -> (i32, i32) {
    %c0_i32 = arith.constant 0 : i32
    %c0_i32_0 = arith.constant 0 : i32
    return %arg0, %c0_i32 : i32, i32
  }
}

</mosaic_0001>

<llo_original>
// kernel: tpu_custom_call.1
$region0: #{tpu_custom_call.1}
  #allocation0 [shape = 'u32[]', space=smem, size = 0x4, offset = 0x4, fixed_abs, tag = 'smem constant byte address 0x4 - core index']
  #allocation1 [shape = 'u32[144,128]{1,0:T(1,128)}', space=vmem, size = 0x12000, scoped, tag = 'internal scratch']
  #allocation2 [shape = 'f32[8,512]{1,0:T(8,128)}', space=vmem, size = 0x4000, scoped, tag = 'scratch operand']
  %s0 = inlined_call_operand.hbm [shape: f32[8,4096], index: 0, kind: input, shape index: {}]
  %s1 = inlined_call_operand.hbm [shape: bf16[4096,512], index: 1, kind: input, shape index: {}]
  %s2 = inlined_call_operand.hbm [shape: bf16[512,256], index: 2, kind: input, shape index: {}]
  %s3 = inlined_call_operand.hbm [shape: f32[1,256], index: 3, kind: input, shape index: {}]
  %s4 = inlined_call_operand.hbm [shape: f32[1,256], index: 4, kind: input, shape index: {}]
  %s5 = inlined_call_operand.hbm [shape: f32[1,256], index: 5, kind: input, shape index: {}]
  %s6 = inlined_call_operand.hbm [shape: bf16[256,256], index: 6, kind: input, shape index: {}]
  %s7 = inlined_call_operand.hbm [shape: f32[1,256], index: 7, kind: input, shape index: {}]
  %s8 = inlined_call_operand.hbm [shape: f32[1,256], index: 8, kind: input, shape index: {}]
  %s9 = inlined_call_operand.hbm [shape: f32[1,256], index: 9, kind: input, shape index: {}]
  %s10 = inlined_call_operand.hbm [shape: f32[8,256], index: 10, kind: output, shape index: {}]
  %s11 = sld [smem:[#allocation0]]
  $region121: #{tpu_custom_call.1} parent=0
    _
  %s13 = ssub.s32 1, %s11
  %s14 = scalar_select 0, %s13, %s11
  $region1: #{tpu_custom_call.1} parent=0
    #allocation3 [shape = 'u8[131072]{0}', space=vmem, size = 0x20000, scoped, tag = 'input window, operand 0']
    #allocation4 [shape = 's32[2]{0}', space=sflag, size = 0x8, scoped, tag = 'scoped memory for tpu_custom_call.1']
    #allocation5 [shape = 's32[2]{0}', space=sflag, size = 0x8, scoped, tag = 'scoped memory for tpu_custom_call.1']
    #allocation6 [shape = 'u8[4194304]{0}', space=vmem, size = 0x400000, scoped, tag = 'input window, operand 1']
    #allocation7 [shape = 's32[2]{0}', space=sflag, size = 0x8, scoped, tag = 'scoped memory for tpu_custom_call.1']
    #allocation8 [shape = 'u8[262144]{0}', space=vmem, size = 0x40000, scoped, tag = 'input window, operand 2, single buffered']
    #allocation9 [shape = 'u8[1024]{0}', space=vmem, size = 0x400, scoped, tag = 'input window, operand 3, single buffered']
    #allocation10 [shape = 's32[1]{0}', space=sflag, size = 0x4, scoped, tag = 'scoped memory for tpu_custom_call.1']
    #allocation11 [shape = 'u8[1024]{0}', space=vmem, size = 0x400, scoped, tag = 'input window, operand 4, single buffered']
    #allocation12 [shape = 'u8[1024]{0}', space=vmem, size = 0x400, scoped, tag = 'input window, operand 5, single buffered']
    #allocation13 [shape = 's32[1]{0}', space=sflag, size = 0x4, scoped, tag = 'scoped memory for tpu_custom_call.1']
    #allocation14 [shape = 'u8[131072]{0}', space=vmem, size = 0x20000, scoped, tag = 'input window, operand 6, single buffered']
    #allocation15 [shape = 'u8[1024]{0}', space=vmem, size = 0x400, scoped, tag = 'input window, operand 7, single buffered']
    #allocation16 [shape = 's32[1]{0}', space=sflag, size = 0x4, scoped, tag = 'scoped memory for tpu_custom_call.1']
    #allocation17 [shape = 'u8[1024]{0}', space=vmem, size = 0x400, scoped, tag = 'input window, operand 8, single buffered']
    #allocation18 [shape = 'u8[1024]{0}', space=vmem, size = 0x400, scoped, tag = 'input window, operand 9, single buffered']
    #allocation19 [shape = 's32[1]{0}', space=sflag, size = 0x4, scoped, tag = 'scoped memory for tpu_custom_call.1']
    #allocation20 [shape = 'u8[8192]{0}', space=vmem, size = 0x2000, scoped, tag = 'output window, operand 0, single buffered']
    %15 = vsyncpa [#allocation4], 0
    %s16 = scalar_lea.sflag [#allocation4], 1
    %17 = vsyncpa %s16, 0
    %18 = vsyncpa [#allocation7], 0
    %s19 = scalar_lea.sflag [#allocation7], 1
    %20 = vsyncpa %s19, 0
    %21 = vsyncpa [#allocation10], 0
    %22 = vsyncpa [#allocation13], 0
    %23 = vsyncpa [#allocation16], 0
    %24 = vsyncpa [#allocation19], 0
    %25 = vsyncpa [#allocation5], 0
    loop: start=0, step=1, limit=4
    $region2: #{tpu_custom_call.1} parent=1 // loop_pre_header
      _
    $region3: #{tpu_custom_call.1} parent=1 // loop_header
      %s27 = sphi 0, %s31
      %p28 = scmp.ge.s32.totalorder %s27, 4
      %s34 = sphi 0, %s46
      %s35 = sphi 0, %s42
      %s36 = sphi 0, %s34
      %s37 = sphi 0, %s35
      %s38 = sphi 0, %s36
      %s39 = sphi 0, %s37
      %s51 = sphi 0, %s53
      %s54 = sphi 0, %s51
      %s55 = sphi 0, %s54
      %s71 = sphi 0, %s55
      %s77 = sphi 0, %s79
      %s80 = sphi 0, %s77
      %s81 = sphi 0, %s80
      %s97 = sphi 0, %s81
      %s101 = sphi 0, %s101
      %s103 = sphi 0, %s101
      %s104 = sphi 0, %s103
      %s118 = sphi 0, %s104
      %s122 = sphi 0, %s122
      %s124 = sphi 0, %s122
      %s125 = sphi 0, %s124
      %s139 = sphi 0, %s125
      %s143 = sphi 0, %s143
      %s145 = sphi 0, %s143
      %s146 = sphi 0, %s145
      %s160 = sphi 0, %s146
      %s164 = sphi 0, %s164
      %s166 = sphi 0, %s164
      %s167 = sphi 0, %s166
      %s181 = sphi 0, %s167
      %s185 = sphi 0, %s185
      %s187 = sphi 0, %s185
      %s188 = sphi 0, %s187
      %s202 = sphi 0, %s188
      %s206 = sphi 0, %s206
      %s208 = sphi 0, %s206
      %s209 = sphi 0, %s208
      %s223 = sphi 0, %s209
      %s227 = sphi 0, %s227
      %s229 = sphi 0, %s227
      %s230 = sphi 0, %s229
      %s244 = sphi 0, %s230
      %s248 = sphi 0, %s248
      %s250 = sphi 0, %s248
      %s251 = sphi 0, %s250
      %s265 = sphi 0, %s251
      %s271 = sphi 0, %s273
      %s274 = sphi 0, %s271
      %s275 = sphi 0, %s274
      %s291 = sphi 0, %s275
    $region4: #{tpu_custom_call.1} parent=1 // loop_header_branch
      %30 = sbr.rel (%p28) target = $region8
    $region5: #{tpu_custom_call.1} parent=1 // loop_body
      %s32 = ssub.s32 %s27, 1
      %s33 = ssub.s32 %s27, 2
      %s40 = sadd.s32 1, %s35
      %p41 = scmp.ge.s32.totalorder %s40, 2
      %s42 = scalar_select %p41, 0, %s40
      %s43 = sadd.s32 1, %s34
      %s44 = scalar_select %p41, %s43, %s34
      %p45 = scmp.ge.s32.totalorder %s44, 1
      %s46 = scalar_select %p45, 0, %s44
      %s47 = ssub.s32 %s34, %s46
      %s48 = ssub.s32 %s35, %s42
      %s49 = sor.u32 %s47, %s48
      %p50 = scmp.eq.s32.totalorder %s49, 0
      %s52 = sadd.s32 %s51, 1
      %s53 = scalar_select %p50, %s51, %s52
      %p56 = pneg %p50
      %p57 = scmp.eq.s32.totalorder %s27, 1
      %p58 = por %p56, %p57
      %p59 = scmp.ne.s32.totalorder %s51, %s54
      %p60 = scmp.eq.s32.totalorder %s27, 0
      %p61 = por %p59, %p60
      %p62 = scmp.ne.s32.totalorder %s51, %s54
      %p63 = scmp.eq.s32.totalorder %s32, 1
      %p64 = por %p62, %p63
      %p65 = scmp.ne.s32.totalorder %s54, %s55
      %p66 = scmp.eq.s32.totalorder %s32, 0
      %p67 = por %p65, %p66
      %p68 = scmp.ne.s32.totalorder %s54, %s55
      %p69 = scmp.eq.s32.totalorder %s33, 1
      %p70 = por %p68, %p69
      %p72 = scmp.ne.s32.totalorder %s55, %s71
      %p73 = scmp.eq.s32.totalorder %s33, 0
      %p74 = por %p72, %p73
      %s75 = ssub.s32 %s35, %s42
      %p76 = scmp.eq.s32.totalorder %s75, 0
      %s78 = sadd.s32 %s77, 1
      %s79 = scalar_select %p76, %s77, %s78
      %p82 = pneg %p76
      %p83 = scmp.eq.s32.totalorder %s27, 1
      %p84 = por %p82, %p83
      %p85 = scmp.ne.s32.totalorder %s77, %s80
      %p86 = scmp.eq.s32.totalorder %s27, 0
      %p87 = por %p85, %p86
      %p88 = scmp.ne.s32.totalorder %s77, %s80
      %p89 = scmp.eq.s32.totalorder %s32, 1
      %p90 = por %p88, %p89
      %p91 = scmp.ne.s32.totalorder %s80, %s81
      %p92 = scmp.eq.s32.totalorder %s32, 0
      %p93 = por %p91, %p92
      %p94 = scmp.ne.s32.totalorder %s80, %s81
      %p95 = scmp.eq.s32.totalorder %s33, 1
      %p96 = por %p94, %p95
      %p98 = scmp.ne.s32.totalorder %s81, %s97
      %p99 = scmp.eq.s32.totalorder %s33, 0
      %p100 = por %p98, %p99
      %s102 = sadd.s32 %s101, 1
      %p105 = scmp.eq.s32.totalorder %s27, 1
      %p106 = scmp.ne.s32.totalorder %s101, %s103
      %p107 = scmp.eq.s32.totalorder %s27, 0
      %p108 = por %p106, %p107
      %p109 = scmp.ne.s32.totalorder %s101, %s103
      %p110 = scmp.eq.s32.totalorder %s32, 1
      %p111 = por %p109, %p110
      %p112 = scmp.ne.s32.totalorder %s103, %s104
      %p113 = scmp.eq.s32.totalorder %s32, 0
      %p114 = por %p112, %p113
      %p115 = scmp.ne.s32.totalorder %s103, %s104
      %p116 = scmp.eq.s32.totalorder %s33, 1
      %p117 = por %p115, %p116
      %p119 = scmp.ne.s32.totalorder %s104, %s118
      %p120 = scmp.eq.s32.totalorder %s33, 0
      %p121 = por %p119, %p120
      %s123 = sadd.s32 %s122, 1
      %p126 = scmp.eq.s32.totalorder %s27, 1
      %p127 = scmp.ne.s32.totalorder %s122, %s124
      %p128 = scmp.eq.s32.totalorder %s27, 0
      %p129 = por %p127, %p128
      %p130 = scmp.ne.s32.totalorder %s122, %s124
      %p131 = scmp.eq.s32.totalorder %s32, 1
      %p132 = por %p130, %p131
      %p133 = scmp.ne.s32.totalorder %s124, %s125
      %p134 = scmp.eq.s32.totalorder %s32, 0
      %p135 = por %p133, %p134
      %p136 = scmp.ne.s32.totalorder %s124, %s125
      %p137 = scmp.eq.s32.totalorder %s33, 1
      %p138 = por %p136, %p137
      %p140 = scmp.ne.s32.totalorder %s125, %s139
      %p141 = scmp.eq.s32.totalorder %s33, 0
      %p142 = por %p140, %p141
      %s144 = sadd.s32 %s143, 1
      %p147 = scmp.eq.s32.totalorder %s27, 1
      %p148 = scmp.ne.s32.totalorder %s143, %s145
      %p149 = scmp.eq.s32.totalorder %s27, 0
      %p150 = por %p148, %p149
      %p151 = scmp.ne.s32.totalorder %s143, %s145
      %p152 = scmp.eq.s32.totalorder %s32, 1
      %p153 = por %p151, %p152
      %p154 = scmp.ne.s32.totalorder %s145, %s146
      %p155 = scmp.eq.s32.totalorder %s32, 0
      %p156 = por %p154, %p155
      %p157 = scmp.ne.s32.totalorder %s145, %s146
      %p158 = scmp.eq.s32.totalorder %s33, 1
      %p159 = por %p157, %p158
      %p161 = scmp.ne.s32.totalorder %s146, %s160
      %p162 = scmp.eq.s32.totalorder %s33, 0
      %p163 = por %p161, %p162
      %s165 = sadd.s32 %s164, 1
      %p168 = scmp.eq.s32.totalorder %s27, 1
      %p169 = scmp.ne.s32.totalorder %s164, %s166
      %p170 = scmp.eq.s32.totalorder %s27, 0
      %p171 = por %p169, %p170
      %p172 = scmp.ne.s32.totalorder %s164, %s166
      %p173 = scmp.eq.s32.totalorder %s32, 1
      %p174 = por %p172, %p173
      %p175 = scmp.ne.s32.totalorder %s166, %s167
      %p176 = scmp.eq.s32.totalorder %s32, 0
      %p177 = por %p175, %p176
      %p178 = scmp.ne.s32.totalorder %s166, %s167
      %p179 = scmp.eq.s32.totalorder %s33, 1
      %p180 = por %p178, %p179
      %p182 = scmp.ne.s32.totalorder %s167, %s181
      %p183 = scmp.eq.s32.totalorder %s33, 0
      %p184 = por %p182, %p183
      %s186 = sadd.s32 %s185, 1
      %p189 = scmp.eq.s32.totalorder %s27, 1
      %p190 = scmp.ne.s32.totalorder %s185, %s187
      %p191 = scmp.eq.s32.totalorder %s27, 0
      %p192 = por %p190, %p191
      %p193 = scmp.ne.s32.totalorder %s185, %s187
      %p194 = scmp.eq.s32.totalorder %s32, 1
      %p195 = por %p193, %p194
      %p196 = scmp.ne.s32.totalorder %s187, %s188
      %p197 = scmp.eq.s32.totalorder %s32, 0
      %p198 = por %p196, %p197
      %p199 = scmp.ne.s32.totalorder %s187, %s188
      %p200 = scmp.eq.s32.totalorder %s33, 1
      %p201 = por %p199, %p200
      %p203 = scmp.ne.s32.totalorder %s188, %s202
      %p204 = scmp.eq.s32.totalorder %s33, 0
      %p205 = por %p203, %p204
      %s207 = sadd.s32 %s206, 1
      %p210 = scmp.eq.s32.totalorder %s27, 1
      %p211 = scmp.ne.s32.totalorder %s206, %s208
      %p212 = scmp.eq.s32.totalorder %s27, 0
      %p213 = por %p211, %p212
      %p214 = scmp.ne.s32.totalorder %s206, %s208
      %p215 = scmp.eq.s32.totalorder %s32, 1
      %p216 = por %p214, %p215
      %p217 = scmp.ne.s32.totalorder %s208, %s209
      %p218 = scmp.eq.s32.totalorder %s32, 0
      %p219 = por %p217, %p218
      %p220 = scmp.ne.s32.totalorder %s208, %s209
      %p221 = scmp.eq.s32.totalorder %s33, 1
      %p222 = por %p220, %p221
      %p224 = scmp.ne.s32.totalorder %s209, %s223
      %p225 = scmp.eq.s32.totalorder %s33, 0
      %p226 = por %p224, %p225
      %s228 = sadd.s32 %s227, 1
      %p231 = scmp.eq.s32.totalorder %s27, 1
      %p232 = scmp.ne.s32.totalorder %s227, %s229
      %p233 = scmp.eq.s32.totalorder %s27, 0
      %p234 = por %p232, %p233
      %p235 = scmp.ne.s32.totalorder %s227, %s229
      %p236 = scmp.eq.s32.totalorder %s32, 1
      %p237 = por %p235, %p236
      %p238 = scmp.ne.s32.totalorder %s229, %s230
      %p239 = scmp.eq.s32.totalorder %s32, 0
      %p240 = por %p238, %p239
      %p241 = scmp.ne.s32.totalorder %s229, %s230
      %p242 = scmp.eq.s32.totalorder %s33, 1
      %p243 = por %p241, %p242
      %p245 = scmp.ne.s32.totalorder %s230, %s244
      %p246 = scmp.eq.s32.totalorder %s33, 0
      %p247 = por %p245, %p246
      %s249 = sadd.s32 %s248, 1
      %p252 = scmp.eq.s32.totalorder %s27, 1
      %p253 = scmp.ne.s32.totalorder %s248, %s250
      %p254 = scmp.eq.s32.totalorder %s27, 0
      %p255 = por %p253, %p254
      %p256 = scmp.ne.s32.totalorder %s248, %s250
      %p257 = scmp.eq.s32.totalorder %s32, 1
      %p258 = por %p256, %p257
      %p259 = scmp.ne.s32.totalorder %s250, %s251
      %p260 = scmp.eq.s32.totalorder %s32, 0
      %p261 = por %p259, %p260
      %p262 = scmp.ne.s32.totalorder %s250, %s251
      %p263 = scmp.eq.s32.totalorder %s33, 1
      %p264 = por %p262, %p263
      %p266 = scmp.ne.s32.totalorder %s251, %s265
      %p267 = scmp.eq.s32.totalorder %s33, 0
      %p268 = por %p266, %p267
      %s269 = ssub.s32 %s34, %s46
      %p270 = scmp.eq.s32.totalorder %s269, 0
      %s272 = sadd.s32 %s271, 1
      %s273 = scalar_select %p270, %s271, %s272
      %p276 = pneg %p270
      %p277 = scmp.eq.s32.totalorder %s27, 1
      %p278 = por %p276, %p277
      %p279 = scmp.ne.s32.totalorder %s271, %s274
      %p280 = scmp.eq.s32.totalorder %s27, 0
      %p281 = por %p279, %p280
      %p282 = scmp.ne.s32.totalorder %s271, %s274
      %p283 = scmp.eq.s32.totalorder %s32, 1
      %p284 = por %p282, %p283
      %p285 = scmp.ne.s32.totalorder %s274, %s275
      %p286 = scmp.eq.s32.totalorder %s32, 0
      %p287 = por %p285, %p286
      %p288 = scmp.ne.s32.totalorder %s274, %s275
      %p289 = scmp.eq.s32.totalorder %s33, 1
      %p290 = por %p288, %p289
      %p292 = scmp.ne.s32.totalorder %s275, %s291
      %p293 = scmp.eq.s32.totalorder %s33, 0
      %p294 = por %p292, %p293
      %p295 = scmp.le.s32.totalorder 1, %s27
      %p296 = scmp.lt.s32.totalorder %s27, 3
      %p297 = pnand %p295, %p296
      %p298 = pneg %p297
      // Predicated region
      $region9: #{tpu_custom_call.1} parent=5 // pred_check
        _
      $region10: #{tpu_custom_call.1} parent=5 // pred_check_branch
        %300 = sbr.rel (%p297) target = $region12
      $region11: #{tpu_custom_call.1} parent=5 // pred_region
        %s301 = ssub.s32 %s27, 1
        // Predicated region
        $region13: #{tpu_custom_call.1} parent=11 // pred_check
          %p302 = pneg %p114
        $region14: #{tpu_custom_call.1} parent=11 // pred_check_branch
          %304 = sbr.rel (%p302) target = $region16
        $region15: #{tpu_custom_call.1} parent=11 // pred_region
          %s306 = ssub.s32 8192, 8192
          %307 = vsyncadd [#allocation7], %s306
          %s308 = sshll.u32 [#allocation8], 4
          %s309 = int_to_ptr.vmem [resolvable:$true] %s308
          %314 = dma.hbm_to_vmem [thread:$0]  %s2, 8192, %s309, [#allocation7], 128, 128, 8
        $region16: #{tpu_custom_call.1} parent=11 // pred_fallthru
          _
        // Predicated region
        $region17: #{tpu_custom_call.1} parent=11 // pred_check
          %p315 = pneg %p135
        $region18: #{tpu_custom_call.1} parent=11 // pred_check_branch
          %317 = sbr.rel (%p315) target = $region20
        $region19: #{tpu_custom_call.1} parent=11 // pred_region
          %s319 = ssub.s32 32, 32
          %320 = vsyncadd [#allocation10], %s319
          %s322 = sshll.u32 [#allocation9], 4
          %s323 = int_to_ptr.vmem [resolvable:$true] %s322
          %325 = dma.hbm_to_vmem [thread:$0]  %s3, 32, %s323, [#allocation10]
        $region20: #{tpu_custom_call.1} parent=11 // pred_fallthru
          _
        // Predicated region
        $region21: #{tpu_custom_call.1} parent=11 // pred_check
          %p326 = pneg %p156
        $region22: #{tpu_custom_call.1} parent=11 // pred_check_branch
          %328 = sbr.rel (%p326) target = $region24
        $region23: #{tpu_custom_call.1} parent=11 // pred_region
          %s330 = ssub.s32 32, 32
          %331 = vsyncadd [#allocation10], %s330
          %s333 = sshll.u32 [#allocation11], 4
          %s334 = int_to_ptr.vmem [resolvable:$true] %s333
          %336 = dma.hbm_to_vmem [thread:$0]  %s4, 32, %s334, [#allocation10]
        $region24: #{tpu_custom_call.1} parent=11 // pred_fallthru
          _
        // Predicated region
        $region25: #{tpu_custom_call.1} parent=11 // pred_check
          %p337 = pneg %p177
        $region26: #{tpu_custom_call.1} parent=11 // pred_check_branch
          %339 = sbr.rel (%p337) target = $region28
        $region27: #{tpu_custom_call.1} parent=11 // pred_region
          %s341 = ssub.s32 32, 32
          %342 = vsyncadd [#allocation13], %s341
          %s344 = sshll.u32 [#allocation12], 4
          %s345 = int_to_ptr.vmem [resolvable:$true] %s344
          %347 = dma.hbm_to_vmem [thread:$0]  %s5, 32, %s345, [#allocation13]
        $region28: #{tpu_custom_call.1} parent=11 // pred_fallthru
          _
        // Predicated region
        $region29: #{tpu_custom_call.1} parent=11 // pred_check
          %p348 = pneg %p198
        $region30: #{tpu_custom_call.1} parent=11 // pred_check_branch
          %350 = sbr.rel (%p348) target = $region32
        $region31: #{tpu_custom_call.1} parent=11 // pred_region
          %s352 = ssub.s32 4096, 4096
          %353 = vsyncadd [#allocation13], %s352
          %s354 = sshll.u32 [#allocation14], 4
          %s355 = int_to_ptr.vmem [resolvable:$true] %s354
          %360 = dma.hbm_to_vmem [thread:$0]  %s6, 4096, %s355, [#allocation13], 128, 128, 8
        $region32: #{tpu_custom_call.1} parent=11 // pred_fallthru
          _
        // Predicated region
        $region33: #{tpu_custom_call.1} parent=11 // pred_check
          %p361 = pneg %p219
        $region34: #{tpu_custom_call.1} parent=11 // pred_check_branch
          %363 = sbr.rel (%p361) target = $region36
        $region35: #{tpu_custom_call.1} parent=11 // pred_region
          %s365 = ssub.s32 32, 32
          %366 = vsyncadd [#allocation16], %s365
          %s368 = sshll.u32 [#allocation15], 4
          %s369 = int_to_ptr.vmem [resolvable:$true] %s368
          %371 = dma.hbm_to_vmem [thread:$0]  %s7, 32, %s369, [#allocation16]
        $region36: #{tpu_custom_call.1} parent=11 // pred_fallthru
          _
        // Predicated region
        $region37: #{tpu_custom_call.1} parent=11 // pred_check
          %p372 = pneg %p240
        $region38: #{tpu_custom_call.1} parent=11 // pred_check_branch
          %374 = sbr.rel (%p372) target = $region40
        $region39: #{tpu_custom_call.1} parent=11 // pred_region
          %s376 = ssub.s32 32, 32
          %377 = vsyncadd [#allocation16], %s376
          %s379 = sshll.u32 [#allocation17], 4
          %s380 = int_to_ptr.vmem [resolvable:$true] %s379
          %382 = dma.hbm_to_vmem [thread:$0]  %s8, 32, %s380, [#allocation16]
        $region40: #{tpu_custom_call.1} parent=11 // pred_fallthru
          _
        // Predicated region
        $region41: #{tpu_custom_call.1} parent=11 // pred_check
          %p383 = pneg %p261
        $region42: #{tpu_custom_call.1} parent=11 // pred_check_branch
          %385 = sbr.rel (%p383) target = $region44
        $region43: #{tpu_custom_call.1} parent=11 // pred_region
          %s387 = ssub.s32 32, 32
          %388 = vsyncadd [#allocation19], %s387
          %s390 = sshll.u32 [#allocation18], 4
          %s391 = int_to_ptr.vmem [resolvable:$true] %s390
          %393 = dma.hbm_to_vmem [thread:$0]  %s9, 32, %s391, [#allocation19]
        $region44: #{tpu_custom_call.1} parent=11 // pred_fallthru
          _
      $region12: #{tpu_custom_call.1} parent=5 // pred_fallthru
        _
      %p394 = scmp.lt.s32.totalorder %s27, 2
      // Predicated region
      $region45: #{tpu_custom_call.1} parent=5 // pred_check
        %p395 = pneg %p394
      $region46: #{tpu_custom_call.1} parent=5 // pred_check_branch
        %397 = sbr.rel (%p395) target = $region48
      $region47: #{tpu_custom_call.1} parent=5 // pred_region
        // Predicated region
        $region49: #{tpu_custom_call.1} parent=47 // pred_check
          %p398 = pneg %p61
        $region50: #{tpu_custom_call.1} parent=47 // pred_check_branch
          %400 = sbr.rel (%p398) target = $region52
        $region51: #{tpu_custom_call.1} parent=47 // pred_region
          %s401 = sand.u32 %s51, 1
          %s402 = scalar_lea.sflag [#allocation4], %s401
          %s403 = sand.u32 %s51, 1
          %s404 = smul.addr %s403, 128
          %s405 = scalar_lea.vmem [#allocation3], %s404
          %s406 = smul.u32 16, %s35
          %s408 = ssub.s32 2048, 2048
          %409 = vsyncadd %s402, %s408
          %s410 = smul.addr %s34, 32
          %s411 = sadd.s32 %s406, %s410
          %s412 = smul.addr %s411, 128
          %s413 = scalar_lea.hbm %s0, %s412
          %s415 = sshll.u32 %s405, 4
          %s416 = int_to_ptr.vmem [resolvable:$true] %s415
          %418 = dma.hbm_to_vmem [thread:$0]  %s413, 2048, %s416, %s402
        $region52: #{tpu_custom_call.1} parent=47 // pred_fallthru
          _
        // Predicated region
        $region53: #{tpu_custom_call.1} parent=47 // pred_check
          %p419 = pneg %p87
        $region54: #{tpu_custom_call.1} parent=47 // pred_check_branch
          %421 = sbr.rel (%p419) target = $region56
        $region55: #{tpu_custom_call.1} parent=47 // pred_region
          %s422 = sand.u32 %s27, 1
          %s423 = scalar_lea.sflag [#allocation7], %s422
          %s424 = sand.u32 %s77, 1
          %s425 = smul.addr %s424, 4096
          %s426 = scalar_lea.vmem [#allocation6], %s425
          %s427 = smul.u32 256, %s35
          %s429 = ssub.s32 65536, 65536
          %430 = vsyncadd %s423, %s429
          %s431 = smul.addr %s427, 4
          %s432 = smul.addr %s431, 64
          %s433 = scalar_lea.hbm %s1, %s432
          %s434 = sshll.u32 %s426, 4
          %s435 = int_to_ptr.vmem [resolvable:$true] %s434
          %440 = dma.hbm_to_vmem [thread:$0]  %s433, 65536, %s435, %s423, 256, 256, 16
        $region56: #{tpu_custom_call.1} parent=47 // pred_fallthru
          _
      $region48: #{tpu_custom_call.1} parent=5 // pred_fallthru
        _
      %p441 = scmp.le.s32.totalorder 1, %s27
      %p442 = scmp.lt.s32.totalorder %s27, 3
      %p443 = pnand %p441, %p442
      %p444 = pneg %p443
      // Predicated region
      $region57: #{tpu_custom_call.1} parent=5 // pred_check
        _
      $region58: #{tpu_custom_call.1} parent=5 // pred_check_branch
        %446 = sbr.rel (%p443) target = $region60
      $region59: #{tpu_custom_call.1} parent=5 // pred_region
        %s447 = ssub.s32 %s27, 1
        %s448 = sand.u32 %s54, 1
        %s449 = scalar_lea.sflag [#allocation4], %s448
        %s450 = sand.u32 %s54, 1
        %s451 = smul.addr %s450, 128
        %s452 = scalar_lea.vmem [#allocation3], %s451
        // Predicated region
        $region61: #{tpu_custom_call.1} parent=59 // pred_check
          %p453 = pneg %p67
        $region62: #{tpu_custom_call.1} parent=59 // pred_check_branch
          %455 = sbr.rel (%p453) target = $region64
        $region63: #{tpu_custom_call.1} parent=59 // pred_region
          %456 = dma.done %s449, 2048
        $region64: #{tpu_custom_call.1} parent=59 // pred_fallthru
          _
        %s457 = sand.u32 %s32, 1
        %s458 = scalar_lea.sflag [#allocation7], %s457
        %s459 = sand.u32 %s80, 1
        %s460 = smul.addr %s459, 4096
        %s461 = scalar_lea.vmem [#allocation6], %s460
        // Predicated region
        $region65: #{tpu_custom_call.1} parent=59 // pred_check
          %p462 = pneg %p93
        $region66: #{tpu_custom_call.1} parent=59 // pred_check_branch
          %464 = sbr.rel (%p462) target = $region68
        $region67: #{tpu_custom_call.1} parent=59 // pred_region
          %465 = dma.done %s458, 65536
        $region68: #{tpu_custom_call.1} parent=59 // pred_fallthru
          _
        // Predicated region
        $region69: #{tpu_custom_call.1} parent=59 // pred_check
          %p466 = pneg %p114
        $region70: #{tpu_custom_call.1} parent=59 // pred_check_branch
          %468 = sbr.rel (%p466) target = $region72
        $region71: #{tpu_custom_call.1} parent=59 // pred_region
          %469 = dma.done [#allocation7], 8192
        $region72: #{tpu_custom_call.1} parent=59 // pred_fallthru
          _
        // Predicated region
        $region73: #{tpu_custom_call.1} parent=59 // pred_check
          %p470 = pneg %p135
        $region74: #{tpu_custom_call.1} parent=59 // pred_check_branch
          %472 = sbr.rel (%p470) target = $region76
        $region75: #{tpu_custom_call.1} parent=59 // pred_region
          %473 = dma.done [#allocation10], 32
        $region76: #{tpu_custom_call.1} parent=59 // pred_fallthru
          _
        // Predicated region
        $region77: #{tpu_custom_call.1} parent=59 // pred_check
          %p474 = pneg %p156
        $region78: #{tpu_custom_call.1} parent=59 // pred_check_branch
          %476 = sbr.rel (%p474) target = $region80
        $region79: #{tpu_custom_call.1} parent=59 // pred_region
          %477 = dma.done [#allocation10], 32
        $region80: #{tpu_custom_call.1} parent=59 // pred_fallthru
          _
        // Predicated region
        $region81: #{tpu_custom_call.1} parent=59 // pred_check
          %p478 = pneg %p177
        $region82: #{tpu_custom_call.1} parent=59 // pred_check_branch
          %480 = sbr.rel (%p478) target = $region84
        $region83: #{tpu_custom_call.1} parent=59 // pred_region
          %481 = dma.done [#allocation13], 32
        $region84: #{tpu_custom_call.1} parent=59 // pred_fallthru
          _
        // Predicated region
        $region85: #{tpu_custom_call.1} parent=59 // pred_check
          %p482 = pneg %p198
        $region86: #{tpu_custom_call.1} parent=59 // pred_check_branch
          %484 = sbr.rel (%p482) target = $region88
        $region87: #{tpu_custom_call.1} parent=59 // pred_region
          %485 = dma.done [#allocation13], 4096
        $region88: #{tpu_custom_call.1} parent=59 // pred_fallthru
          _
        // Predicated region
        $region89: #{tpu_custom_call.1} parent=59 // pred_check
          %p486 = pneg %p219
        $region90: #{tpu_custom_call.1} parent=59 // pred_check_branch
          %488 = sbr.rel (%p486) target = $region92
        $region91: #{tpu_custom_call.1} parent=59 // pred_region
          %489 = dma.done [#allocation16], 32
        $region92: #{tpu_custom_call.1} parent=59 // pred_fallthru
          _
        // Predicated region
        $region93: #{tpu_custom_call.1} parent=59 // pred_check
          %p490 = pneg %p240
        $region94: #{tpu_custom_call.1} parent=59 // pred_check_branch
          %492 = sbr.rel (%p490) target = $region96
        $region95: #{tpu_custom_call.1} parent=59 // pred_region
          %493 = dma.done [#allocation16], 32
        $region96: #{tpu_custom_call.1} parent=59 // pred_fallthru
          _
        // Predicated region
        $region97: #{tpu_custom_call.1} parent=59 // pred_check
          %p494 = pneg %p261
        $region98: #{tpu_custom_call.1} parent=59 // pred_check_branch
          %496 = sbr.rel (%p494) target = $region100
        $region99: #{tpu_custom_call.1} parent=59 // pred_region
          %497 = dma.done [#allocation19], 32
        $region100: #{tpu_custom_call.1} parent=59 // pred_fallthru
          _
        %s498 = sand.u32 %s54, 1
        %s499 = scalar_lea.sflag [#allocation4], %s498
        %s500 = sand.u32 %s54, 1
        %s501 = smul.addr %s500, 128
        %s502 = scalar_lea.vmem [#allocation3], %s501
        %p503 = pneg %p67
        %p504 = pneg %p64
        %s505 = sand.u32 %s32, 1
        %s506 = scalar_lea.sflag [#allocation7], %s505
        %s507 = sand.u32 %s80, 1
        %s508 = smul.addr %s507, 4096
        %s509 = scalar_lea.vmem [#allocation6], %s508
        %p510 = pneg %p93
        %p511 = pneg %p90
        %p512 = pneg %p114
        %p513 = pneg %p111
        %p514 = pneg %p135
        %p515 = pneg %p132
        %p516 = pneg %p156
        %p517 = pneg %p153
        %p518 = pneg %p177
        %p519 = pneg %p174
        %p520 = pneg %p198
        %p521 = pneg %p195
        %p522 = pneg %p219
        %p523 = pneg %p216
        %p524 = pneg %p240
        %p525 = pneg %p237
        %p526 = pneg %p261
        %p527 = pneg %p258
        %p528 = pneg %p287
        %p529 = pneg %p284
        %s530 = smul.u32 16, %s37
        %s531 = smul.u32 256, %s37
        %p532 = scmp.eq.s32.totalorder %s37, 0
        // Predicated region
        $region101: #{tpu_custom_call.1} parent=59 // pred_check
          %p533 = pneg %p532
        $region102: #{tpu_custom_call.1} parent=59 // pred_check_branch
          %535 = sbr.rel (%p533) target = $region104
        $region103: #{tpu_custom_call.1} parent=59 // pred_region
          %536 = vst [vmem:[#allocation2] sm:$0xff] 0.0
          %537 = vst [vmem:[#allocation2 + $0x8] sm:$0xff] 0.0
          %538 = vst [vmem:[#allocation2 + $0x10] sm:$0xff] 0.0
          %539 = vst [vmem:[#allocation2 + $0x18] sm:$0xff] 0.0
        $region104: #{tpu_custom_call.1} parent=59 // pred_fallthru
          _
        %v540 = vld [vmem:[#allocation2] sm:$0xff]
        %v541 = vld [vmem:[#allocation2 + $0x8] sm:$0xff]
        %v542 = vld [vmem:[#allocation2 + $0x10] sm:$0xff]
        %v543 = vld [vmem:[#allocation2 + $0x18] sm:$0xff]
        %v544 = vld [vmem:[%s452] sm:$0xff]
        %v545 = vld [vmem:[%s452 + $0x8] sm:$0xff]
        %v546 = vld [vmem:[%s452 + $0x10] sm:$0xff]
        %v547 = vld [vmem:[%s452 + $0x18] sm:$0xff]
        %v548 = vld [vmem:[%s452 + $0x20] sm:$0xff]
        %v549 = vld [vmem:[%s452 + $0x28] sm:$0xff]
        %v550 = vld [vmem:[%s452 + $0x30] sm:$0xff]
        %v551 = vld [vmem:[%s452 + $0x38] sm:$0xff]
        %v552 = vld [vmem:[%s452 + $0x40] sm:$0xff]
        %v553 = vld [vmem:[%s452 + $0x48] sm:$0xff]
        %v554 = vld [vmem:[%s452 + $0x50] sm:$0xff]
        %v555 = vld [vmem:[%s452 + $0x58] sm:$0xff]
        %v556 = vld [vmem:[%s452 + $0x60] sm:$0xff]
        %v557 = vld [vmem:[%s452 + $0x68] sm:$0xff]
        %v558 = vld [vmem:[%s452 + $0x70] sm:$0xff]
        %v559 = vld [vmem:[%s452 + $0x78] sm:$0xff]
        %v560 = vpack.c.bf16 %v544, %v544
        %v561 = vpack.c.bf16 %v545, %v545
        %v562 = vpack.c.bf16 %v546, %v546
        %v563 = vpack.c.bf16 %v547, %v547
        %v564 = vpack.c.bf16 %v548, %v548
        %v565 = vpack.c.bf16 %v549, %v549
        %v566 = vpack.c.bf16 %v550, %v550
        %v567 = vpack.c.bf16 %v551, %v551
        %v568 = vpack.c.bf16 %v552, %v552
        %v569 = vpack.c.bf16 %v553, %v553
        %v570 = vpack.c.bf16 %v554, %v554
        %v571 = vpack.c.bf16 %v555, %v555
        %v572 = vpack.c.bf16 %v556, %v556
        %v573 = vpack.c.bf16 %v557, %v557
        %v574 = vpack.c.bf16 %v558, %v558
        %v575 = vpack.c.bf16 %v559, %v559
        %v576 = vld [vmem:[%s461] sm:$0xff]
        %v577 = vld [vmem:[%s461 + $0x8] sm:$0xff]
        %v578 = vld [vmem:[%s461 + $0x10] sm:$0xff]
        %v579 = vld [vmem:[%s461 + $0x18] sm:$0xff]
        %v580 = vld [vmem:[%s461 + $0x20] sm:$0xff]
        %v581 = vld [vmem:[%s461 + $0x28] sm:$0xff]
        %v582 = vld [vmem:[%s461 + $0x30] sm:$0xff]
        %v583 = vld [vmem:[%s461 + $0x38] sm:$0xff]
        %v584 = vld [vmem:[%s461 + $0x40] sm:$0xff]
        %v585 = vld [vmem:[%s461 + $0x48] sm:$0xff]
        %v586 = vld [vmem:[%s461 + $0x50] sm:$0xff]
        %v587 = vld [vmem:[%s461 + $0x58] sm:$0xff]
        %v588 = vld [vmem:[%s461 + $0x60] sm:$0xff]
        %v589 = vld [vmem:[%s461 + $0x68] sm:$0xff]
        %v590 = vld [vmem:[%s461 + $0x70] sm:$0xff]
        %v591 = vld [vmem:[%s461 + $0x78] sm:$0xff]
        %v592 = vld [vmem:[%s461 + $0x80] sm:$0xff]
        %v593 = vld [vmem:[%s461 + $0x88] sm:$0xff]
        %v594 = vld [vmem:[%s461 + $0x90] sm:$0xff]
        %v595 = vld [vmem:[%s461 + $0x98] sm:$0xff]
        %v596 = vld [vmem:[%s461 + $0xa0] sm:$0xff]
        %v597 = vld [vmem:[%s461 + $0xa8] sm:$0xff]
        %v598 = vld [vmem:[%s461 + $0xb0] sm:$0xff]
        %v599 = vld [vmem:[%s461 + $0xb8] sm:$0xff]
        %v600 = vld [vmem:[%s461 + $0xc0] sm:$0xff]
        %v601 = vld [vmem:[%s461 + $0xc8] sm:$0xff]
        %v602 = vld [vmem:[%s461 + $0xd0] sm:$0xff]
        %v603 = vld [vmem:[%s461 + $0xd8] sm:$0xff]
        %v604 = vld [vmem:[%s461 + $0xe0] sm:$0xff]
        %v605 = vld [vmem:[%s461 + $0xe8] sm:$0xff]
        %v606 = vld [vmem:[%s461 + $0xf0] sm:$0xff]
        %v607 = vld [vmem:[%s461 + $0xf8] sm:$0xff]
        %v608 = vld [vmem:[%s461 + $0x100] sm:$0xff]
        %v609 = vld [vmem:[%s461 + $0x108] sm:$0xff]
        %v610 = vld [vmem:[%s461 + $0x110] sm:$0xff]
        %v611 = vld [vmem:[%s461 + $0x118] sm:$0xff]
        %v612 = vld [vmem:[%s461 + $0x120] sm:$0xff]
        %v613 = vld [vmem:[%s461 + $0x128] sm:$0xff]
        %v614 = vld [vmem:[%s461 + $0x130] sm:$0xff]
        %v615 = vld [vmem:[%s461 + $0x138] sm:$0xff]
        %v616 = vld [vmem:[%s461 + $0x140] sm:$0xff]
        %v617 = vld [vmem:[%s461 + $0x148] sm:$0xff]
        %v618 = vld [vmem:[%s461 + $0x150] sm:$0xff]
        %v619 = vld [vmem:[%s461 + $0x158] sm:$0xff]
        %v620 = vld [vmem:[%s461 + $0x160] sm:$0xff]
        %v621 = vld [vmem:[%s461 + $0x168] sm:$0xff]
        %v622 = vld [vmem:[%s461 + $0x170] sm:$0xff]
        %v623 = vld [vmem:[%s461 + $0x178] sm:$0xff]
        %v624 = vld [vmem:[%s461 + $0x180] sm:$0xff]
        %v625 = vld [vmem:[%s461 + $0x188] sm:$0xff]
        %v626 = vld [vmem:[%s461 + $0x190] sm:$0xff]
        %v627 = vld [vmem:[%s461 + $0x198] sm:$0xff]
        %v628 = vld [vmem:[%s461 + $0x1a0] sm:$0xff]
        %v629 = vld [vmem:[%s461 + $0x1a8] sm:$0xff]
        %v630 = vld [vmem:[%s461 + $0x1b0] sm:$0xff]
        %v631 = vld [vmem:[%s461 + $0x1b8] sm:$0xff]
        %v632 = vld [vmem:[%s461 + $0x1c0] sm:$0xff]
        %v633 = vld [vmem:[%s461 + $0x1c8] sm:$0xff]
        %v634 = vld [vmem:[%s461 + $0x1d0] sm:$0xff]
        %v635 = vld [vmem:[%s461 + $0x1d8] sm:$0xff]
        %v636 = vld [vmem:[%s461 + $0x1e0] sm:$0xff]
        %v637 = vld [vmem:[%s461 + $0x1e8] sm:$0xff]
        %v638 = vld [vmem:[%s461 + $0x1f0] sm:$0xff]
        %v639 = vld [vmem:[%s461 + $0x1f8] sm:$0xff]
        %v640 = vld [vmem:[%s461 + $0x200] sm:$0xff]
        %v641 = vld [vmem:[%s461 + $0x208] sm:$0xff]
        %v642 = vld [vmem:[%s461 + $0x210] sm:$0xff]
        %v643 = vld [vmem:[%s461 + $0x218] sm:$0xff]
        %v644 = vld [vmem:[%s461 + $0x220] sm:$0xff]
        %v645 = vld [vmem:[%s461 + $0x228] sm:$0xff]
        %v646 = vld [vmem:[%s461 + $0x230] sm:$0xff]
        %v647 = vld [vmem:[%s461 + $0x238] sm:$0xff]
        %v648 = vld [vmem:[%s461 + $0x240] sm:$0xff]
        %v649 = vld [vmem:[%s461 + $0x248] sm:$0xff]
        %v650 = vld [vmem:[%s461 + $0x250] sm:$0xff]
        %v651 = vld [vmem:[%s461 + $0x258] sm:$0xff]
        %v652 = vld [vmem:[%s461 + $0x260] sm:$0xff]
        %v653 = vld [vmem:[%s461 + $0x268] sm:$0xff]
        %v654 = vld [vmem:[%s461 + $0x270] sm:$0xff]
        %v655 = vld [vmem:[%s461 + $0x278] sm:$0xff]
        %v656 = vld [vmem:[%s461 + $0x280] sm:$0xff]
        %v657 = vld [vmem:[%s461 + $0x288] sm:$0xff]
        %v658 = vld [vmem:[%s461 + $0x290] sm:$0xff]
        %v659 = vld [vmem:[%s461 + $0x298] sm:$0xff]
        %v660 = vld [vmem:[%s461 + $0x2a0] sm:$0xff]
        %v661 = vld [vmem:[%s461 + $0x2a8] sm:$0xff]
        %v662 = vld [vmem:[%s461 + $0x2b0] sm:$0xff]
        %v663 = vld [vmem:[%s461 + $0x2b8] sm:$0xff]
        %v664 = vld [vmem:[%s461 + $0x2c0] sm:$0xff]
        %v665 = vld [vmem:[%s461 + $0x2c8] sm:$0xff]
        %v666 = vld [vmem:[%s461 + $0x2d0] sm:$0xff]
        %v667 = vld [vmem:[%s461 + $0x2d8] sm:$0xff]
        %v668 = vld [vmem:[%s461 + $0x2e0] sm:$0xff]
        %v669 = vld [vmem:[%s461 + $0x2e8] sm:$0xff]
        %v670 = vld [vmem:[%s461 + $0x2f0] sm:$0xff]
        %v671 = vld [vmem:[%s461 + $0x2f8] sm:$0xff]
        %v672 = vld [vmem:[%s461 + $0x300] sm:$0xff]
        %v673 = vld [vmem:[%s461 + $0x308] sm:$0xff]
        %v674 = vld [vmem:[%s461 + $0x310] sm:$0xff]
        %v675 = vld [vmem:[%s461 + $0x318] sm:$0xff]
        %v676 = vld [vmem:[%s461 + $0x320] sm:$0xff]
        %v677 = vld [vmem:[%s461 + $0x328] sm:$0xff]
        %v678 = vld [vmem:[%s461 + $0x330] sm:$0xff]
        %v679 = vld [vmem:[%s461 + $0x338] sm:$0xff]
        %v680 = vld [vmem:[%s461 + $0x340] sm:$0xff]
        %v681 = vld [vmem:[%s461 + $0x348] sm:$0xff]
        %v682 = vld [vmem:[%s461 + $0x350] sm:$0xff]
        %v683 = vld [vmem:[%s461 + $0x358] sm:$0xff]
        %v684 = vld [vmem:[%s461 + $0x360] sm:$0xff]
        %v685 = vld [vmem:[%s461 + $0x368] sm:$0xff]
        %v686 = vld [vmem:[%s461 + $0x370] sm:$0xff]
        %v687 = vld [vmem:[%s461 + $0x378] sm:$0xff]
        %v688 = vld [vmem:[%s461 + $0x380] sm:$0xff]
        %v689 = vld [vmem:[%s461 + $0x388] sm:$0xff]
        %v690 = vld [vmem:[%s461 + $0x390] sm:$0xff]
        %v691 = vld [vmem:[%s461 + $0x398] sm:$0xff]
        %v692 = vld [vmem:[%s461 + $0x3a0] sm:$0xff]
        %v693 = vld [vmem:[%s461 + $0x3a8] sm:$0xff]
        %v694 = vld [vmem:[%s461 + $0x3b0] sm:$0xff]
        %v695 = vld [vmem:[%s461 + $0x3b8] sm:$0xff]
        %v696 = vld [vmem:[%s461 + $0x3c0] sm:$0xff]
        %v697 = vld [vmem:[%s461 + $0x3c8] sm:$0xff]
        %v698 = vld [vmem:[%s461 + $0x3d0] sm:$0xff]
        %v699 = vld [vmem:[%s461 + $0x3d8] sm:$0xff]
        %v700 = vld [vmem:[%s461 + $0x3e0] sm:$0xff]
        %v701 = vld [vmem:[%s461 + $0x3e8] sm:$0xff]
        %v702 = vld [vmem:[%s461 + $0x3f0] sm:$0xff]
        %v703 = vld [vmem:[%s461 + $0x3f8] sm:$0xff]
        %v704 = vld [vmem:[%s461 + $0x400] sm:$0xff]
        %v705 = vld [vmem:[%s461 + $0x408] sm:$0xff]
        %v706 = vld [vmem:[%s461 + $0x410] sm:$0xff]
        %v707 = vld [vmem:[%s461 + $0x418] sm:$0xff]
        %v708 = vld [vmem:[%s461 + $0x420] sm:$0xff]
        %v709 = vld [vmem:[%s461 + $0x428] sm:$0xff]
        %v710 = vld [vmem:[%s461 + $0x430] sm:$0xff]
        %v711 = vld [vmem:[%s461 + $0x438] sm:$0xff]
        %v712 = vld [vmem:[%s461 + $0x440] sm:$0xff]
        %v713 = vld [vmem:[%s461 + $0x448] sm:$0xff]
        %v714 = vld [vmem:[%s461 + $0x450] sm:$0xff]
        %v715 = vld [vmem:[%s461 + $0x458] sm:$0xff]
        %v716 = vld [vmem:[%s461 + $0x460] sm:$0xff]
        %v717 = vld [vmem:[%s461 + $0x468] sm:$0xff]
        %v718 = vld [vmem:[%s461 + $0x470] sm:$0xff]
        %v719 = vld [vmem:[%s461 + $0x478] sm:$0xff]
        %v720 = vld [vmem:[%s461 + $0x480] sm:$0xff]
        %v721 = vld [vmem:[%s461 + $0x488] sm:$0xff]
        %v722 = vld [vmem:[%s461 + $0x490] sm:$0xff]
        %v723 = vld [vmem:[%s461 + $0x498] sm:$0xff]
        %v724 = vld [vmem:[%s461 + $0x4a0] sm:$0xff]
        %v725 = vld [vmem:[%s461 + $0x4a8] sm:$0xff]
        %v726 = vld [vmem:[%s461 + $0x4b0] sm:$0xff]
        %v727 = vld [vmem:[%s461 + $0x4b8] sm:$0xff]
        %v728 = vld [vmem:[%s461 + $0x4c0] sm:$0xff]
        %v729 = vld [vmem:[%s461 + $0x4c8] sm:$0xff]
        %v730 = vld [vmem:[%s461 + $0x4d0] sm:$0xff]
        %v731 = vld [vmem:[%s461 + $0x4d8] sm:$0xff]
        %v732 = vld [vmem:[%s461 + $0x4e0] sm:$0xff]
        %v733 = vld [vmem:[%s461 + $0x4e8] sm:$0xff]
        %v734 = vld [vmem:[%s461 + $0x4f0] sm:$0xff]
        %v735 = vld [vmem:[%s461 + $0x4f8] sm:$0xff]
        %v736 = vld [vmem:[%s461 + $0x500] sm:$0xff]
        %v737 = vld [vmem:[%s461 + $0x508] sm:$0xff]
        %v738 = vld [vmem:[%s461 + $0x510] sm:$0xff]
        %v739 = vld [vmem:[%s461 + $0x518] sm:$0xff]
        %v740 = vld [vmem:[%s461 + $0x520] sm:$0xff]
        %v741 = vld [vmem:[%s461 + $0x528] sm:$0xff]
        %v742 = vld [vmem:[%s461 + $0x530] sm:$0xff]
        %v743 = vld [vmem:[%s461 + $0x538] sm:$0xff]
        %v744 = vld [vmem:[%s461 + $0x540] sm:$0xff]
        %v745 = vld [vmem:[%s461 + $0x548] sm:$0xff]
        %v746 = vld [vmem:[%s461 + $0x550] sm:$0xff]
        %v747 = vld [vmem:[%s461 + $0x558] sm:$0xff]
        %v748 = vld [vmem:[%s461 + $0x560] sm:$0xff]
        %v749 = vld [vmem:[%s461 + $0x568] sm:$0xff]
        %v750 = vld [vmem:[%s461 + $0x570] sm:$0xff]
        %v751 = vld [vmem:[%s461 + $0x578] sm:$0xff]
        %v752 = vld [vmem:[%s461 + $0x580] sm:$0xff]
        %v753 = vld [vmem:[%s461 + $0x588] sm:$0xff]
        %v754 = vld [vmem:[%s461 + $0x590] sm:$0xff]
        %v755 = vld [vmem:[%s461 + $0x598] sm:$0xff]
        %v756 = vld [vmem:[%s461 + $0x5a0] sm:$0xff]
        %v757 = vld [vmem:[%s461 + $0x5a8] sm:$0xff]
        %v758 = vld [vmem:[%s461 + $0x5b0] sm:$0xff]
        %v759 = vld [vmem:[%s461 + $0x5b8] sm:$0xff]
        %v760 = vld [vmem:[%s461 + $0x5c0] sm:$0xff]
        %v761 = vld [vmem:[%s461 + $0x5c8] sm:$0xff]
        %v762 = vld [vmem:[%s461 + $0x5d0] sm:$0xff]
        %v763 = vld [vmem:[%s461 + $0x5d8] sm:$0xff]
        %v764 = vld [vmem:[%s461 + $0x5e0] sm:$0xff]
        %v765 = vld [vmem:[%s461 + $0x5e8] sm:$0xff]
        %v766 = vld [vmem:[%s461 + $0x5f0] sm:$0xff]
        %v767 = vld [vmem:[%s461 + $0x5f8] sm:$0xff]
        %v768 = vld [vmem:[%s461 + $0x600] sm:$0xff]
        %v769 = vld [vmem:[%s461 + $0x608] sm:$0xff]
        %v770 = vld [vmem:[%s461 + $0x610] sm:$0xff]
        %v771 = vld [vmem:[%s461 + $0x618] sm:$0xff]
        %v772 = vld [vmem:[%s461 + $0x620] sm:$0xff]
        %v773 = vld [vmem:[%s461 + $0x628] sm:$0xff]
        %v774 = vld [vmem:[%s461 + $0x630] sm:$0xff]
        %v775 = vld [vmem:[%s461 + $0x638] sm:$0xff]
        %v776 = vld [vmem:[%s461 + $0x640] sm:$0xff]
        %v777 = vld [vmem:[%s461 + $0x648] sm:$0xff]
        %v778 = vld [vmem:[%s461 + $0x650] sm:$0xff]
        %v779 = vld [vmem:[%s461 + $0x658] sm:$0xff]
        %v780 = vld [vmem:[%s461 + $0x660] sm:$0xff]
        %v781 = vld [vmem:[%s461 + $0x668] sm:$0xff]
        %v782 = vld [vmem:[%s461 + $0x670] sm:$0xff]
        %v783 = vld [vmem:[%s461 + $0x678] sm:$0xff]
        %v784 = vld [vmem:[%s461 + $0x680] sm:$0xff]
        %v785 = vld [vmem:[%s461 + $0x688] sm:$0xff]
        %v786 = vld [vmem:[%s461 + $0x690] sm:$0xff]
        %v787 = vld [vmem:[%s461 + $0x698] sm:$0xff]
        %v788 = vld [vmem:[%s461 + $0x6a0] sm:$0xff]
        %v789 = vld [vmem:[%s461 + $0x6a8] sm:$0xff]
        %v790 = vld [vmem:[%s461 + $0x6b0] sm:$0xff]
        %v791 = vld [vmem:[%s461 + $0x6b8] sm:$0xff]
        %v792 = vld [vmem:[%s461 + $0x6c0] sm:$0xff]
        %v793 = vld [vmem:[%s461 + $0x6c8] sm:$0xff]
        %v794 = vld [vmem:[%s461 + $0x6d0] sm:$0xff]
        %v795 = vld [vmem:[%s461 + $0x6d8] sm:$0xff]
        %v796 = vld [vmem:[%s461 + $0x6e0] sm:$0xff]
        %v797 = vld [vmem:[%s461 + $0x6e8] sm:$0xff]
        %v798 = vld [vmem:[%s461 + $0x6f0] sm:$0xff]
        %v799 = vld [vmem:[%s461 + $0x6f8] sm:$0xff]
        %v800 = vld [vmem:[%s461 + $0x700] sm:$0xff]
        %v801 = vld [vmem:[%s461 + $0x708] sm:$0xff]
        %v802 = vld [vmem:[%s461 + $0x710] sm:$0xff]
        %v803 = vld [vmem:[%s461 + $0x718] sm:$0xff]
        %v804 = vld [vmem:[%s461 + $0x720] sm:$0xff]
        %v805 = vld [vmem:[%s461 + $0x728] sm:$0xff]
        %v806 = vld [vmem:[%s461 + $0x730] sm:$0xff]
        %v807 = vld [vmem:[%s461 + $0x738] sm:$0xff]
        %v808 = vld [vmem:[%s461 + $0x740] sm:$0xff]
        %v809 = vld [vmem:[%s461 + $0x748] sm:$0xff]
        %v810 = vld [vmem:[%s461 + $0x750] sm:$0xff]
        %v811 = vld [vmem:[%s461 + $0x758] sm:$0xff]
        %v812 = vld [vmem:[%s461 + $0x760] sm:$0xff]
        %v813 = vld [vmem:[%s461 + $0x768] sm:$0xff]
        %v814 = vld [vmem:[%s461 + $0x770] sm:$0xff]
        %v815 = vld [vmem:[%s461 + $0x778] sm:$0xff]
        %v816 = vld [vmem:[%s461 + $0x780] sm:$0xff]
        %v817 = vld [vmem:[%s461 + $0x788] sm:$0xff]
        %v818 = vld [vmem:[%s461 + $0x790] sm:$0xff]
        %v819 = vld [vmem:[%s461 + $0x798] sm:$0xff]
        %v820 = vld [vmem:[%s461 + $0x7a0] sm:$0xff]
        %v821 = vld [vmem:[%s461 + $0x7a8] sm:$0xff]
        %v822 = vld [vmem:[%s461 + $0x7b0] sm:$0xff]
        %v823 = vld [vmem:[%s461 + $0x7b8] sm:$0xff]
        %v824 = vld [vmem:[%s461 + $0x7c0] sm:$0xff]
        %v825 = vld [vmem:[%s461 + $0x7c8] sm:$0xff]
        %v826 = vld [vmem:[%s461 + $0x7d0] sm:$0xff]
        %v827 = vld [vmem:[%s461 + $0x7d8] sm:$0xff]
        %v828 = vld [vmem:[%s461 + $0x7e0] sm:$0xff]
        %v829 = vld [vmem:[%s461 + $0x7e8] sm:$0xff]
        %v830 = vld [vmem:[%s461 + $0x7f0] sm:$0xff]
        %v831 = vld [vmem:[%s461 + $0x7f8] sm:$0xff]
        %v832 = vld [vmem:[%s461 + $0x800] sm:$0xff]
        %v833 = vld [vmem:[%s461 + $0x808] sm:$0xff]
        %v834 = vld [vmem:[%s461 + $0x810] sm:$0xff]
        %v835 = vld [vmem:[%s461 + $0x818] sm:$0xff]
        %v836 = vld [vmem:[%s461 + $0x820] sm:$0xff]
        %v837 = vld [vmem:[%s461 + $0x828] sm:$0xff]
        %v838 = vld [vmem:[%s461 + $0x830] sm:$0xff]
        %v839 = vld [vmem:[%s461 + $0x838] sm:$0xff]
        %v840 = vld [vmem:[%s461 + $0x840] sm:$0xff]
        %v841 = vld [vmem:[%s461 + $0x848] sm:$0xff]
        %v842 = vld [vmem:[%s461 + $0x850] sm:$0xff]
        %v843 = vld [vmem:[%s461 + $0x858] sm:$0xff]
        %v844 = vld [vmem:[%s461 + $0x860] sm:$0xff]
        %v845 = vld [vmem:[%s461 + $0x868] sm:$0xff]
        %v846 = vld [vmem:[%s461 + $0x870] sm:$0xff]
        %v847 = vld [vmem:[%s461 + $0x878] sm:$0xff]
        %v848 = vld [vmem:[%s461 + $0x880] sm:$0xff]
        %v849 = vld [vmem:[%s461 + $0x888] sm:$0xff]
        %v850 = vld [vmem:[%s461 + $0x890] sm:$0xff]
        %v851 = vld [vmem:[%s461 + $0x898] sm:$0xff]
        %v852 = vld [vmem:[%s461 + $0x8a0] sm:$0xff]
        %v853 = vld [vmem:[%s461 + $0x8a8] sm:$0xff]
        %v854 = vld [vmem:[%s461 + $0x8b0] sm:$0xff]
        %v855 = vld [vmem:[%s461 + $0x8b8] sm:$0xff]
        %v856 = vld [vmem:[%s461 + $0x8c0] sm:$0xff]
        %v857 = vld [vmem:[%s461 + $0x8c8] sm:$0xff]
        %v858 = vld [vmem:[%s461 + $0x8d0] sm:$0xff]
        %v859 = vld [vmem:[%s461 + $0x8d8] sm:$0xff]
        %v860 = vld [vmem:[%s461 + $0x8e0] sm:$0xff]
        %v861 = vld [vmem:[%s461 + $0x8e8] sm:$0xff]
        %v862 = vld [vmem:[%s461 + $0x8f0] sm:$0xff]
        %v863 = vld [vmem:[%s461 + $0x8f8] sm:$0xff]
        %v864 = vld [vmem:[%s461 + $0x900] sm:$0xff]
        %v865 = vld [vmem:[%s461 + $0x908] sm:$0xff]
        %v866 = vld [vmem:[%s461 + $0x910] sm:$0xff]
        %v867 = vld [vmem:[%s461 + $0x918] sm:$0xff]
        %v868 = vld [vmem:[%s461 + $0x920] sm:$0xff]
        %v869 = vld [vmem:[%s461 + $0x928] sm:$0xff]
        %v870 = vld [vmem:[%s461 + $0x930] sm:$0xff]
        %v871 = vld [vmem:[%s461 + $0x938] sm:$0xff]
        %v872 = vld [vmem:[%s461 + $0x940] sm:$0xff]
        %v873 = vld [vmem:[%s461 + $0x948] sm:$0xff]
        %v874 = vld [vmem:[%s461 + $0x950] sm:$0xff]
        %v875 = vld [vmem:[%s461 + $0x958] sm:$0xff]
        %v876 = vld [vmem:[%s461 + $0x960] sm:$0xff]
        %v877 = vld [vmem:[%s461 + $0x968] sm:$0xff]
        %v878 = vld [vmem:[%s461 + $0x970] sm:$0xff]
        %v879 = vld [vmem:[%s461 + $0x978] sm:$0xff]
        %v880 = vld [vmem:[%s461 + $0x980] sm:$0xff]
        %v881 = vld [vmem:[%s461 + $0x988] sm:$0xff]
        %v882 = vld [vmem:[%s461 + $0x990] sm:$0xff]
        %v883 = vld [vmem:[%s461 + $0x998] sm:$0xff]
        %v884 = vld [vmem:[%s461 + $0x9a0] sm:$0xff]
        %v885 = vld [vmem:[%s461 + $0x9a8] sm:$0xff]
        %v886 = vld [vmem:[%s461 + $0x9b0] sm:$0xff]
        %v887 = vld [vmem:[%s461 + $0x9b8] sm:$0xff]
        %v888 = vld [vmem:[%s461 + $0x9c0] sm:$0xff]
        %v889 = vld [vmem:[%s461 + $0x9c8] sm:$0xff]
        %v890 = vld [vmem:[%s461 + $0x9d0] sm:$0xff]
        %v891 = vld [vmem:[%s461 + $0x9d8] sm:$0xff]
        %v892 = vld [vmem:[%s461 + $0x9e0] sm:$0xff]
        %v893 = vld [vmem:[%s461 + $0x9e8] sm:$0xff]
        %v894 = vld [vmem:[%s461 + $0x9f0] sm:$0xff]
        %v895 = vld [vmem:[%s461 + $0x9f8] sm:$0xff]
        %v896 = vld [vmem:[%s461 + $0xa00] sm:$0xff]
        %v897 = vld [vmem:[%s461 + $0xa08] sm:$0xff]
        %v898 = vld [vmem:[%s461 + $0xa10] sm:$0xff]
        %v899 = vld [vmem:[%s461 + $0xa18] sm:$0xff]
        %v900 = vld [vmem:[%s461 + $0xa20] sm:$0xff]
        %v901 = vld [vmem:[%s461 + $0xa28] sm:$0xff]
        %v902 = vld [vmem:[%s461 + $0xa30] sm:$0xff]
        %v903 = vld [vmem:[%s461 + $0xa38] sm:$0xff]
        %v904 = vld [vmem:[%s461 + $0xa40] sm:$0xff]
        %v905 = vld [vmem:[%s461 + $0xa48] sm:$0xff]
        %v906 = vld [vmem:[%s461 + $0xa50] sm:$0xff]
        %v907 = vld [vmem:[%s461 + $0xa58] sm:$0xff]
        %v908 = vld [vmem:[%s461 + $0xa60] sm:$0xff]
        %v909 = vld [vmem:[%s461 + $0xa68] sm:$0xff]
        %v910 = vld [vmem:[%s461 + $0xa70] sm:$0xff]
        %v911 = vld [vmem:[%s461 + $0xa78] sm:$0xff]
        %v912 = vld [vmem:[%s461 + $0xa80] sm:$0xff]
        %v913 = vld [vmem:[%s461 + $0xa88] sm:$0xff]
        %v914 = vld [vmem:[%s461 + $0xa90] sm:$0xff]
        %v915 = vld [vmem:[%s461 + $0xa98] sm:$0xff]
        %v916 = vld [vmem:[%s461 + $0xaa0] sm:$0xff]
        %v917 = vld [vmem:[%s461 + $0xaa8] sm:$0xff]
        %v918 = vld [vmem:[%s461 + $0xab0] sm:$0xff]
        %v919 = vld [vmem:[%s461 + $0xab8] sm:$0xff]
        %v920 = vld [vmem:[%s461 + $0xac0] sm:$0xff]
        %v921 = vld [vmem:[%s461 + $0xac8] sm:$0xff]
        %v922 = vld [vmem:[%s461 + $0xad0] sm:$0xff]
        %v923 = vld [vmem:[%s461 + $0xad8] sm:$0xff]
        %v924 = vld [vmem:[%s461 + $0xae0] sm:$0xff]
        %v925 = vld [vmem:[%s461 + $0xae8] sm:$0xff]
        %v926 = vld [vmem:[%s461 + $0xaf0] sm:$0xff]
        %v927 = vld [vmem:[%s461 + $0xaf8] sm:$0xff]
        %v928 = vld [vmem:[%s461 + $0xb00] sm:$0xff]
        %v929 = vld [vmem:[%s461 + $0xb08] sm:$0xff]
        %v930 = vld [vmem:[%s461 + $0xb10] sm:$0xff]
        %v931 = vld [vmem:[%s461 + $0xb18] sm:$0xff]
        %v932 = vld [vmem:[%s461 + $0xb20] sm:$0xff]
        %v933 = vld [vmem:[%s461 + $0xb28] sm:$0xff]
        %v934 = vld [vmem:[%s461 + $0xb30] sm:$0xff]
        %v935 = vld [vmem:[%s461 + $0xb38] sm:$0xff]
        %v936 = vld [vmem:[%s461 + $0xb40] sm:$0xff]
        %v937 = vld [vmem:[%s461 + $0xb48] sm:$0xff]
        %v938 = vld [vmem:[%s461 + $0xb50] sm:$0xff]
        %v939 = vld [vmem:[%s461 + $0xb58] sm:$0xff]
        %v940 = vld [vmem:[%s461 + $0xb60] sm:$0xff]
        %v941 = vld [vmem:[%s461 + $0xb68] sm:$0xff]
        %v942 = vld [vmem:[%s461 + $0xb70] sm:$0xff]
        %v943 = vld [vmem:[%s461 + $0xb78] sm:$0xff]
        %v944 = vld [vmem:[%s461 + $0xb80] sm:$0xff]
        %v945 = vld [vmem:[%s461 + $0xb88] sm:$0xff]
        %v946 = vld [vmem:[%s461 + $0xb90] sm:$0xff]
        %v947 = vld [vmem:[%s461 + $0xb98] sm:$0xff]
        %v948 = vld [vmem:[%s461 + $0xba0] sm:$0xff]
        %v949 = vld [vmem:[%s461 + $0xba8] sm:$0xff]
        %v950 = vld [vmem:[%s461 + $0xbb0] sm:$0xff]
        %v951 = vld [vmem:[%s461 + $0xbb8] sm:$0xff]
        %v952 = vld [vmem:[%s461 + $0xbc0] sm:$0xff]
        %v953 = vld [vmem:[%s461 + $0xbc8] sm:$0xff]
        %v954 = vld [vmem:[%s461 + $0xbd0] sm:$0xff]
        %v955 = vld [vmem:[%s461 + $0xbd8] sm:$0xff]
        %v956 = vld [vmem:[%s461 + $0xbe0] sm:$0xff]
        %v957 = vld [vmem:[%s461 + $0xbe8] sm:$0xff]
        %v958 = vld [vmem:[%s461 + $0xbf0] sm:$0xff]
        %v959 = vld [vmem:[%s461 + $0xbf8] sm:$0xff]
        %v960 = vld [vmem:[%s461 + $0xc00] sm:$0xff]
        %v961 = vld [vmem:[%s461 + $0xc08] sm:$0xff]
        %v962 = vld [vmem:[%s461 + $0xc10] sm:$0xff]
        %v963 = vld [vmem:[%s461 + $0xc18] sm:$0xff]
        %v964 = vld [vmem:[%s461 + $0xc20] sm:$0xff]
        %v965 = vld [vmem:[%s461 + $0xc28] sm:$0xff]
        %v966 = vld [vmem:[%s461 + $0xc30] sm:$0xff]
        %v967 = vld [vmem:[%s461 + $0xc38] sm:$0xff]
        %v968 = vld [vmem:[%s461 + $0xc40] sm:$0xff]
        %v969 = vld [vmem:[%s461 + $0xc48] sm:$0xff]
        %v970 = vld [vmem:[%s461 + $0xc50] sm:$0xff]
        %v971 = vld [vmem:[%s461 + $0xc58] sm:$0xff]
        %v972 = vld [vmem:[%s461 + $0xc60] sm:$0xff]
        %v973 = vld [vmem:[%s461 + $0xc68] sm:$0xff]
        %v974 = vld [vmem:[%s461 + $0xc70] sm:$0xff]
        %v975 = vld [vmem:[%s461 + $0xc78] sm:$0xff]
        %v976 = vld [vmem:[%s461 + $0xc80] sm:$0xff]
        %v977 = vld [vmem:[%s461 + $0xc88] sm:$0xff]
        %v978 = vld [vmem:[%s461 + $0xc90] sm:$0xff]
        %v979 = vld [vmem:[%s461 + $0xc98] sm:$0xff]
        %v980 = vld [vmem:[%s461 + $0xca0] sm:$0xff]
        %v981 = vld [vmem:[%s461 + $0xca8] sm:$0xff]
        %v982 = vld [vmem:[%s461 + $0xcb0] sm:$0xff]
        %v983 = vld [vmem:[%s461 + $0xcb8] sm:$0xff]
        %v984 = vld [vmem:[%s461 + $0xcc0] sm:$0xff]
        %v985 = vld [vmem:[%s461 + $0xcc8] sm:$0xff]
        %v986 = vld [vmem:[%s461 + $0xcd0] sm:$0xff]
        %v987 = vld [vmem:[%s461 + $0xcd8] sm:$0xff]
        %v988 = vld [vmem:[%s461 + $0xce0] sm:$0xff]
        %v989 = vld [vmem:[%s461 + $0xce8] sm:$0xff]
        %v990 = vld [vmem:[%s461 + $0xcf0] sm:$0xff]
        %v991 = vld [vmem:[%s461 + $0xcf8] sm:$0xff]
        %v992 = vld [vmem:[%s461 + $0xd00] sm:$0xff]
        %v993 = vld [vmem:[%s461 + $0xd08] sm:$0xff]
        %v994 = vld [vmem:[%s461 + $0xd10] sm:$0xff]
        %v995 = vld [vmem:[%s461 + $0xd18] sm:$0xff]
        %v996 = vld [vmem:[%s461 + $0xd20] sm:$0xff]
        %v997 = vld [vmem:[%s461 + $0xd28] sm:$0xff]
        %v998 = vld [vmem:[%s461 + $0xd30] sm:$0xff]
        %v999 = vld [vmem:[%s461 + $0xd38] sm:$0xff]
        %v1000 = vld [vmem:[%s461 + $0xd40] sm:$0xff]
        %v1001 = vld [vmem:[%s461 + $0xd48] sm:$0xff]
        %v1002 = vld [vmem:[%s461 + $0xd50] sm:$0xff]
        %v1003 = vld [vmem:[%s461 + $0xd58] sm:$0xff]
        %v1004 = vld [vmem:[%s461 + $0xd60] sm:$0xff]
        %v1005 = vld [vmem:[%s461 + $0xd68] sm:$0xff]
        %v1006 = vld [vmem:[%s461 + $0xd70] sm:$0xff]
        %v1007 = vld [vmem:[%s461 + $0xd78] sm:$0xff]
        %v1008 = vld [vmem:[%s461 + $0xd80] sm:$0xff]
        %v1009 = vld [vmem:[%s461 + $0xd88] sm:$0xff]
        %v1010 = vld [vmem:[%s461 + $0xd90] sm:$0xff]
        %v1011 = vld [vmem:[%s461 + $0xd98] sm:$0xff]
        %v1012 = vld [vmem:[%s461 + $0xda0] sm:$0xff]
        %v1013 = vld [vmem:[%s461 + $0xda8] sm:$0xff]
        %v1014 = vld [vmem:[%s461 + $0xdb0] sm:$0xff]
        %v1015 = vld [vmem:[%s461 + $0xdb8] sm:$0xff]
        %v1016 = vld [vmem:[%s461 + $0xdc0] sm:$0xff]
        %v1017 = vld [vmem:[%s461 + $0xdc8] sm:$0xff]
        %v1018 = vld [vmem:[%s461 + $0xdd0] sm:$0xff]
        %v1019 = vld [vmem:[%s461 + $0xdd8] sm:$0xff]
        %v1020 = vld [vmem:[%s461 + $0xde0] sm:$0xff]
        %v1021 = vld [vmem:[%s461 + $0xde8] sm:$0xff]
        %v1022 = vld [vmem:[%s461 + $0xdf0] sm:$0xff]
        %v1023 = vld [vmem:[%s461 + $0xdf8] sm:$0xff]
        %v1024 = vld [vmem:[%s461 + $0xe00] sm:$0xff]
        %v1025 = vld [vmem:[%s461 + $0xe08] sm:$0xff]
        %v1026 = vld [vmem:[%s461 + $0xe10] sm:$0xff]
        %v1027 = vld [vmem:[%s461 + $0xe18] sm:$0xff]
        %v1028 = vld [vmem:[%s461 + $0xe20] sm:$0xff]
        %v1029 = vld [vmem:[%s461 + $0xe28] sm:$0xff]
        %v1030 = vld [vmem:[%s461 + $0xe30] sm:$0xff]
        %v1031 = vld [vmem:[%s461 + $0xe38] sm:$0xff]
        %v1032 = vld [vmem:[%s461 + $0xe40] sm:$0xff]
        %v1033 = vld [vmem:[%s461 + $0xe48] sm:$0xff]
        %v1034 = vld [vmem:[%s461 + $0xe50] sm:$0xff]
        %v1035 = vld [vmem:[%s461 + $0xe58] sm:$0xff]
        %v1036 = vld [vmem:[%s461 + $0xe60] sm:$0xff]
        %v1037 = vld [vmem:[%s461 + $0xe68] sm:$0xff]
        %v1038 = vld [vmem:[%s461 + $0xe70] sm:$0xff]
        %v1039 = vld [vmem:[%s461 + $0xe78] sm:$0xff]
        %v1040 = vld [vmem:[%s461 + $0xe80] sm:$0xff]
        %v1041 = vld [vmem:[%s461 + $0xe88] sm:$0xff]
        %v1042 = vld [vmem:[%s461 + $0xe90] sm:$0xff]
        %v1043 = vld [vmem:[%s461 + $0xe98] sm:$0xff]
        %v1044 = vld [vmem:[%s461 + $0xea0] sm:$0xff]
        %v1045 = vld [vmem:[%s461 + $0xea8] sm:$0xff]
        %v1046 = vld [vmem:[%s461 + $0xeb0] sm:$0xff]
        %v1047 = vld [vmem:[%s461 + $0xeb8] sm:$0xff]
        %v1048 = vld [vmem:[%s461 + $0xec0] sm:$0xff]
        %v1049 = vld [vmem:[%s461 + $0xec8] sm:$0xff]
        %v1050 = vld [vmem:[%s461 + $0xed0] sm:$0xff]
        %v1051 = vld [vmem:[%s461 + $0xed8] sm:$0xff]
        %v1052 = vld [vmem:[%s461 + $0xee0] sm:$0xff]
        %v1053 = vld [vmem:[%s461 + $0xee8] sm:$0xff]
        %v1054 = vld [vmem:[%s461 + $0xef0] sm:$0xff]
        %v1055 = vld [vmem:[%s461 + $0xef8] sm:$0xff]
        %v1056 = vld [vmem:[%s461 + $0xf00] sm:$0xff]
        %v1057 = vld [vmem:[%s461 + $0xf08] sm:$0xff]
        %v1058 = vld [vmem:[%s461 + $0xf10] sm:$0xff]
        %v1059 = vld [vmem:[%s461 + $0xf18] sm:$0xff]
        %v1060 = vld [vmem:[%s461 + $0xf20] sm:$0xff]
        %v1061 = vld [vmem:[%s461 + $0xf28] sm:$0xff]
        %v1062 = vld [vmem:[%s461 + $0xf30] sm:$0xff]
        %v1063 = vld [vmem:[%s461 + $0xf38] sm:$0xff]
        %v1064 = vld [vmem:[%s461 + $0xf40] sm:$0xff]
        %v1065 = vld [vmem:[%s461 + $0xf48] sm:$0xff]
        %v1066 = vld [vmem:[%s461 + $0xf50] sm:$0xff]
        %v1067 = vld [vmem:[%s461 + $0xf58] sm:$0xff]
        %v1068 = vld [vmem:[%s461 + $0xf60] sm:$0xff]
        %v1069 = vld [vmem:[%s461 + $0xf68] sm:$0xff]
        %v1070 = vld [vmem:[%s461 + $0xf70] sm:$0xff]
        %v1071 = vld [vmem:[%s461 + $0xf78] sm:$0xff]
        %v1072 = vld [vmem:[%s461 + $0xf80] sm:$0xff]
        %v1073 = vld [vmem:[%s461 + $0xf88] sm:$0xff]
        %v1074 = vld [vmem:[%s461 + $0xf90] sm:$0xff]
        %v1075 = vld [vmem:[%s461 + $0xf98] sm:$0xff]
        %v1076 = vld [vmem:[%s461 + $0xfa0] sm:$0xff]
        %v1077 = vld [vmem:[%s461 + $0xfa8] sm:$0xff]
        %v1078 = vld [vmem:[%s461 + $0xfb0] sm:$0xff]
        %v1079 = vld [vmem:[%s461 + $0xfb8] sm:$0xff]
        %v1080 = vld [vmem:[%s461 + $0xfc0] sm:$0xff]
        %v1081 = vld [vmem:[%s461 + $0xfc8] sm:$0xff]
        %v1082 = vld [vmem:[%s461 + $0xfd0] sm:$0xff]
        %v1083 = vld [vmem:[%s461 + $0xfd8] sm:$0xff]
        %v1084 = vld [vmem:[%s461 + $0xfe0] sm:$0xff]
        %v1085 = vld [vmem:[%s461 + $0xfe8] sm:$0xff]
        %v1086 = vld [vmem:[%s461 + $0xff0] sm:$0xff]
        %v1087 = vld [vmem:[%s461 + $0xff8] sm:$0xff]
        %v1600 = vunpack.c.l.b16 %v576
        %v1601 = vunpack.c.h.b16 %v576
        %v1602 = vunpack.c.l.b16 %v577
        %v1603 = vunpack.c.h.b16 %v577
        %v1604 = vunpack.c.l.b16 %v578
        %v1605 = vunpack.c.h.b16 %v578
        %v1606 = vunpack.c.l.b16 %v579
        %v1607 = vunpack.c.h.b16 %v579
        %v1608 = vunpack.c.l.b16 %v580
        %v1609 = vunpack.c.h.b16 %v580
        %v1610 = vunpack.c.l.b16 %v581
        %v1611 = vunpack.c.h.b16 %v581
        %v1612 = vunpack.c.l.b16 %v582
        %v1613 = vunpack.c.h.b16 %v582
        %v1614 = vunpack.c.l.b16 %v583
        %v1615 = vunpack.c.h.b16 %v583
        %v1616 = vunpack.c.l.b16 %v584
        %v1617 = vunpack.c.h.b16 %v584
        %v1618 = vunpack.c.l.b16 %v585
        %v1619 = vunpack.c.h.b16 %v585
        %v1620 = vunpack.c.l.b16 %v586
        %v1621 = vunpack.c.h.b16 %v586
        %v1622 = vunpack.c.l.b16 %v587
        %v1623 = vunpack.c.h.b16 %v587
        %v1624 = vunpack.c.l.b16 %v588
        %v1625 = vunpack.c.h.b16 %v588
        %v1626 = vunpack.c.l.b16 %v589
        %v1627 = vunpack.c.h.b16 %v589
        %v1628 = vunpack.c.l.b16 %v590
        %v1629 = vunpack.c.h.b16 %v590
        %v1630 = vunpack.c.l.b16 %v591
        %v1631 = vunpack.c.h.b16 %v591
        %v1632 = vunpack.c.l.b16 %v592
        %v1633 = vunpack.c.h.b16 %v592
        %v1634 = vunpack.c.l.b16 %v593
        %v1635 = vunpack.c.h.b16 %v593
        %v1636 = vunpack.c.l.b16 %v594
        %v1637 = vunpack.c.h.b16 %v594
        %v1638 = vunpack.c.l.b16 %v595
        %v1639 = vunpack.c.h.b16 %v595
        %v1640 = vunpack.c.l.b16 %v596
        %v1641 = vunpack.c.h.b16 %v596
        %v1642 = vunpack.c.l.b16 %v597
        %v1643 = vunpack.c.h.b16 %v597
        %v1644 = vunpack.c.l.b16 %v598
        %v1645 = vunpack.c.h.b16 %v598
        %v1646 = vunpack.c.l.b16 %v599
        %v1647 = vunpack.c.h.b16 %v599
        %v1648 = vunpack.c.l.b16 %v600
        %v1649 = vunpack.c.h.b16 %v600
        %v1650 = vunpack.c.l.b16 %v601
        %v1651 = vunpack.c.h.b16 %v601
        %v1652 = vunpack.c.l.b16 %v602
        %v1653 = vunpack.c.h.b16 %v602
        %v1654 = vunpack.c.l.b16 %v603
        %v1655 = vunpack.c.h.b16 %v603
        %v1656 = vunpack.c.l.b16 %v604
        %v1657 = vunpack.c.h.b16 %v604
        %v1658 = vunpack.c.l.b16 %v605
        %v1659 = vunpack.c.h.b16 %v605
        %v1660 = vunpack.c.l.b16 %v606
        %v1661 = vunpack.c.h.b16 %v606
        %v1662 = vunpack.c.l.b16 %v607
        %v1663 = vunpack.c.h.b16 %v607
        %v1664 = vunpack.c.l.b16 %v608
        %v1665 = vunpack.c.h.b16 %v608
        %v1666 = vunpack.c.l.b16 %v609
        %v1667 = vunpack.c.h.b16 %v609
        %v1668 = vunpack.c.l.b16 %v610
        %v1669 = vunpack.c.h.b16 %v610
        %v1670 = vunpack.c.l.b16 %v611
        %v1671 = vunpack.c.h.b16 %v611
        %v1672 = vunpack.c.l.b16 %v612
        %v1673 = vunpack.c.h.b16 %v612
        %v1674 = vunpack.c.l.b16 %v613
        %v1675 = vunpack.c.h.b16 %v613
        %v1676 = vunpack.c.l.b16 %v614
        %v1677 = vunpack.c.h.b16 %v614
        %v1678 = vunpack.c.l.b16 %v615
        %v1679 = vunpack.c.h.b16 %v615
        %v1680 = vunpack.c.l.b16 %v616
        %v1681 = vunpack.c.h.b16 %v616
        %v1682 = vunpack.c.l.b16 %v617
        %v1683 = vunpack.c.h.b16 %v617
        %v1684 = vunpack.c.l.b16 %v618
        %v1685 = vunpack.c.h.b16 %v618
        %v1686 = vunpack.c.l.b16 %v619
        %v1687 = vunpack.c.h.b16 %v619
        %v1688 = vunpack.c.l.b16 %v620
        %v1689 = vunpack.c.h.b16 %v620
        %v1690 = vunpack.c.l.b16 %v621
        %v1691 = vunpack.c.h.b16 %v621
        %v1692 = vunpack.c.l.b16 %v622
        %v1693 = vunpack.c.h.b16 %v622
        %v1694 = vunpack.c.l.b16 %v623
        %v1695 = vunpack.c.h.b16 %v623
        %v1696 = vunpack.c.l.b16 %v624
        %v1697 = vunpack.c.h.b16 %v624
        %v1698 = vunpack.c.l.b16 %v625
        %v1699 = vunpack.c.h.b16 %v625
        %v1700 = vunpack.c.l.b16 %v626
        %v1701 = vunpack.c.h.b16 %v626
        %v1702 = vunpack.c.l.b16 %v627
        %v1703 = vunpack.c.h.b16 %v627
        %v1704 = vunpack.c.l.b16 %v628
        %v1705 = vunpack.c.h.b16 %v628
        %v1706 = vunpack.c.l.b16 %v629
        %v1707 = vunpack.c.h.b16 %v629
        %v1708 = vunpack.c.l.b16 %v630
        %v1709 = vunpack.c.h.b16 %v630
        %v1710 = vunpack.c.l.b16 %v631
        %v1711 = vunpack.c.h.b16 %v631
        %v1712 = vunpack.c.l.b16 %v632
        %v1713 = vunpack.c.h.b16 %v632
        %v1714 = vunpack.c.l.b16 %v633
        %v1715 = vunpack.c.h.b16 %v633
        %v1716 = vunpack.c.l.b16 %v634
        %v1717 = vunpack.c.h.b16 %v634
        %v1718 = vunpack.c.l.b16 %v635
        %v1719 = vunpack.c.h.b16 %v635
        %v1720 = vunpack.c.l.b16 %v636
        %v1721 = vunpack.c.h.b16 %v636
        %v1722 = vunpack.c.l.b16 %v637
        %v1723 = vunpack.c.h.b16 %v637
        %v1724 = vunpack.c.l.b16 %v638
        %v1725 = vunpack.c.h.b16 %v638
        %v1726 = vunpack.c.l.b16 %v639
        %v1727 = vunpack.c.h.b16 %v639
        %v1728 = vunpack.c.l.b16 %v640
        %v1729 = vunpack.c.h.b16 %v640
        %v1730 = vunpack.c.l.b16 %v641
        %v1731 = vunpack.c.h.b16 %v641
        %v1732 = vunpack.c.l.b16 %v642
        %v1733 = vunpack.c.h.b16 %v642
        %v1734 = vunpack.c.l.b16 %v643
        %v1735 = vunpack.c.h.b16 %v643
        %v1736 = vunpack.c.l.b16 %v644
        %v1737 = vunpack.c.h.b16 %v644
        %v1738 = vunpack.c.l.b16 %v645
        %v1739 = vunpack.c.h.b16 %v645
        %v1740 = vunpack.c.l.b16 %v646
        %v1741 = vunpack.c.h.b16 %v646
        %v1742 = vunpack.c.l.b16 %v647
        %v1743 = vunpack.c.h.b16 %v647
        %v1744 = vunpack.c.l.b16 %v648
        %v1745 = vunpack.c.h.b16 %v648
        %v1746 = vunpack.c.l.b16 %v649
        %v1747 = vunpack.c.h.b16 %v649
        %v1748 = vunpack.c.l.b16 %v650
        %v1749 = vunpack.c.h.b16 %v650
        %v1750 = vunpack.c.l.b16 %v651
        %v1751 = vunpack.c.h.b16 %v651
        %v1752 = vunpack.c.l.b16 %v652
        %v1753 = vunpack.c.h.b16 %v652
        %v1754 = vunpack.c.l.b16 %v653
        %v1755 = vunpack.c.h.b16 %v653
        %v1756 = vunpack.c.l.b16 %v654
        %v1757 = vunpack.c.h.b16 %v654
        %v1758 = vunpack.c.l.b16 %v655
        %v1759 = vunpack.c.h.b16 %v655
        %v1760 = vunpack.c.l.b16 %v656
        %v1761 = vunpack.c.h.b16 %v656
        %v1762 = vunpack.c.l.b16 %v657
        %v1763 = vunpack.c.h.b16 %v657
        %v1764 = vunpack.c.l.b16 %v658
        %v1765 = vunpack.c.h.b16 %v658
        %v1766 = vunpack.c.l.b16 %v659
        %v1767 = vunpack.c.h.b16 %v659
        %v1768 = vunpack.c.l.b16 %v660
        %v1769 = vunpack.c.h.b16 %v660
        %v1770 = vunpack.c.l.b16 %v661
        %v1771 = vunpack.c.h.b16 %v661
        %v1772 = vunpack.c.l.b16 %v662
        %v1773 = vunpack.c.h.b16 %v662
        %v1774 = vunpack.c.l.b16 %v663
        %v1775 = vunpack.c.h.b16 %v663
        %v1776 = vunpack.c.l.b16 %v664
        %v1777 = vunpack.c.h.b16 %v664
        %v1778 = vunpack.c.l.b16 %v665
        %v1779 = vunpack.c.h.b16 %v665
        %v1780 = vunpack.c.l.b16 %v666
        %v1781 = vunpack.c.h.b16 %v666
        %v1782 = vunpack.c.l.b16 %v667
        %v1783 = vunpack.c.h.b16 %v667
        %v1784 = vunpack.c.l.b16 %v668
        %v1785 = vunpack.c.h.b16 %v668
        %v1786 = vunpack.c.l.b16 %v669
        %v1787 = vunpack.c.h.b16 %v669
        %v1788 = vunpack.c.l.b16 %v670
        %v1789 = vunpack.c.h.b16 %v670
        %v1790 = vunpack.c.l.b16 %v671
        %v1791 = vunpack.c.h.b16 %v671
        %v1792 = vunpack.c.l.b16 %v672
        %v1793 = vunpack.c.h.b16 %v672
        %v1794 = vunpack.c.l.b16 %v673
        %v1795 = vunpack.c.h.b16 %v673
        %v1796 = vunpack.c.l.b16 %v674
        %v1797 = vunpack.c.h.b16 %v674
        %v1798 = vunpack.c.l.b16 %v675
        %v1799 = vunpack.c.h.b16 %v675
        %v1800 = vunpack.c.l.b16 %v676
        %v1801 = vunpack.c.h.b16 %v676
        %v1802 = vunpack.c.l.b16 %v677
        %v1803 = vunpack.c.h.b16 %v677
        %v1804 = vunpack.c.l.b16 %v678
        %v1805 = vunpack.c.h.b16 %v678
        %v1806 = vunpack.c.l.b16 %v679
        %v1807 = vunpack.c.h.b16 %v679
        %v1808 = vunpack.c.l.b16 %v680
        %v1809 = vunpack.c.h.b16 %v680
        %v1810 = vunpack.c.l.b16 %v681
        %v1811 = vunpack.c.h.b16 %v681
        %v1812 = vunpack.c.l.b16 %v682
        %v1813 = vunpack.c.h.b16 %v682
        %v1814 = vunpack.c.l.b16 %v683
        %v1815 = vunpack.c.h.b16 %v683
        %v1816 = vunpack.c.l.b16 %v684
        %v1817 = vunpack.c.h.b16 %v684
        %v1818 = vunpack.c.l.b16 %v685
        %v1819 = vunpack.c.h.b16 %v685
        %v1820 = vunpack.c.l.b16 %v686
        %v1821 = vunpack.c.h.b16 %v686
        %v1822 = vunpack.c.l.b16 %v687
        %v1823 = vunpack.c.h.b16 %v687
        %v1824 = vunpack.c.l.b16 %v688
        %v1825 = vunpack.c.h.b16 %v688
        %v1826 = vunpack.c.l.b16 %v689
        %v1827 = vunpack.c.h.b16 %v689
        %v1828 = vunpack.c.l.b16 %v690
        %v1829 = vunpack.c.h.b16 %v690
        %v1830 = vunpack.c.l.b16 %v691
        %v1831 = vunpack.c.h.b16 %v691
        %v1832 = vunpack.c.l.b16 %v692
        %v1833 = vunpack.c.h.b16 %v692
        %v1834 = vunpack.c.l.b16 %v693
        %v1835 = vunpack.c.h.b16 %v693
        %v1836 = vunpack.c.l.b16 %v694
        %v1837 = vunpack.c.h.b16 %v694
        %v1838 = vunpack.c.l.b16 %v695
        %v1839 = vunpack.c.h.b16 %v695
        %v1840 = vunpack.c.l.b16 %v696
        %v1841 = vunpack.c.h.b16 %v696
        %v1842 = vunpack.c.l.b16 %v697
        %v1843 = vunpack.c.h.b16 %v697
        %v1844 = vunpack.c.l.b16 %v698
        %v1845 = vunpack.c.h.b16 %v698
        %v1846 = vunpack.c.l.b16 %v699
        %v1847 = vunpack.c.h.b16 %v699
        %v1848 = vunpack.c.l.b16 %v700
        %v1849 = vunpack.c.h.b16 %v700
        %v1850 = vunpack.c.l.b16 %v701
        %v1851 = vunpack.c.h.b16 %v701
        %v1852 = vunpack.c.l.b16 %v702
        %v1853 = vunpack.c.h.b16 %v702
        %v1854 = vunpack.c.l.b16 %v703
        %v1855 = vunpack.c.h.b16 %v703
        %v1856 = vunpack.c.l.b16 %v704
        %v1857 = vunpack.c.h.b16 %v704
        %v1858 = vunpack.c.l.b16 %v705
        %v1859 = vunpack.c.h.b16 %v705
        %v1860 = vunpack.c.l.b16 %v706
        %v1861 = vunpack.c.h.b16 %v706
        %v1862 = vunpack.c.l.b16 %v707
        %v1863 = vunpack.c.h.b16 %v707
        %v1864 = vunpack.c.l.b16 %v708
        %v1865 = vunpack.c.h.b16 %v708
        %v1866 = vunpack.c.l.b16 %v709
        %v1867 = vunpack.c.h.b16 %v709
        %v1868 = vunpack.c.l.b16 %v710
        %v1869 = vunpack.c.h.b16 %v710
        %v1870 = vunpack.c.l.b16 %v711
        %v1871 = vunpack.c.h.b16 %v711
        %v1872 = vunpack.c.l.b16 %v712
        %v1873 = vunpack.c.h.b16 %v712
        %v1874 = vunpack.c.l.b16 %v713
        %v1875 = vunpack.c.h.b16 %v713
        %v1876 = vunpack.c.l.b16 %v714
        %v1877 = vunpack.c.h.b16 %v714
        %v1878 = vunpack.c.l.b16 %v715
        %v1879 = vunpack.c.h.b16 %v715
        %v1880 = vunpack.c.l.b16 %v716
        %v1881 = vunpack.c.h.b16 %v716
        %v1882 = vunpack.c.l.b16 %v717
        %v1883 = vunpack.c.h.b16 %v717
        %v1884 = vunpack.c.l.b16 %v718
        %v1885 = vunpack.c.h.b16 %v718
        %v1886 = vunpack.c.l.b16 %v719
        %v1887 = vunpack.c.h.b16 %v719
        %v1888 = vunpack.c.l.b16 %v720
        %v1889 = vunpack.c.h.b16 %v720
        %v1890 = vunpack.c.l.b16 %v721
        %v1891 = vunpack.c.h.b16 %v721
        %v1892 = vunpack.c.l.b16 %v722
        %v1893 = vunpack.c.h.b16 %v722
        %v1894 = vunpack.c.l.b16 %v723
        %v1895 = vunpack.c.h.b16 %v723
        %v1896 = vunpack.c.l.b16 %v724
        %v1897 = vunpack.c.h.b16 %v724
        %v1898 = vunpack.c.l.b16 %v725
        %v1899 = vunpack.c.h.b16 %v725
        %v1900 = vunpack.c.l.b16 %v726
        %v1901 = vunpack.c.h.b16 %v726
        %v1902 = vunpack.c.l.b16 %v727
        %v1903 = vunpack.c.h.b16 %v727
        %v1904 = vunpack.c.l.b16 %v728
        %v1905 = vunpack.c.h.b16 %v728
        %v1906 = vunpack.c.l.b16 %v729
        %v1907 = vunpack.c.h.b16 %v729
        %v1908 = vunpack.c.l.b16 %v730
        %v1909 = vunpack.c.h.b16 %v730
        %v1910 = vunpack.c.l.b16 %v731
        %v1911 = vunpack.c.h.b16 %v731
        %v1912 = vunpack.c.l.b16 %v732
        %v1913 = vunpack.c.h.b16 %v732
        %v1914 = vunpack.c.l.b16 %v733
        %v1915 = vunpack.c.h.b16 %v733
        %v1916 = vunpack.c.l.b16 %v734
        %v1917 = vunpack.c.h.b16 %v734
        %v1918 = vunpack.c.l.b16 %v735
        %v1919 = vunpack.c.h.b16 %v735
        %v1920 = vunpack.c.l.b16 %v736
        %v1921 = vunpack.c.h.b16 %v736
        %v1922 = vunpack.c.l.b16 %v737
        %v1923 = vunpack.c.h.b16 %v737
        %v1924 = vunpack.c.l.b16 %v738
        %v1925 = vunpack.c.h.b16 %v738
        %v1926 = vunpack.c.l.b16 %v739
        %v1927 = vunpack.c.h.b16 %v739
        %v1928 = vunpack.c.l.b16 %v740
        %v1929 = vunpack.c.h.b16 %v740
        %v1930 = vunpack.c.l.b16 %v741
        %v1931 = vunpack.c.h.b16 %v741
        %v1932 = vunpack.c.l.b16 %v742
        %v1933 = vunpack.c.h.b16 %v742
        %v1934 = vunpack.c.l.b16 %v743
        %v1935 = vunpack.c.h.b16 %v743
        %v1936 = vunpack.c.l.b16 %v744
        %v1937 = vunpack.c.h.b16 %v744
        %v1938 = vunpack.c.l.b16 %v745
        %v1939 = vunpack.c.h.b16 %v745
        %v1940 = vunpack.c.l.b16 %v746
        %v1941 = vunpack.c.h.b16 %v746
        %v1942 = vunpack.c.l.b16 %v747
        %v1943 = vunpack.c.h.b16 %v747
        %v1944 = vunpack.c.l.b16 %v748
        %v1945 = vunpack.c.h.b16 %v748
        %v1946 = vunpack.c.l.b16 %v749
        %v1947 = vunpack.c.h.b16 %v749
        %v1948 = vunpack.c.l.b16 %v750
        %v1949 = vunpack.c.h.b16 %v750
        %v1950 = vunpack.c.l.b16 %v751
        %v1951 = vunpack.c.h.b16 %v751
        %v1952 = vunpack.c.l.b16 %v752
        %v1953 = vunpack.c.h.b16 %v752
        %v1954 = vunpack.c.l.b16 %v753
        %v1955 = vunpack.c.h.b16 %v753
        %v1956 = vunpack.c.l.b16 %v754
        %v1957 = vunpack.c.h.b16 %v754
        %v1958 = vunpack.c.l.b16 %v755
        %v1959 = vunpack.c.h.b16 %v755
        %v1960 = vunpack.c.l.b16 %v756
        %v1961 = vunpack.c.h.b16 %v756
        %v1962 = vunpack.c.l.b16 %v757
        %v1963 = vunpack.c.h.b16 %v757
        %v1964 = vunpack.c.l.b16 %v758
        %v1965 = vunpack.c.h.b16 %v758
        %v1966 = vunpack.c.l.b16 %v759
        %v1967 = vunpack.c.h.b16 %v759
        %v1968 = vunpack.c.l.b16 %v760
        %v1969 = vunpack.c.h.b16 %v760
        %v1970 = vunpack.c.l.b16 %v761
        %v1971 = vunpack.c.h.b16 %v761
        %v1972 = vunpack.c.l.b16 %v762
        %v1973 = vunpack.c.h.b16 %v762
        %v1974 = vunpack.c.l.b16 %v763
        %v1975 = vunpack.c.h.b16 %v763
        %v1976 = vunpack.c.l.b16 %v764
        %v1977 = vunpack.c.h.b16 %v764
        %v1978 = vunpack.c.l.b16 %v765
        %v1979 = vunpack.c.h.b16 %v765
        %v1980 = vunpack.c.l.b16 %v766
        %v1981 = vunpack.c.h.b16 %v766
        %v1982 = vunpack.c.l.b16 %v767
        %v1983 = vunpack.c.h.b16 %v767
        %v1984 = vunpack.c.l.b16 %v768
        %v1985 = vunpack.c.h.b16 %v768
        %v1986 = vunpack.c.l.b16 %v769
        %v1987 = vunpack.c.h.b16 %v769
        %v1988 = vunpack.c.l.b16 %v770
        %v1989 = vunpack.c.h.b16 %v770
        %v1990 = vunpack.c.l.b16 %v771
        %v1991 = vunpack.c.h.b16 %v771
        %v1992 = vunpack.c.l.b16 %v772
        %v1993 = vunpack.c.h.b16 %v772
        %v1994 = vunpack.c.l.b16 %v773
        %v1995 = vunpack.c.h.b16 %v773
        %v1996 = vunpack.c.l.b16 %v774
        %v1997 = vunpack.c.h.b16 %v774
        %v1998 = vunpack.c.l.b16 %v775
        %v1999 = vunpack.c.h.b16 %v775
        %v2000 = vunpack.c.l.b16 %v776
        %v2001 = vunpack.c.h.b16 %v776
        %v2002 = vunpack.c.l.b16 %v777
        %v2003 = vunpack.c.h.b16 %v777
        %v2004 = vunpack.c.l.b16 %v778
        %v2005 = vunpack.c.h.b16 %v778
        %v2006 = vunpack.c.l.b16 %v779
        %v2007 = vunpack.c.h.b16 %v779
        %v2008 = vunpack.c.l.b16 %v780
        %v2009 = vunpack.c.h.b16 %v780
        %v2010 = vunpack.c.l.b16 %v781
        %v2011 = vunpack.c.h.b16 %v781
        %v2012 = vunpack.c.l.b16 %v782
        %v2013 = vunpack.c.h.b16 %v782
        %v2014 = vunpack.c.l.b16 %v783
        %v2015 = vunpack.c.h.b16 %v783
        %v2016 = vunpack.c.l.b16 %v784
        %v2017 = vunpack.c.h.b16 %v784
        %v2018 = vunpack.c.l.b16 %v785
        %v2019 = vunpack.c.h.b16 %v785
        %v2020 = vunpack.c.l.b16 %v786
        %v2021 = vunpack.c.h.b16 %v786
        %v2022 = vunpack.c.l.b16 %v787
        %v2023 = vunpack.c.h.b16 %v787
        %v2024 = vunpack.c.l.b16 %v788
        %v2025 = vunpack.c.h.b16 %v788
        %v2026 = vunpack.c.l.b16 %v789
        %v2027 = vunpack.c.h.b16 %v789
        %v2028 = vunpack.c.l.b16 %v790
        %v2029 = vunpack.c.h.b16 %v790
        %v2030 = vunpack.c.l.b16 %v791
        %v2031 = vunpack.c.h.b16 %v791
        %v2032 = vunpack.c.l.b16 %v792
        %v2033 = vunpack.c.h.b16 %v792
        %v2034 = vunpack.c.l.b16 %v793
        %v2035 = vunpack.c.h.b16 %v793
        %v2036 = vunpack.c.l.b16 %v794
        %v2037 = vunpack.c.h.b16 %v794
        %v2038 = vunpack.c.l.b16 %v795
        %v2039 = vunpack.c.h.b16 %v795
        %v2040 = vunpack.c.l.b16 %v796
        %v2041 = vunpack.c.h.b16 %v796
        %v2042 = vunpack.c.l.b16 %v797
        %v2043 = vunpack.c.h.b16 %v797
        %v2044 = vunpack.c.l.b16 %v798
        %v2045 = vunpack.c.h.b16 %v798
        %v2046 = vunpack.c.l.b16 %v799
        %v2047 = vunpack.c.h.b16 %v799
        %v2048 = vunpack.c.l.b16 %v800
        %v2049 = vunpack.c.h.b16 %v800
        %v2050 = vunpack.c.l.b16 %v801
        %v2051 = vunpack.c.h.b16 %v801
        %v2052 = vunpack.c.l.b16 %v802
        %v2053 = vunpack.c.h.b16 %v802
        %v2054 = vunpack.c.l.b16 %v803
        %v2055 = vunpack.c.h.b16 %v803
        %v2056 = vunpack.c.l.b16 %v804
        %v2057 = vunpack.c.h.b16 %v804
        %v2058 = vunpack.c.l.b16 %v805
        %v2059 = vunpack.c.h.b16 %v805
        %v2060 = vunpack.c.l.b16 %v806
        %v2061 = vunpack.c.h.b16 %v806
        %v2062 = vunpack.c.l.b16 %v807
        %v2063 = vunpack.c.h.b16 %v807
        %v2064 = vunpack.c.l.b16 %v808
        %v2065 = vunpack.c.h.b16 %v808
        %v2066 = vunpack.c.l.b16 %v809
        %v2067 = vunpack.c.h.b16 %v809
        %v2068 = vunpack.c.l.b16 %v810
        %v2069 = vunpack.c.h.b16 %v810
        %v2070 = vunpack.c.l.b16 %v811
        %v2071 = vunpack.c.h.b16 %v811
        %v2072 = vunpack.c.l.b16 %v812
        %v2073 = vunpack.c.h.b16 %v812
        %v2074 = vunpack.c.l.b16 %v813
        %v2075 = vunpack.c.h.b16 %v813
        %v2076 = vunpack.c.l.b16 %v814
        %v2077 = vunpack.c.h.b16 %v814
        %v2078 = vunpack.c.l.b16 %v815
        %v2079 = vunpack.c.h.b16 %v815
        %v2080 = vunpack.c.l.b16 %v816
        %v2081 = vunpack.c.h.b16 %v816
        %v2082 = vunpack.c.l.b16 %v817
        %v2083 = vunpack.c.h.b16 %v817
        %v2084 = vunpack.c.l.b16 %v818
        %v2085 = vunpack.c.h.b16 %v818
        %v2086 = vunpack.c.l.b16 %v819
        %v2087 = vunpack.c.h.b16 %v819
        %v2088 = vunpack.c.l.b16 %v820
        %v2089 = vunpack.c.h.b16 %v820
        %v2090 = vunpack.c.l.b16 %v821
        %v2091 = vunpack.c.h.b16 %v821
        %v2092 = vunpack.c.l.b16 %v822
        %v2093 = vunpack.c.h.b16 %v822
        %v2094 = vunpack.c.l.b16 %v823
        %v2095 = vunpack.c.h.b16 %v823
        %v2096 = vunpack.c.l.b16 %v824
        %v2097 = vunpack.c.h.b16 %v824
        %v2098 = vunpack.c.l.b16 %v825
        %v2099 = vunpack.c.h.b16 %v825
        %v2100 = vunpack.c.l.b16 %v826
        %v2101 = vunpack.c.h.b16 %v826
        %v2102 = vunpack.c.l.b16 %v827
        %v2103 = vunpack.c.h.b16 %v827
        %v2104 = vunpack.c.l.b16 %v828
        %v2105 = vunpack.c.h.b16 %v828
        %v2106 = vunpack.c.l.b16 %v829
        %v2107 = vunpack.c.h.b16 %v829
        %v2108 = vunpack.c.l.b16 %v830
        %v2109 = vunpack.c.h.b16 %v830
        %v2110 = vunpack.c.l.b16 %v831
        %v2111 = vunpack.c.h.b16 %v831
        %v2112 = vunpack.c.l.b16 %v832
        %v2113 = vunpack.c.h.b16 %v832
        %v2114 = vunpack.c.l.b16 %v833
        %v2115 = vunpack.c.h.b16 %v833
        %v2116 = vunpack.c.l.b16 %v834
        %v2117 = vunpack.c.h.b16 %v834
        %v2118 = vunpack.c.l.b16 %v835
        %v2119 = vunpack.c.h.b16 %v835
        %v2120 = vunpack.c.l.b16 %v836
        %v2121 = vunpack.c.h.b16 %v836
        %v2122 = vunpack.c.l.b16 %v837
        %v2123 = vunpack.c.h.b16 %v837
        %v2124 = vunpack.c.l.b16 %v838
        %v2125 = vunpack.c.h.b16 %v838
        %v2126 = vunpack.c.l.b16 %v839
        %v2127 = vunpack.c.h.b16 %v839
        %v2128 = vunpack.c.l.b16 %v840
        %v2129 = vunpack.c.h.b16 %v840
        %v2130 = vunpack.c.l.b16 %v841
        %v2131 = vunpack.c.h.b16 %v841
        %v2132 = vunpack.c.l.b16 %v842
        %v2133 = vunpack.c.h.b16 %v842
        %v2134 = vunpack.c.l.b16 %v843
        %v2135 = vunpack.c.h.b16 %v843
        %v2136 = vunpack.c.l.b16 %v844
        %v2137 = vunpack.c.h.b16 %v844
        %v2138 = vunpack.c.l.b16 %v845
        %v2139 = vunpack.c.h.b16 %v845
        %v2140 = vunpack.c.l.b16 %v846
        %v2141 = vunpack.c.h.b16 %v846
        %v2142 = vunpack.c.l.b16 %v847
        %v2143 = vunpack.c.h.b16 %v847
        %v2144 = vunpack.c.l.b16 %v848
        %v2145 = vunpack.c.h.b16 %v848
        %v2146 = vunpack.c.l.b16 %v849
        %v2147 = vunpack.c.h.b16 %v849
        %v2148 = vunpack.c.l.b16 %v850
        %v2149 = vunpack.c.h.b16 %v850
        %v2150 = vunpack.c.l.b16 %v851
        %v2151 = vunpack.c.h.b16 %v851
        %v2152 = vunpack.c.l.b16 %v852
        %v2153 = vunpack.c.h.b16 %v852
        %v2154 = vunpack.c.l.b16 %v853
        %v2155 = vunpack.c.h.b16 %v853
        %v2156 = vunpack.c.l.b16 %v854
        %v2157 = vunpack.c.h.b16 %v854
        %v2158 = vunpack.c.l.b16 %v855
        %v2159 = vunpack.c.h.b16 %v855
        %v2160 = vunpack.c.l.b16 %v856
        %v2161 = vunpack.c.h.b16 %v856
        %v2162 = vunpack.c.l.b16 %v857
        %v2163 = vunpack.c.h.b16 %v857
        %v2164 = vunpack.c.l.b16 %v858
        %v2165 = vunpack.c.h.b16 %v858
        %v2166 = vunpack.c.l.b16 %v859
        %v2167 = vunpack.c.h.b16 %v859
        %v2168 = vunpack.c.l.b16 %v860
        %v2169 = vunpack.c.h.b16 %v860
        %v2170 = vunpack.c.l.b16 %v861
        %v2171 = vunpack.c.h.b16 %v861
        %v2172 = vunpack.c.l.b16 %v862
        %v2173 = vunpack.c.h.b16 %v862
        %v2174 = vunpack.c.l.b16 %v863
        %v2175 = vunpack.c.h.b16 %v863
        %v2176 = vunpack.c.l.b16 %v864
        %v2177 = vunpack.c.h.b16 %v864
        %v2178 = vunpack.c.l.b16 %v865
        %v2179 = vunpack.c.h.b16 %v865
        %v2180 = vunpack.c.l.b16 %v866
        %v2181 = vunpack.c.h.b16 %v866
        %v2182 = vunpack.c.l.b16 %v867
        %v2183 = vunpack.c.h.b16 %v867
        %v2184 = vunpack.c.l.b16 %v868
        %v2185 = vunpack.c.h.b16 %v868
        %v2186 = vunpack.c.l.b16 %v869
        %v2187 = vunpack.c.h.b16 %v869
        %v2188 = vunpack.c.l.b16 %v870
        %v2189 = vunpack.c.h.b16 %v870
        %v2190 = vunpack.c.l.b16 %v871
        %v2191 = vunpack.c.h.b16 %v871
        %v2192 = vunpack.c.l.b16 %v872
        %v2193 = vunpack.c.h.b16 %v872
        %v2194 = vunpack.c.l.b16 %v873
        %v2195 = vunpack.c.h.b16 %v873
        %v2196 = vunpack.c.l.b16 %v874
        %v2197 = vunpack.c.h.b16 %v874
        %v2198 = vunpack.c.l.b16 %v875
        %v2199 = vunpack.c.h.b16 %v875
        %v2200 = vunpack.c.l.b16 %v876
        %v2201 = vunpack.c.h.b16 %v876
        %v2202 = vunpack.c.l.b16 %v877
        %v2203 = vunpack.c.h.b16 %v877
        %v2204 = vunpack.c.l.b16 %v878
        %v2205 = vunpack.c.h.b16 %v878
        %v2206 = vunpack.c.l.b16 %v879
        %v2207 = vunpack.c.h.b16 %v879
        %v2208 = vunpack.c.l.b16 %v880
        %v2209 = vunpack.c.h.b16 %v880
        %v2210 = vunpack.c.l.b16 %v881
        %v2211 = vunpack.c.h.b16 %v881
        %v2212 = vunpack.c.l.b16 %v882
        %v2213 = vunpack.c.h.b16 %v882
        %v2214 = vunpack.c.l.b16 %v883
        %v2215 = vunpack.c.h.b16 %v883
        %v2216 = vunpack.c.l.b16 %v884
        %v2217 = vunpack.c.h.b16 %v884
        %v2218 = vunpack.c.l.b16 %v885
        %v2219 = vunpack.c.h.b16 %v885
        %v2220 = vunpack.c.l.b16 %v886
        %v2221 = vunpack.c.h.b16 %v886
        %v2222 = vunpack.c.l.b16 %v887
        %v2223 = vunpack.c.h.b16 %v887
        %v2224 = vunpack.c.l.b16 %v888
        %v2225 = vunpack.c.h.b16 %v888
        %v2226 = vunpack.c.l.b16 %v889
        %v2227 = vunpack.c.h.b16 %v889
        %v2228 = vunpack.c.l.b16 %v890
        %v2229 = vunpack.c.h.b16 %v890
        %v2230 = vunpack.c.l.b16 %v891
        %v2231 = vunpack.c.h.b16 %v891
        %v2232 = vunpack.c.l.b16 %v892
        %v2233 = vunpack.c.h.b16 %v892
        %v2234 = vunpack.c.l.b16 %v893
        %v2235 = vunpack.c.h.b16 %v893
        %v2236 = vunpack.c.l.b16 %v894
        %v2237 = vunpack.c.h.b16 %v894
        %v2238 = vunpack.c.l.b16 %v895
        %v2239 = vunpack.c.h.b16 %v895
        %v2240 = vunpack.c.l.b16 %v896
        %v2241 = vunpack.c.h.b16 %v896
        %v2242 = vunpack.c.l.b16 %v897
        %v2243 = vunpack.c.h.b16 %v897
        %v2244 = vunpack.c.l.b16 %v898
        %v2245 = vunpack.c.h.b16 %v898
        %v2246 = vunpack.c.l.b16 %v899
        %v2247 = vunpack.c.h.b16 %v899
        %v2248 = vunpack.c.l.b16 %v900
        %v2249 = vunpack.c.h.b16 %v900
        %v2250 = vunpack.c.l.b16 %v901
        %v2251 = vunpack.c.h.b16 %v901
        %v2252 = vunpack.c.l.b16 %v902
        %v2253 = vunpack.c.h.b16 %v902
        %v2254 = vunpack.c.l.b16 %v903
        %v2255 = vunpack.c.h.b16 %v903
        %v2256 = vunpack.c.l.b16 %v904
        %v2257 = vunpack.c.h.b16 %v904
        %v2258 = vunpack.c.l.b16 %v905
        %v2259 = vunpack.c.h.b16 %v905
        %v2260 = vunpack.c.l.b16 %v906
        %v2261 = vunpack.c.h.b16 %v906
        %v2262 = vunpack.c.l.b16 %v907
        %v2263 = vunpack.c.h.b16 %v907
        %v2264 = vunpack.c.l.b16 %v908
        %v2265 = vunpack.c.h.b16 %v908
        %v2266 = vunpack.c.l.b16 %v909
        %v2267 = vunpack.c.h.b16 %v909
        %v2268 = vunpack.c.l.b16 %v910
        %v2269 = vunpack.c.h.b16 %v910
        %v2270 = vunpack.c.l.b16 %v911
        %v2271 = vunpack.c.h.b16 %v911
        %v2272 = vunpack.c.l.b16 %v912
        %v2273 = vunpack.c.h.b16 %v912
        %v2274 = vunpack.c.l.b16 %v913
        %v2275 = vunpack.c.h.b16 %v913
        %v2276 = vunpack.c.l.b16 %v914
        %v2277 = vunpack.c.h.b16 %v914
        %v2278 = vunpack.c.l.b16 %v915
        %v2279 = vunpack.c.h.b16 %v915
        %v2280 = vunpack.c.l.b16 %v916
        %v2281 = vunpack.c.h.b16 %v916
        %v2282 = vunpack.c.l.b16 %v917
        %v2283 = vunpack.c.h.b16 %v917
        %v2284 = vunpack.c.l.b16 %v918
        %v2285 = vunpack.c.h.b16 %v918
        %v2286 = vunpack.c.l.b16 %v919
        %v2287 = vunpack.c.h.b16 %v919
        %v2288 = vunpack.c.l.b16 %v920
        %v2289 = vunpack.c.h.b16 %v920
        %v2290 = vunpack.c.l.b16 %v921
        %v2291 = vunpack.c.h.b16 %v921
        %v2292 = vunpack.c.l.b16 %v922
        %v2293 = vunpack.c.h.b16 %v922
        %v2294 = vunpack.c.l.b16 %v923
        %v2295 = vunpack.c.h.b16 %v923
        %v2296 = vunpack.c.l.b16 %v924
        %v2297 = vunpack.c.h.b16 %v924
        %v2298 = vunpack.c.l.b16 %v925
        %v2299 = vunpack.c.h.b16 %v925
        %v2300 = vunpack.c.l.b16 %v926
        %v2301 = vunpack.c.h.b16 %v926
        %v2302 = vunpack.c.l.b16 %v927
        %v2303 = vunpack.c.h.b16 %v927
        %v2304 = vunpack.c.l.b16 %v928
        %v2305 = vunpack.c.h.b16 %v928
        %v2306 = vunpack.c.l.b16 %v929
        %v2307 = vunpack.c.h.b16 %v929
        %v2308 = vunpack.c.l.b16 %v930
        %v2309 = vunpack.c.h.b16 %v930
        %v2310 = vunpack.c.l.b16 %v931
        %v2311 = vunpack.c.h.b16 %v931
        %v2312 = vunpack.c.l.b16 %v932
        %v2313 = vunpack.c.h.b16 %v932
        %v2314 = vunpack.c.l.b16 %v933
        %v2315 = vunpack.c.h.b16 %v933
        %v2316 = vunpack.c.l.b16 %v934
        %v2317 = vunpack.c.h.b16 %v934
        %v2318 = vunpack.c.l.b16 %v935
        %v2319 = vunpack.c.h.b16 %v935
        %v2320 = vunpack.c.l.b16 %v936
        %v2321 = vunpack.c.h.b16 %v936
        %v2322 = vunpack.c.l.b16 %v937
        %v2323 = vunpack.c.h.b16 %v937
        %v2324 = vunpack.c.l.b16 %v938
        %v2325 = vunpack.c.h.b16 %v938
        %v2326 = vunpack.c.l.b16 %v939
        %v2327 = vunpack.c.h.b16 %v939
        %v2328 = vunpack.c.l.b16 %v940
        %v2329 = vunpack.c.h.b16 %v940
        %v2330 = vunpack.c.l.b16 %v941
        %v2331 = vunpack.c.h.b16 %v941
        %v2332 = vunpack.c.l.b16 %v942
        %v2333 = vunpack.c.h.b16 %v942
        %v2334 = vunpack.c.l.b16 %v943
        %v2335 = vunpack.c.h.b16 %v943
        %v2336 = vunpack.c.l.b16 %v944
        %v2337 = vunpack.c.h.b16 %v944
        %v2338 = vunpack.c.l.b16 %v945
        %v2339 = vunpack.c.h.b16 %v945
        %v2340 = vunpack.c.l.b16 %v946
        %v2341 = vunpack.c.h.b16 %v946
        %v2342 = vunpack.c.l.b16 %v947
        %v2343 = vunpack.c.h.b16 %v947
        %v2344 = vunpack.c.l.b16 %v948
        %v2345 = vunpack.c.h.b16 %v948
        %v2346 = vunpack.c.l.b16 %v949
        %v2347 = vunpack.c.h.b16 %v949
        %v2348 = vunpack.c.l.b16 %v950
        %v2349 = vunpack.c.h.b16 %v950
        %v2350 = vunpack.c.l.b16 %v951
        %v2351 = vunpack.c.h.b16 %v951
        %v2352 = vunpack.c.l.b16 %v952
        %v2353 = vunpack.c.h.b16 %v952
        %v2354 = vunpack.c.l.b16 %v953
        %v2355 = vunpack.c.h.b16 %v953
        %v2356 = vunpack.c.l.b16 %v954
        %v2357 = vunpack.c.h.b16 %v954
        %v2358 = vunpack.c.l.b16 %v955
        %v2359 = vunpack.c.h.b16 %v955
        %v2360 = vunpack.c.l.b16 %v956
        %v2361 = vunpack.c.h.b16 %v956
        %v2362 = vunpack.c.l.b16 %v957
        %v2363 = vunpack.c.h.b16 %v957
        %v2364 = vunpack.c.l.b16 %v958
        %v2365 = vunpack.c.h.b16 %v958
        %v2366 = vunpack.c.l.b16 %v959
        %v2367 = vunpack.c.h.b16 %v959
        %v2368 = vunpack.c.l.b16 %v960
        %v2369 = vunpack.c.h.b16 %v960
        %v2370 = vunpack.c.l.b16 %v961
        %v2371 = vunpack.c.h.b16 %v961
        %v2372 = vunpack.c.l.b16 %v962
        %v2373 = vunpack.c.h.b16 %v962
        %v2374 = vunpack.c.l.b16 %v963
        %v2375 = vunpack.c.h.b16 %v963
        %v2376 = vunpack.c.l.b16 %v964
        %v2377 = vunpack.c.h.b16 %v964
        %v2378 = vunpack.c.l.b16 %v965
        %v2379 = vunpack.c.h.b16 %v965
        %v2380 = vunpack.c.l.b16 %v966
        %v2381 = vunpack.c.h.b16 %v966
        %v2382 = vunpack.c.l.b16 %v967
        %v2383 = vunpack.c.h.b16 %v967
        %v2384 = vunpack.c.l.b16 %v968
        %v2385 = vunpack.c.h.b16 %v968
        %v2386 = vunpack.c.l.b16 %v969
        %v2387 = vunpack.c.h.b16 %v969
        %v2388 = vunpack.c.l.b16 %v970
        %v2389 = vunpack.c.h.b16 %v970
        %v2390 = vunpack.c.l.b16 %v971
        %v2391 = vunpack.c.h.b16 %v971
        %v2392 = vunpack.c.l.b16 %v972
        %v2393 = vunpack.c.h.b16 %v972
        %v2394 = vunpack.c.l.b16 %v973
        %v2395 = vunpack.c.h.b16 %v973
        %v2396 = vunpack.c.l.b16 %v974
        %v2397 = vunpack.c.h.b16 %v974
        %v2398 = vunpack.c.l.b16 %v975
        %v2399 = vunpack.c.h.b16 %v975
        %v2400 = vunpack.c.l.b16 %v976
        %v2401 = vunpack.c.h.b16 %v976
        %v2402 = vunpack.c.l.b16 %v977
        %v2403 = vunpack.c.h.b16 %v977
        %v2404 = vunpack.c.l.b16 %v978
        %v2405 = vunpack.c.h.b16 %v978
        %v2406 = vunpack.c.l.b16 %v979
        %v2407 = vunpack.c.h.b16 %v979
        %v2408 = vunpack.c.l.b16 %v980
        %v2409 = vunpack.c.h.b16 %v980
        %v2410 = vunpack.c.l.b16 %v981
        %v2411 = vunpack.c.h.b16 %v981
        %v2412 = vunpack.c.l.b16 %v982
        %v2413 = vunpack.c.h.b16 %v982
        %v2414 = vunpack.c.l.b16 %v983
        %v2415 = vunpack.c.h.b16 %v983
        %v2416 = vunpack.c.l.b16 %v984
        %v2417 = vunpack.c.h.b16 %v984
        %v2418 = vunpack.c.l.b16 %v985
        %v2419 = vunpack.c.h.b16 %v985
        %v2420 = vunpack.c.l.b16 %v986
        %v2421 = vunpack.c.h.b16 %v986
        %v2422 = vunpack.c.l.b16 %v987
        %v2423 = vunpack.c.h.b16 %v987
        %v2424 = vunpack.c.l.b16 %v988
        %v2425 = vunpack.c.h.b16 %v988
        %v2426 = vunpack.c.l.b16 %v989
        %v2427 = vunpack.c.h.b16 %v989
        %v2428 = vunpack.c.l.b16 %v990
        %v2429 = vunpack.c.h.b16 %v990
        %v2430 = vunpack.c.l.b16 %v991
        %v2431 = vunpack.c.h.b16 %v991
        %v2432 = vunpack.c.l.b16 %v992
        %v2433 = vunpack.c.h.b16 %v992
        %v2434 = vunpack.c.l.b16 %v993
        %v2435 = vunpack.c.h.b16 %v993
        %v2436 = vunpack.c.l.b16 %v994
        %v2437 = vunpack.c.h.b16 %v994
        %v2438 = vunpack.c.l.b16 %v995
        %v2439 = vunpack.c.h.b16 %v995
        %v2440 = vunpack.c.l.b16 %v996
        %v2441 = vunpack.c.h.b16 %v996
        %v2442 = vunpack.c.l.b16 %v997
        %v2443 = vunpack.c.h.b16 %v997
        %v2444 = vunpack.c.l.b16 %v998
        %v2445 = vunpack.c.h.b16 %v998
        %v2446 = vunpack.c.l.b16 %v999
        %v2447 = vunpack.c.h.b16 %v999
        %v2448 = vunpack.c.l.b16 %v1000
        %v2449 = vunpack.c.h.b16 %v1000
        %v2450 = vunpack.c.l.b16 %v1001
        %v2451 = vunpack.c.h.b16 %v1001
        %v2452 = vunpack.c.l.b16 %v1002
        %v2453 = vunpack.c.h.b16 %v1002
        %v2454 = vunpack.c.l.b16 %v1003
        %v2455 = vunpack.c.h.b16 %v1003
        %v2456 = vunpack.c.l.b16 %v1004
        %v2457 = vunpack.c.h.b16 %v1004
        %v2458 = vunpack.c.l.b16 %v1005
        %v2459 = vunpack.c.h.b16 %v1005
        %v2460 = vunpack.c.l.b16 %v1006
        %v2461 = vunpack.c.h.b16 %v1006
        %v2462 = vunpack.c.l.b16 %v1007
        %v2463 = vunpack.c.h.b16 %v1007
        %v2464 = vunpack.c.l.b16 %v1008
        %v2465 = vunpack.c.h.b16 %v1008
        %v2466 = vunpack.c.l.b16 %v1009
        %v2467 = vunpack.c.h.b16 %v1009
        %v2468 = vunpack.c.l.b16 %v1010
        %v2469 = vunpack.c.h.b16 %v1010
        %v2470 = vunpack.c.l.b16 %v1011
        %v2471 = vunpack.c.h.b16 %v1011
        %v2472 = vunpack.c.l.b16 %v1012
        %v2473 = vunpack.c.h.b16 %v1012
        %v2474 = vunpack.c.l.b16 %v1013
        %v2475 = vunpack.c.h.b16 %v1013
        %v2476 = vunpack.c.l.b16 %v1014
        %v2477 = vunpack.c.h.b16 %v1014
        %v2478 = vunpack.c.l.b16 %v1015
        %v2479 = vunpack.c.h.b16 %v1015
        %v2480 = vunpack.c.l.b16 %v1016
        %v2481 = vunpack.c.h.b16 %v1016
        %v2482 = vunpack.c.l.b16 %v1017
        %v2483 = vunpack.c.h.b16 %v1017
        %v2484 = vunpack.c.l.b16 %v1018
        %v2485 = vunpack.c.h.b16 %v1018
        %v2486 = vunpack.c.l.b16 %v1019
        %v2487 = vunpack.c.h.b16 %v1019
        %v2488 = vunpack.c.l.b16 %v1020
        %v2489 = vunpack.c.h.b16 %v1020
        %v2490 = vunpack.c.l.b16 %v1021
        %v2491 = vunpack.c.h.b16 %v1021
        %v2492 = vunpack.c.l.b16 %v1022
        %v2493 = vunpack.c.h.b16 %v1022
        %v2494 = vunpack.c.l.b16 %v1023
        %v2495 = vunpack.c.h.b16 %v1023
        %v2496 = vunpack.c.l.b16 %v1024
        %v2497 = vunpack.c.h.b16 %v1024
        %v2498 = vunpack.c.l.b16 %v1025
        %v2499 = vunpack.c.h.b16 %v1025
        %v2500 = vunpack.c.l.b16 %v1026
        %v2501 = vunpack.c.h.b16 %v1026
        %v2502 = vunpack.c.l.b16 %v1027
        %v2503 = vunpack.c.h.b16 %v1027
        %v2504 = vunpack.c.l.b16 %v1028
        %v2505 = vunpack.c.h.b16 %v1028
        %v2506 = vunpack.c.l.b16 %v1029
        %v2507 = vunpack.c.h.b16 %v1029
        %v2508 = vunpack.c.l.b16 %v1030
        %v2509 = vunpack.c.h.b16 %v1030
        %v2510 = vunpack.c.l.b16 %v1031
        %v2511 = vunpack.c.h.b16 %v1031
        %v2512 = vunpack.c.l.b16 %v1032
        %v2513 = vunpack.c.h.b16 %v1032
        %v2514 = vunpack.c.l.b16 %v1033
        %v2515 = vunpack.c.h.b16 %v1033
        %v2516 = vunpack.c.l.b16 %v1034
        %v2517 = vunpack.c.h.b16 %v1034
        %v2518 = vunpack.c.l.b16 %v1035
        %v2519 = vunpack.c.h.b16 %v1035
        %v2520 = vunpack.c.l.b16 %v1036
        %v2521 = vunpack.c.h.b16 %v1036
        %v2522 = vunpack.c.l.b16 %v1037
        %v2523 = vunpack.c.h.b16 %v1037
        %v2524 = vunpack.c.l.b16 %v1038
        %v2525 = vunpack.c.h.b16 %v1038
        %v2526 = vunpack.c.l.b16 %v1039
        %v2527 = vunpack.c.h.b16 %v1039
        %v2528 = vunpack.c.l.b16 %v1040
        %v2529 = vunpack.c.h.b16 %v1040
        %v2530 = vunpack.c.l.b16 %v1041
        %v2531 = vunpack.c.h.b16 %v1041
        %v2532 = vunpack.c.l.b16 %v1042
        %v2533 = vunpack.c.h.b16 %v1042
        %v2534 = vunpack.c.l.b16 %v1043
        %v2535 = vunpack.c.h.b16 %v1043
        %v2536 = vunpack.c.l.b16 %v1044
        %v2537 = vunpack.c.h.b16 %v1044
        %v2538 = vunpack.c.l.b16 %v1045
        %v2539 = vunpack.c.h.b16 %v1045
        %v2540 = vunpack.c.l.b16 %v1046
        %v2541 = vunpack.c.h.b16 %v1046
        %v2542 = vunpack.c.l.b16 %v1047
        %v2543 = vunpack.c.h.b16 %v1047
        %v2544 = vunpack.c.l.b16 %v1048
        %v2545 = vunpack.c.h.b16 %v1048
        %v2546 = vunpack.c.l.b16 %v1049
        %v2547 = vunpack.c.h.b16 %v1049
        %v2548 = vunpack.c.l.b16 %v1050
        %v2549 = vunpack.c.h.b16 %v1050
        %v2550 = vunpack.c.l.b16 %v1051
        %v2551 = vunpack.c.h.b16 %v1051
        %v2552 = vunpack.c.l.b16 %v1052
        %v2553 = vunpack.c.h.b16 %v1052
        %v2554 = vunpack.c.l.b16 %v1053
        %v2555 = vunpack.c.h.b16 %v1053
        %v2556 = vunpack.c.l.b16 %v1054
        %v2557 = vunpack.c.h.b16 %v1054
        %v2558 = vunpack.c.l.b16 %v1055
        %v2559 = vunpack.c.h.b16 %v1055
        %v2560 = vunpack.c.l.b16 %v1056
        %v2561 = vunpack.c.h.b16 %v1056
        %v2562 = vunpack.c.l.b16 %v1057
        %v2563 = vunpack.c.h.b16 %v1057
        %v2564 = vunpack.c.l.b16 %v1058
        %v2565 = vunpack.c.h.b16 %v1058
        %v2566 = vunpack.c.l.b16 %v1059
        %v2567 = vunpack.c.h.b16 %v1059
        %v2568 = vunpack.c.l.b16 %v1060
        %v2569 = vunpack.c.h.b16 %v1060
        %v2570 = vunpack.c.l.b16 %v1061
        %v2571 = vunpack.c.h.b16 %v1061
        %v2572 = vunpack.c.l.b16 %v1062
        %v2573 = vunpack.c.h.b16 %v1062
        %v2574 = vunpack.c.l.b16 %v1063
        %v2575 = vunpack.c.h.b16 %v1063
        %v2576 = vunpack.c.l.b16 %v1064
        %v2577 = vunpack.c.h.b16 %v1064
        %v2578 = vunpack.c.l.b16 %v1065
        %v2579 = vunpack.c.h.b16 %v1065
        %v2580 = vunpack.c.l.b16 %v1066
        %v2581 = vunpack.c.h.b16 %v1066
        %v2582 = vunpack.c.l.b16 %v1067
        %v2583 = vunpack.c.h.b16 %v1067
        %v2584 = vunpack.c.l.b16 %v1068
        %v2585 = vunpack.c.h.b16 %v1068
        %v2586 = vunpack.c.l.b16 %v1069
        %v2587 = vunpack.c.h.b16 %v1069
        %v2588 = vunpack.c.l.b16 %v1070
        %v2589 = vunpack.c.h.b16 %v1070
        %v2590 = vunpack.c.l.b16 %v1071
        %v2591 = vunpack.c.h.b16 %v1071
        %v2592 = vunpack.c.l.b16 %v1072
        %v2593 = vunpack.c.h.b16 %v1072
        %v2594 = vunpack.c.l.b16 %v1073
        %v2595 = vunpack.c.h.b16 %v1073
        %v2596 = vunpack.c.l.b16 %v1074
        %v2597 = vunpack.c.h.b16 %v1074
        %v2598 = vunpack.c.l.b16 %v1075
        %v2599 = vunpack.c.h.b16 %v1075
        %v2600 = vunpack.c.l.b16 %v1076
        %v2601 = vunpack.c.h.b16 %v1076
        %v2602 = vunpack.c.l.b16 %v1077
        %v2603 = vunpack.c.h.b16 %v1077
        %v2604 = vunpack.c.l.b16 %v1078
        %v2605 = vunpack.c.h.b16 %v1078
        %v2606 = vunpack.c.l.b16 %v1079
        %v2607 = vunpack.c.h.b16 %v1079
        %v2608 = vunpack.c.l.b16 %v1080
        %v2609 = vunpack.c.h.b16 %v1080
        %v2610 = vunpack.c.l.b16 %v1081
        %v2611 = vunpack.c.h.b16 %v1081
        %v2612 = vunpack.c.l.b16 %v1082
        %v2613 = vunpack.c.h.b16 %v1082
        %v2614 = vunpack.c.l.b16 %v1083
        %v2615 = vunpack.c.h.b16 %v1083
        %v2616 = vunpack.c.l.b16 %v1084
        %v2617 = vunpack.c.h.b16 %v1084
        %v2618 = vunpack.c.l.b16 %v1085
        %v2619 = vunpack.c.h.b16 %v1085
        %v2620 = vunpack.c.l.b16 %v1086
        %v2621 = vunpack.c.h.b16 %v1086
        %v2622 = vunpack.c.l.b16 %v1087
        %v2623 = vunpack.c.h.b16 %v1087
        %v2624 = vpack.c.b16 %v1604, %v1600
        %v2625 = vpack.c.b16 %v1605, %v1601
        %v2626 = vpack.c.b16 %v1606, %v1602
        %v2627 = vpack.c.b16 %v1607, %v1603
        %v2628 = vpack.c.b16 %v1612, %v1608
        %v2629 = vpack.c.b16 %v1613, %v1609
        %v2630 = vpack.c.b16 %v1614, %v1610
        %v2631 = vpack.c.b16 %v1615, %v1611
        %v2632 = vpack.c.b16 %v1620, %v1616
        %v2633 = vpack.c.b16 %v1621, %v1617
        %v2634 = vpack.c.b16 %v1622, %v1618
        %v2635 = vpack.c.b16 %v1623, %v1619
        %v2636 = vpack.c.b16 %v1628, %v1624
        %v2637 = vpack.c.b16 %v1629, %v1625
        %v2638 = vpack.c.b16 %v1630, %v1626
        %v2639 = vpack.c.b16 %v1631, %v1627
        %v2640 = vpack.c.b16 %v1636, %v1632
        %v2641 = vpack.c.b16 %v1637, %v1633
        %v2642 = vpack.c.b16 %v1638, %v1634
        %v2643 = vpack.c.b16 %v1639, %v1635
        %v2644 = vpack.c.b16 %v1644, %v1640
        %v2645 = vpack.c.b16 %v1645, %v1641
        %v2646 = vpack.c.b16 %v1646, %v1642
        %v2647 = vpack.c.b16 %v1647, %v1643
        %v2648 = vpack.c.b16 %v1652, %v1648
        %v2649 = vpack.c.b16 %v1653, %v1649
        %v2650 = vpack.c.b16 %v1654, %v1650
        %v2651 = vpack.c.b16 %v1655, %v1651
        %v2652 = vpack.c.b16 %v1660, %v1656
        %v2653 = vpack.c.b16 %v1661, %v1657
        %v2654 = vpack.c.b16 %v1662, %v1658
        %v2655 = vpack.c.b16 %v1663, %v1659
        %v2656 = vpack.c.b16 %v1668, %v1664
        %v2657 = vpack.c.b16 %v1669, %v1665
        %v2658 = vpack.c.b16 %v1670, %v1666
        %v2659 = vpack.c.b16 %v1671, %v1667
        %v2660 = vpack.c.b16 %v1676, %v1672
        %v2661 = vpack.c.b16 %v1677, %v1673
        %v2662 = vpack.c.b16 %v1678, %v1674
        %v2663 = vpack.c.b16 %v1679, %v1675
        %v2664 = vpack.c.b16 %v1684, %v1680
        %v2665 = vpack.c.b16 %v1685, %v1681
        %v2666 = vpack.c.b16 %v1686, %v1682
        %v2667 = vpack.c.b16 %v1687, %v1683
        %v2668 = vpack.c.b16 %v1692, %v1688
        %v2669 = vpack.c.b16 %v1693, %v1689
        %v2670 = vpack.c.b16 %v1694, %v1690
        %v2671 = vpack.c.b16 %v1695, %v1691
        %v2672 = vpack.c.b16 %v1700, %v1696
        %v2673 = vpack.c.b16 %v1701, %v1697
        %v2674 = vpack.c.b16 %v1702, %v1698
        %v2675 = vpack.c.b16 %v1703, %v1699
        %v2676 = vpack.c.b16 %v1708, %v1704
        %v2677 = vpack.c.b16 %v1709, %v1705
        %v2678 = vpack.c.b16 %v1710, %v1706
        %v2679 = vpack.c.b16 %v1711, %v1707
        %v2680 = vpack.c.b16 %v1716, %v1712
        %v2681 = vpack.c.b16 %v1717, %v1713
        %v2682 = vpack.c.b16 %v1718, %v1714
        %v2683 = vpack.c.b16 %v1719, %v1715
        %v2684 = vpack.c.b16 %v1724, %v1720
        %v2685 = vpack.c.b16 %v1725, %v1721
        %v2686 = vpack.c.b16 %v1726, %v1722
        %v2687 = vpack.c.b16 %v1727, %v1723
        %v2688 = vpack.c.b16 %v1732, %v1728
        %v2689 = vpack.c.b16 %v1733, %v1729
        %v2690 = vpack.c.b16 %v1734, %v1730
        %v2691 = vpack.c.b16 %v1735, %v1731
        %v2692 = vpack.c.b16 %v1740, %v1736
        %v2693 = vpack.c.b16 %v1741, %v1737
        %v2694 = vpack.c.b16 %v1742, %v1738
        %v2695 = vpack.c.b16 %v1743, %v1739
        %v2696 = vpack.c.b16 %v1748, %v1744
        %v2697 = vpack.c.b16 %v1749, %v1745
        %v2698 = vpack.c.b16 %v1750, %v1746
        %v2699 = vpack.c.b16 %v1751, %v1747
        %v2700 = vpack.c.b16 %v1756, %v1752
        %v2701 = vpack.c.b16 %v1757, %v1753
        %v2702 = vpack.c.b16 %v1758, %v1754
        %v2703 = vpack.c.b16 %v1759, %v1755
        %v2704 = vpack.c.b16 %v1764, %v1760
        %v2705 = vpack.c.b16 %v1765, %v1761
        %v2706 = vpack.c.b16 %v1766, %v1762
        %v2707 = vpack.c.b16 %v1767, %v1763
        %v2708 = vpack.c.b16 %v1772, %v1768
        %v2709 = vpack.c.b16 %v1773, %v1769
        %v2710 = vpack.c.b16 %v1774, %v1770
        %v2711 = vpack.c.b16 %v1775, %v1771
        %v2712 = vpack.c.b16 %v1780, %v1776
        %v2713 = vpack.c.b16 %v1781, %v1777
        %v2714 = vpack.c.b16 %v1782, %v1778
        %v2715 = vpack.c.b16 %v1783, %v1779
        %v2716 = vpack.c.b16 %v1788, %v1784
        %v2717 = vpack.c.b16 %v1789, %v1785
        %v2718 = vpack.c.b16 %v1790, %v1786
        %v2719 = vpack.c.b16 %v1791, %v1787
        %v2720 = vpack.c.b16 %v1796, %v1792
        %v2721 = vpack.c.b16 %v1797, %v1793
        %v2722 = vpack.c.b16 %v1798, %v1794
        %v2723 = vpack.c.b16 %v1799, %v1795
        %v2724 = vpack.c.b16 %v1804, %v1800
        %v2725 = vpack.c.b16 %v1805, %v1801
        %v2726 = vpack.c.b16 %v1806, %v1802
        %v2727 = vpack.c.b16 %v1807, %v1803
        %v2728 = vpack.c.b16 %v1812, %v1808
        %v2729 = vpack.c.b16 %v1813, %v1809
        %v2730 = vpack.c.b16 %v1814, %v1810
        %v2731 = vpack.c.b16 %v1815, %v1811
        %v2732 = vpack.c.b16 %v1820, %v1816
        %v2733 = vpack.c.b16 %v1821, %v1817
        %v2734 = vpack.c.b16 %v1822, %v1818
        %v2735 = vpack.c.b16 %v1823, %v1819
        %v2736 = vpack.c.b16 %v1828, %v1824
        %v2737 = vpack.c.b16 %v1829, %v1825
        %v2738 = vpack.c.b16 %v1830, %v1826
        %v2739 = vpack.c.b16 %v1831, %v1827
        %v2740 = vpack.c.b16 %v1836, %v1832
        %v2741 = vpack.c.b16 %v1837, %v1833
        %v2742 = vpack.c.b16 %v1838, %v1834
        %v2743 = vpack.c.b16 %v1839, %v1835
        %v2744 = vpack.c.b16 %v1844, %v1840
        %v2745 = vpack.c.b16 %v1845, %v1841
        %v2746 = vpack.c.b16 %v1846, %v1842
        %v2747 = vpack.c.b16 %v1847, %v1843
        %v2748 = vpack.c.b16 %v1852, %v1848
        %v2749 = vpack.c.b16 %v1853, %v1849
        %v2750 = vpack.c.b16 %v1854, %v1850
        %v2751 = vpack.c.b16 %v1855, %v1851
        %v2752 = vpack.c.b16 %v1860, %v1856
        %v2753 = vpack.c.b16 %v1861, %v1857
        %v2754 = vpack.c.b16 %v1862, %v1858
        %v2755 = vpack.c.b16 %v1863, %v1859
        %v2756 = vpack.c.b16 %v1868, %v1864
        %v2757 = vpack.c.b16 %v1869, %v1865
        %v2758 = vpack.c.b16 %v1870, %v1866
        %v2759 = vpack.c.b16 %v1871, %v1867
        %v2760 = vpack.c.b16 %v1876, %v1872
        %v2761 = vpack.c.b16 %v1877, %v1873
        %v2762 = vpack.c.b16 %v1878, %v1874
        %v2763 = vpack.c.b16 %v1879, %v1875
        %v2764 = vpack.c.b16 %v1884, %v1880
        %v2765 = vpack.c.b16 %v1885, %v1881
        %v2766 = vpack.c.b16 %v1886, %v1882
        %v2767 = vpack.c.b16 %v1887, %v1883
        %v2768 = vpack.c.b16 %v1892, %v1888
        %v2769 = vpack.c.b16 %v1893, %v1889
        %v2770 = vpack.c.b16 %v1894, %v1890
        %v2771 = vpack.c.b16 %v1895, %v1891
        %v2772 = vpack.c.b16 %v1900, %v1896
        %v2773 = vpack.c.b16 %v1901, %v1897
        %v2774 = vpack.c.b16 %v1902, %v1898
        %v2775 = vpack.c.b16 %v1903, %v1899
        %v2776 = vpack.c.b16 %v1908, %v1904
        %v2777 = vpack.c.b16 %v1909, %v1905
        %v2778 = vpack.c.b16 %v1910, %v1906
        %v2779 = vpack.c.b16 %v1911, %v1907
        %v2780 = vpack.c.b16 %v1916, %v1912
        %v2781 = vpack.c.b16 %v1917, %v1913
        %v2782 = vpack.c.b16 %v1918, %v1914
        %v2783 = vpack.c.b16 %v1919, %v1915
        %v2784 = vpack.c.b16 %v1924, %v1920
        %v2785 = vpack.c.b16 %v1925, %v1921
        %v2786 = vpack.c.b16 %v1926, %v1922
        %v2787 = vpack.c.b16 %v1927, %v1923
        %v2788 = vpack.c.b16 %v1932, %v1928
        %v2789 = vpack.c.b16 %v1933, %v1929
        %v2790 = vpack.c.b16 %v1934, %v1930
        %v2791 = vpack.c.b16 %v1935, %v1931
        %v2792 = vpack.c.b16 %v1940, %v1936
        %v2793 = vpack.c.b16 %v1941, %v1937
        %v2794 = vpack.c.b16 %v1942, %v1938
        %v2795 = vpack.c.b16 %v1943, %v1939
        %v2796 = vpack.c.b16 %v1948, %v1944
        %v2797 = vpack.c.b16 %v1949, %v1945
        %v2798 = vpack.c.b16 %v1950, %v1946
        %v2799 = vpack.c.b16 %v1951, %v1947
        %v2800 = vpack.c.b16 %v1956, %v1952
        %v2801 = vpack.c.b16 %v1957, %v1953
        %v2802 = vpack.c.b16 %v1958, %v1954
        %v2803 = vpack.c.b16 %v1959, %v1955
        %v2804 = vpack.c.b16 %v1964, %v1960
        %v2805 = vpack.c.b16 %v1965, %v1961
        %v2806 = vpack.c.b16 %v1966, %v1962
        %v2807 = vpack.c.b16 %v1967, %v1963
        %v2808 = vpack.c.b16 %v1972, %v1968
        %v2809 = vpack.c.b16 %v1973, %v1969
        %v2810 = vpack.c.b16 %v1974, %v1970
        %v2811 = vpack.c.b16 %v1975, %v1971
        %v2812 = vpack.c.b16 %v1980, %v1976
        %v2813 = vpack.c.b16 %v1981, %v1977
        %v2814 = vpack.c.b16 %v1982, %v1978
        %v2815 = vpack.c.b16 %v1983, %v1979
        %v2816 = vpack.c.b16 %v1988, %v1984
        %v2817 = vpack.c.b16 %v1989, %v1985
        %v2818 = vpack.c.b16 %v1990, %v1986
        %v2819 = vpack.c.b16 %v1991, %v1987
        %v2820 = vpack.c.b16 %v1996, %v1992
        %v2821 = vpack.c.b16 %v1997, %v1993
        %v2822 = vpack.c.b16 %v1998, %v1994
        %v2823 = vpack.c.b16 %v1999, %v1995
        %v2824 = vpack.c.b16 %v2004, %v2000
        %v2825 = vpack.c.b16 %v2005, %v2001
        %v2826 = vpack.c.b16 %v2006, %v2002
        %v2827 = vpack.c.b16 %v2007, %v2003
        %v2828 = vpack.c.b16 %v2012, %v2008
        %v2829 = vpack.c.b16 %v2013, %v2009
        %v2830 = vpack.c.b16 %v2014, %v2010
        %v2831 = vpack.c.b16 %v2015, %v2011
        %v2832 = vpack.c.b16 %v2020, %v2016
        %v2833 = vpack.c.b16 %v2021, %v2017
        %v2834 = vpack.c.b16 %v2022, %v2018
        %v2835 = vpack.c.b16 %v2023, %v2019
        %v2836 = vpack.c.b16 %v2028, %v2024
        %v2837 = vpack.c.b16 %v2029, %v2025
        %v2838 = vpack.c.b16 %v2030, %v2026
        %v2839 = vpack.c.b16 %v2031, %v2027
        %v2840 = vpack.c.b16 %v2036, %v2032
        %v2841 = vpack.c.b16 %v2037, %v2033
        %v2842 = vpack.c.b16 %v2038, %v2034
        %v2843 = vpack.c.b16 %v2039, %v2035
        %v2844 = vpack.c.b16 %v2044, %v2040
        %v2845 = vpack.c.b16 %v2045, %v2041
        %v2846 = vpack.c.b16 %v2046, %v2042
        %v2847 = vpack.c.b16 %v2047, %v2043
        %v2848 = vpack.c.b16 %v2052, %v2048
        %v2849 = vpack.c.b16 %v2053, %v2049
        %v2850 = vpack.c.b16 %v2054, %v2050
        %v2851 = vpack.c.b16 %v2055, %v2051
        %v2852 = vpack.c.b16 %v2060, %v2056
        %v2853 = vpack.c.b16 %v2061, %v2057
        %v2854 = vpack.c.b16 %v2062, %v2058
        %v2855 = vpack.c.b16 %v2063, %v2059
        %v2856 = vpack.c.b16 %v2068, %v2064
        %v2857 = vpack.c.b16 %v2069, %v2065
        %v2858 = vpack.c.b16 %v2070, %v2066
        %v2859 = vpack.c.b16 %v2071, %v2067
        %v2860 = vpack.c.b16 %v2076, %v2072
        %v2861 = vpack.c.b16 %v2077, %v2073
        %v2862 = vpack.c.b16 %v2078, %v2074
        %v2863 = vpack.c.b16 %v2079, %v2075
        %v2864 = vpack.c.b16 %v2084, %v2080
        %v2865 = vpack.c.b16 %v2085, %v2081
        %v2866 = vpack.c.b16 %v2086, %v2082
        %v2867 = vpack.c.b16 %v2087, %v2083
        %v2868 = vpack.c.b16 %v2092, %v2088
        %v2869 = vpack.c.b16 %v2093, %v2089
        %v2870 = vpack.c.b16 %v2094, %v2090
        %v2871 = vpack.c.b16 %v2095, %v2091
        %v2872 = vpack.c.b16 %v2100, %v2096
        %v2873 = vpack.c.b16 %v2101, %v2097
        %v2874 = vpack.c.b16 %v2102, %v2098
        %v2875 = vpack.c.b16 %v2103, %v2099
        %v2876 = vpack.c.b16 %v2108, %v2104
        %v2877 = vpack.c.b16 %v2109, %v2105
        %v2878 = vpack.c.b16 %v2110, %v2106
        %v2879 = vpack.c.b16 %v2111, %v2107
        %v2880 = vpack.c.b16 %v2116, %v2112
        %v2881 = vpack.c.b16 %v2117, %v2113
        %v2882 = vpack.c.b16 %v2118, %v2114
        %v2883 = vpack.c.b16 %v2119, %v2115
        %v2884 = vpack.c.b16 %v2124, %v2120
        %v2885 = vpack.c.b16 %v2125, %v2121
        %v2886 = vpack.c.b16 %v2126, %v2122
        %v2887 = vpack.c.b16 %v2127, %v2123
        %v2888 = vpack.c.b16 %v2132, %v2128
        %v2889 = vpack.c.b16 %v2133, %v2129
        %v2890 = vpack.c.b16 %v2134, %v2130
        %v2891 = vpack.c.b16 %v2135, %v2131
        %v2892 = vpack.c.b16 %v2140, %v2136
        %v2893 = vpack.c.b16 %v2141, %v2137
        %v2894 = vpack.c.b16 %v2142, %v2138
        %v2895 = vpack.c.b16 %v2143, %v2139
        %v2896 = vpack.c.b16 %v2148, %v2144
        %v2897 = vpack.c.b16 %v2149, %v2145
        %v2898 = vpack.c.b16 %v2150, %v2146
        %v2899 = vpack.c.b16 %v2151, %v2147
        %v2900 = vpack.c.b16 %v2156, %v2152
        %v2901 = vpack.c.b16 %v2157, %v2153
        %v2902 = vpack.c.b16 %v2158, %v2154
        %v2903 = vpack.c.b16 %v2159, %v2155
        %v2904 = vpack.c.b16 %v2164, %v2160
        %v2905 = vpack.c.b16 %v2165, %v2161
        %v2906 = vpack.c.b16 %v2166, %v2162
        %v2907 = vpack.c.b16 %v2167, %v2163
        %v2908 = vpack.c.b16 %v2172, %v2168
        %v2909 = vpack.c.b16 %v2173, %v2169
        %v2910 = vpack.c.b16 %v2174, %v2170
        %v2911 = vpack.c.b16 %v2175, %v2171
        %v2912 = vpack.c.b16 %v2180, %v2176
        %v2913 = vpack.c.b16 %v2181, %v2177
        %v2914 = vpack.c.b16 %v2182, %v2178
        %v2915 = vpack.c.b16 %v2183, %v2179
        %v2916 = vpack.c.b16 %v2188, %v2184
        %v2917 = vpack.c.b16 %v2189, %v2185
        %v2918 = vpack.c.b16 %v2190, %v2186
        %v2919 = vpack.c.b16 %v2191, %v2187
        %v2920 = vpack.c.b16 %v2196, %v2192
        %v2921 = vpack.c.b16 %v2197, %v2193
        %v2922 = vpack.c.b16 %v2198, %v2194
        %v2923 = vpack.c.b16 %v2199, %v2195
        %v2924 = vpack.c.b16 %v2204, %v2200
        %v2925 = vpack.c.b16 %v2205, %v2201
        %v2926 = vpack.c.b16 %v2206, %v2202
        %v2927 = vpack.c.b16 %v2207, %v2203
        %v2928 = vpack.c.b16 %v2212, %v2208
        %v2929 = vpack.c.b16 %v2213, %v2209
        %v2930 = vpack.c.b16 %v2214, %v2210
        %v2931 = vpack.c.b16 %v2215, %v2211
        %v2932 = vpack.c.b16 %v2220, %v2216
        %v2933 = vpack.c.b16 %v2221, %v2217
        %v2934 = vpack.c.b16 %v2222, %v2218
        %v2935 = vpack.c.b16 %v2223, %v2219
        %v2936 = vpack.c.b16 %v2228, %v2224
        %v2937 = vpack.c.b16 %v2229, %v2225
        %v2938 = vpack.c.b16 %v2230, %v2226
        %v2939 = vpack.c.b16 %v2231, %v2227
        %v2940 = vpack.c.b16 %v2236, %v2232
        %v2941 = vpack.c.b16 %v2237, %v2233
        %v2942 = vpack.c.b16 %v2238, %v2234
        %v2943 = vpack.c.b16 %v2239, %v2235
        %v2944 = vpack.c.b16 %v2244, %v2240
        %v2945 = vpack.c.b16 %v2245, %v2241
        %v2946 = vpack.c.b16 %v2246, %v2242
        %v2947 = vpack.c.b16 %v2247, %v2243
        %v2948 = vpack.c.b16 %v2252, %v2248
        %v2949 = vpack.c.b16 %v2253, %v2249
        %v2950 = vpack.c.b16 %v2254, %v2250
        %v2951 = vpack.c.b16 %v2255, %v2251
        %v2952 = vpack.c.b16 %v2260, %v2256
        %v2953 = vpack.c.b16 %v2261, %v2257
        %v2954 = vpack.c.b16 %v2262, %v2258
        %v2955 = vpack.c.b16 %v2263, %v2259
        %v2956 = vpack.c.b16 %v2268, %v2264
        %v2957 = vpack.c.b16 %v2269, %v2265
        %v2958 = vpack.c.b16 %v2270, %v2266
        %v2959 = vpack.c.b16 %v2271, %v2267
        %v2960 = vpack.c.b16 %v2276, %v2272
        %v2961 = vpack.c.b16 %v2277, %v2273
        %v2962 = vpack.c.b16 %v2278, %v2274
        %v2963 = vpack.c.b16 %v2279, %v2275
        %v2964 = vpack.c.b16 %v2284, %v2280
        %v2965 = vpack.c.b16 %v2285, %v2281
        %v2966 = vpack.c.b16 %v2286, %v2282
        %v2967 = vpack.c.b16 %v2287, %v2283
        %v2968 = vpack.c.b16 %v2292, %v2288
        %v2969 = vpack.c.b16 %v2293, %v2289
        %v2970 = vpack.c.b16 %v2294, %v2290
        %v2971 = vpack.c.b16 %v2295, %v2291
        %v2972 = vpack.c.b16 %v2300, %v2296
        %v2973 = vpack.c.b16 %v2301, %v2297
        %v2974 = vpack.c.b16 %v2302, %v2298
        %v2975 = vpack.c.b16 %v2303, %v2299
        %v2976 = vpack.c.b16 %v2308, %v2304
        %v2977 = vpack.c.b16 %v2309, %v2305
        %v2978 = vpack.c.b16 %v2310, %v2306
        %v2979 = vpack.c.b16 %v2311, %v2307
        %v2980 = vpack.c.b16 %v2316, %v2312
        %v2981 = vpack.c.b16 %v2317, %v2313
        %v2982 = vpack.c.b16 %v2318, %v2314
        %v2983 = vpack.c.b16 %v2319, %v2315
        %v2984 = vpack.c.b16 %v2324, %v2320
        %v2985 = vpack.c.b16 %v2325, %v2321
        %v2986 = vpack.c.b16 %v2326, %v2322
        %v2987 = vpack.c.b16 %v2327, %v2323
        %v2988 = vpack.c.b16 %v2332, %v2328
        %v2989 = vpack.c.b16 %v2333, %v2329
        %v2990 = vpack.c.b16 %v2334, %v2330
        %v2991 = vpack.c.b16 %v2335, %v2331
        %v2992 = vpack.c.b16 %v2340, %v2336
        %v2993 = vpack.c.b16 %v2341, %v2337
        %v2994 = vpack.c.b16 %v2342, %v2338
        %v2995 = vpack.c.b16 %v2343, %v2339
        %v2996 = vpack.c.b16 %v2348, %v2344
        %v2997 = vpack.c.b16 %v2349, %v2345
        %v2998 = vpack.c.b16 %v2350, %v2346
        %v2999 = vpack.c.b16 %v2351, %v2347
        %v3000 = vpack.c.b16 %v2356, %v2352
        %v3001 = vpack.c.b16 %v2357, %v2353
        %v3002 = vpack.c.b16 %v2358, %v2354
        %v3003 = vpack.c.b16 %v2359, %v2355
        %v3004 = vpack.c.b16 %v2364, %v2360
        %v3005 = vpack.c.b16 %v2365, %v2361
        %v3006 = vpack.c.b16 %v2366, %v2362
        %v3007 = vpack.c.b16 %v2367, %v2363
        %v3008 = vpack.c.b16 %v2372, %v2368
        %v3009 = vpack.c.b16 %v2373, %v2369
        %v3010 = vpack.c.b16 %v2374, %v2370
        %v3011 = vpack.c.b16 %v2375, %v2371
        %v3012 = vpack.c.b16 %v2380, %v2376
        %v3013 = vpack.c.b16 %v2381, %v2377
        %v3014 = vpack.c.b16 %v2382, %v2378
        %v3015 = vpack.c.b16 %v2383, %v2379
        %v3016 = vpack.c.b16 %v2388, %v2384
        %v3017 = vpack.c.b16 %v2389, %v2385
        %v3018 = vpack.c.b16 %v2390, %v2386
        %v3019 = vpack.c.b16 %v2391, %v2387
        %v3020 = vpack.c.b16 %v2396, %v2392
        %v3021 = vpack.c.b16 %v2397, %v2393
        %v3022 = vpack.c.b16 %v2398, %v2394
        %v3023 = vpack.c.b16 %v2399, %v2395
        %v3024 = vpack.c.b16 %v2404, %v2400
        %v3025 = vpack.c.b16 %v2405, %v2401
        %v3026 = vpack.c.b16 %v2406, %v2402
        %v3027 = vpack.c.b16 %v2407, %v2403
        %v3028 = vpack.c.b16 %v2412, %v2408
        %v3029 = vpack.c.b16 %v2413, %v2409
        %v3030 = vpack.c.b16 %v2414, %v2410
        %v3031 = vpack.c.b16 %v2415, %v2411
        %v3032 = vpack.c.b16 %v2420, %v2416
        %v3033 = vpack.c.b16 %v2421, %v2417
        %v3034 = vpack.c.b16 %v2422, %v2418
        %v3035 = vpack.c.b16 %v2423, %v2419
        %v3036 = vpack.c.b16 %v2428, %v2424
        %v3037 = vpack.c.b16 %v2429, %v2425
        %v3038 = vpack.c.b16 %v2430, %v2426
        %v3039 = vpack.c.b16 %v2431, %v2427
        %v3040 = vpack.c.b16 %v2436, %v2432
        %v3041 = vpack.c.b16 %v2437, %v2433
        %v3042 = vpack.c.b16 %v2438, %v2434
        %v3043 = vpack.c.b16 %v2439, %v2435
        %v3044 = vpack.c.b16 %v2444, %v2440
        %v3045 = vpack.c.b16 %v2445, %v2441
        %v3046 = vpack.c.b16 %v2446, %v2442
        %v3047 = vpack.c.b16 %v2447, %v2443
        %v3048 = vpack.c.b16 %v2452, %v2448
        %v3049 = vpack.c.b16 %v2453, %v2449
        %v3050 = vpack.c.b16 %v2454, %v2450
        %v3051 = vpack.c.b16 %v2455, %v2451
        %v3052 = vpack.c.b16 %v2460, %v2456
        %v3053 = vpack.c.b16 %v2461, %v2457
        %v3054 = vpack.c.b16 %v2462, %v2458
        %v3055 = vpack.c.b16 %v2463, %v2459
        %v3056 = vpack.c.b16 %v2468, %v2464
        %v3057 = vpack.c.b16 %v2469, %v2465
        %v3058 = vpack.c.b16 %v2470, %v2466
        %v3059 = vpack.c.b16 %v2471, %v2467
        %v3060 = vpack.c.b16 %v2476, %v2472
        %v3061 = vpack.c.b16 %v2477, %v2473
        %v3062 = vpack.c.b16 %v2478, %v2474
        %v3063 = vpack.c.b16 %v2479, %v2475
        %v3064 = vpack.c.b16 %v2484, %v2480
        %v3065 = vpack.c.b16 %v2485, %v2481
        %v3066 = vpack.c.b16 %v2486, %v2482
        %v3067 = vpack.c.b16 %v2487, %v2483
        %v3068 = vpack.c.b16 %v2492, %v2488
        %v3069 = vpack.c.b16 %v2493, %v2489
        %v3070 = vpack.c.b16 %v2494, %v2490
        %v3071 = vpack.c.b16 %v2495, %v2491
        %v3072 = vpack.c.b16 %v2500, %v2496
        %v3073 = vpack.c.b16 %v2501, %v2497
        %v3074 = vpack.c.b16 %v2502, %v2498
        %v3075 = vpack.c.b16 %v2503, %v2499
        %v3076 = vpack.c.b16 %v2508, %v2504
        %v3077 = vpack.c.b16 %v2509, %v2505
        %v3078 = vpack.c.b16 %v2510, %v2506
        %v3079 = vpack.c.b16 %v2511, %v2507
        %v3080 = vpack.c.b16 %v2516, %v2512
        %v3081 = vpack.c.b16 %v2517, %v2513
        %v3082 = vpack.c.b16 %v2518, %v2514
        %v3083 = vpack.c.b16 %v2519, %v2515
        %v3084 = vpack.c.b16 %v2524, %v2520
        %v3085 = vpack.c.b16 %v2525, %v2521
        %v3086 = vpack.c.b16 %v2526, %v2522
        %v3087 = vpack.c.b16 %v2527, %v2523
        %v3088 = vpack.c.b16 %v2532, %v2528
        %v3089 = vpack.c.b16 %v2533, %v2529
        %v3090 = vpack.c.b16 %v2534, %v2530
        %v3091 = vpack.c.b16 %v2535, %v2531
        %v3092 = vpack.c.b16 %v2540, %v2536
        %v3093 = vpack.c.b16 %v2541, %v2537
        %v3094 = vpack.c.b16 %v2542, %v2538
        %v3095 = vpack.c.b16 %v2543, %v2539
        %v3096 = vpack.c.b16 %v2548, %v2544
        %v3097 = vpack.c.b16 %v2549, %v2545
        %v3098 = vpack.c.b16 %v2550, %v2546
        %v3099 = vpack.c.b16 %v2551, %v2547
        %v3100 = vpack.c.b16 %v2556, %v2552
        %v3101 = vpack.c.b16 %v2557, %v2553
        %v3102 = vpack.c.b16 %v2558, %v2554
        %v3103 = vpack.c.b16 %v2559, %v2555
        %v3104 = vpack.c.b16 %v2564, %v2560
        %v3105 = vpack.c.b16 %v2565, %v2561
        %v3106 = vpack.c.b16 %v2566, %v2562
        %v3107 = vpack.c.b16 %v2567, %v2563
        %v3108 = vpack.c.b16 %v2572, %v2568
        %v3109 = vpack.c.b16 %v2573, %v2569
        %v3110 = vpack.c.b16 %v2574, %v2570
        %v3111 = vpack.c.b16 %v2575, %v2571
        %v3112 = vpack.c.b16 %v2580, %v2576
        %v3113 = vpack.c.b16 %v2581, %v2577
        %v3114 = vpack.c.b16 %v2582, %v2578
        %v3115 = vpack.c.b16 %v2583, %v2579
        %v3116 = vpack.c.b16 %v2588, %v2584
        %v3117 = vpack.c.b16 %v2589, %v2585
        %v3118 = vpack.c.b16 %v2590, %v2586
        %v3119 = vpack.c.b16 %v2591, %v2587
        %v3120 = vpack.c.b16 %v2596, %v2592
        %v3121 = vpack.c.b16 %v2597, %v2593
        %v3122 = vpack.c.b16 %v2598, %v2594
        %v3123 = vpack.c.b16 %v2599, %v2595
        %v3124 = vpack.c.b16 %v2604, %v2600
        %v3125 = vpack.c.b16 %v2605, %v2601
        %v3126 = vpack.c.b16 %v2606, %v2602
        %v3127 = vpack.c.b16 %v2607, %v2603
        %v3128 = vpack.c.b16 %v2612, %v2608
        %v3129 = vpack.c.b16 %v2613, %v2609
        %v3130 = vpack.c.b16 %v2614, %v2610
        %v3131 = vpack.c.b16 %v2615, %v2611
        %v3132 = vpack.c.b16 %v2620, %v2616
        %v3133 = vpack.c.b16 %v2621, %v2617
        %v3134 = vpack.c.b16 %v2622, %v2618
        %v3135 = vpack.c.b16 %v2623, %v2619
        %3648 = vmatprep.subr.bf16.mxu0 %v2625
        %3649 = vmatpush1.bf16.msra.mxu0 %v2624
        %3650 = vmatprep.subr.bf16.mxu0 %v2629
        %3651 = vmatpush1.bf16.msra.mxu0 %v2628
        %3652 = vmatprep.subr.bf16.mxu0 %v2633
        %3653 = vmatpush1.bf16.msra.mxu0 %v2632
        %3654 = vmatprep.subr.bf16.mxu0 %v2637
        %3655 = vmatpush1.bf16.msra.mxu0 %v2636
        %3656 = vmatprep.subr.bf16.mxu0 %v2641
        %3657 = vmatpush1.bf16.msra.mxu0 %v2640
        %3658 = vmatprep.subr.bf16.mxu0 %v2645
        %3659 = vmatpush1.bf16.msra.mxu0 %v2644
        %3660 = vmatprep.subr.bf16.mxu0 %v2649
        %3661 = vmatpush1.bf16.msra.mxu0 %v2648
        %3662 = vmatprep.subr.bf16.mxu0 %v2653
        %3663 = vmatpush1.bf16.msra.mxu0 %v2652
        %3664 = vmatprep.subr.bf16.mxu0 %v2657
        %3665 = vmatpush1.bf16.msra.mxu0 %v2656
        %3666 = vmatprep.subr.bf16.mxu0 %v2661
        %3667 = vmatpush1.bf16.msra.mxu0 %v2660
        %3668 = vmatprep.subr.bf16.mxu0 %v2665
        %3669 = vmatpush1.bf16.msra.mxu0 %v2664
        %3670 = vmatprep.subr.bf16.mxu0 %v2669
        %3671 = vmatpush1.bf16.msra.mxu0 %v2668
        %3672 = vmatprep.subr.bf16.mxu0 %v2673
        %3673 = vmatpush1.bf16.msra.mxu0 %v2672
        %3674 = vmatprep.subr.bf16.mxu0 %v2677
        %3675 = vmatpush1.bf16.msra.mxu0 %v2676
        %3676 = vmatprep.subr.bf16.mxu0 %v2681
        %3677 = vmatpush1.bf16.msra.mxu0 %v2680
        %3678 = vmatprep.subr.bf16.mxu0 %v2685
        %3679 = vmatpush1.bf16.msra.mxu0 %v2684
        %3680 = vmatprep.mubr.bf16.mxu0 %v561
        %3681 = vmatmul.mubr.bf16.gmra.mrb[0].mxu0 %v560
        %v3682 = vpop.f32.mrb[0].mxu0
        %v3683 = vadd.f32 0.0, %v3682
        %v3684 = vpop.f32.mrb[0].mxu0
        %v3685 = vadd.f32 0.0, %v3684
        %v3686 = vpop.f32.mrb[0].mxu0
        %v3687 = vpop.f32.mrb[0].mxu0
        %3688 = vdwg.mxu0
        %3689 = vmatprep.subr.bf16.mxu0 %v2689
        %3690 = vmatpush1.bf16.msra.mxu0 %v2688
        %3691 = vmatprep.subr.bf16.mxu0 %v2693
        %3692 = vmatpush1.bf16.msra.mxu0 %v2692
        %3693 = vmatprep.subr.bf16.mxu0 %v2697
        %3694 = vmatpush1.bf16.msra.mxu0 %v2696
        %3695 = vmatprep.subr.bf16.mxu0 %v2701
        %3696 = vmatpush1.bf16.msra.mxu0 %v2700
        %3697 = vmatprep.subr.bf16.mxu0 %v2705
        %3698 = vmatpush1.bf16.msra.mxu0 %v2704
        %3699 = vmatprep.subr.bf16.mxu0 %v2709
        %3700 = vmatpush1.bf16.msra.mxu0 %v2708
        %3701 = vmatprep.subr.bf16.mxu0 %v2713
        %3702 = vmatpush1.bf16.msra.mxu0 %v2712
        %3703 = vmatprep.subr.bf16.mxu0 %v2717
        %3704 = vmatpush1.bf16.msra.mxu0 %v2716
        %3705 = vmatprep.subr.bf16.mxu0 %v2721
        %3706 = vmatpush1.bf16.msra.mxu0 %v2720
        %3707 = vmatprep.subr.bf16.mxu0 %v2725
        %3708 = vmatpush1.bf16.msra.mxu0 %v2724
        %3709 = vmatprep.subr.bf16.mxu0 %v2729
        %3710 = vmatpush1.bf16.msra.mxu0 %v2728
        %3711 = vmatprep.subr.bf16.mxu0 %v2733
        %3712 = vmatpush1.bf16.msra.mxu0 %v2732
        %3713 = vmatprep.subr.bf16.mxu0 %v2737
        %3714 = vmatpush1.bf16.msra.mxu0 %v2736
        %3715 = vmatprep.subr.bf16.mxu0 %v2741
        %3716 = vmatpush1.bf16.msra.mxu0 %v2740
        %3717 = vmatprep.subr.bf16.mxu0 %v2745
        %3718 = vmatpush1.bf16.msra.mxu0 %v2744
        %3719 = vmatprep.subr.bf16.mxu0 %v2749
        %3720 = vmatpush1.bf16.msra.mxu0 %v2748
        %3721 = vmatprep.mubr.bf16.mxu0 %v563
        %3722 = vmatmul.mubr.bf16.gmra.mrb[0].mxu0 %v562
        %v3723 = vpop.f32.mrb[0].mxu0
        %v3724 = vadd.f32 %v3683, %v3723
        %v3725 = vpop.f32.mrb[0].mxu0
        %v3726 = vadd.f32 %v3685, %v3725
        %v3727 = vpop.f32.mrb[0].mxu0
        %v3728 = vpop.f32.mrb[0].mxu0
        %3729 = vdwg.mxu0
        %3730 = vmatprep.subr.bf16.mxu0 %v2753
        %3731 = vmatpush1.bf16.msra.mxu0 %v2752
        %3732 = vmatprep.subr.bf16.mxu0 %v2757
        %3733 = vmatpush1.bf16.msra.mxu0 %v2756
        %3734 = vmatprep.subr.bf16.mxu0 %v2761
        %3735 = vmatpush1.bf16.msra.mxu0 %v2760
        %3736 = vmatprep.subr.bf16.mxu0 %v2765
        %3737 = vmatpush1.bf16.msra.mxu0 %v2764
        %3738 = vmatprep.subr.bf16.mxu0 %v2769
        %3739 = vmatpush1.bf16.msra.mxu0 %v2768
        %3740 = vmatprep.subr.bf16.mxu0 %v2773
        %3741 = vmatpush1.bf16.msra.mxu0 %v2772
        %3742 = vmatprep.subr.bf16.mxu0 %v2777
        %3743 = vmatpush1.bf16.msra.mxu0 %v2776
        %3744 = vmatprep.subr.bf16.mxu0 %v2781
        %3745 = vmatpush1.bf16.msra.mxu0 %v2780
        %3746 = vmatprep.subr.bf16.mxu0 %v2785
        %3747 = vmatpush1.bf16.msra.mxu0 %v2784
        %3748 = vmatprep.subr.bf16.mxu0 %v2789
        %3749 = vmatpush1.bf16.msra.mxu0 %v2788
        %3750 = vmatprep.subr.bf16.mxu0 %v2793
        %3751 = vmatpush1.bf16.msra.mxu0 %v2792
        %3752 = vmatprep.subr.bf16.mxu0 %v2797
        %3753 = vmatpush1.bf16.msra.mxu0 %v2796
        %3754 = vmatprep.subr.bf16.mxu0 %v2801
        %3755 = vmatpush1.bf16.msra.mxu0 %v2800
        %3756 = vmatprep.subr.bf16.mxu0 %v2805
        %3757 = vmatpush1.bf16.msra.mxu0 %v2804
        %3758 = vmatprep.subr.bf16.mxu0 %v2809
        %3759 = vmatpush1.bf16.msra.mxu0 %v2808
        %3760 = vmatprep.subr.bf16.mxu0 %v2813
        %3761 = vmatpush1.bf16.msra.mxu0 %v2812
        %3762 = vmatprep.mubr.bf16.mxu0 %v565
        %3763 = vmatmul.mubr.bf16.gmra.mrb[0].mxu0 %v564
        %v3764 = vpop.f32.mrb[0].mxu0
        %v3765 = vadd.f32 %v3724, %v3764
        %v3766 = vpop.f32.mrb[0].mxu0
        %v3767 = vadd.f32 %v3726, %v3766
        %v3768 = vpop.f32.mrb[0].mxu0
        %v3769 = vpop.f32.mrb[0].mxu0
        %3770 = vdwg.mxu0
        %3771 = vmatprep.subr.bf16.mxu0 %v2817
        %3772 = vmatpush1.bf16.msra.mxu0 %v2816
        %3773 = vmatprep.subr.bf16.mxu0 %v2821
        %3774 = vmatpush1.bf16.msra.mxu0 %v2820
        %3775 = vmatprep.subr.bf16.mxu0 %v2825
        %3776 = vmatpush1.bf16.msra.mxu0 %v2824
        %3777 = vmatprep.subr.bf16.mxu0 %v2829
        %3778 = vmatpush1.bf16.msra.mxu0 %v2828
        %3779 = vmatprep.subr.bf16.mxu0 %v2833
        %3780 = vmatpush1.bf16.msra.mxu0 %v2832
        %3781 = vmatprep.subr.bf16.mxu0 %v2837
        %3782 = vmatpush1.bf16.msra.mxu0 %v2836
        %3783 = vmatprep.subr.bf16.mxu0 %v2841
        %3784 = vmatpush1.bf16.msra.mxu0 %v2840
        %3785 = vmatprep.subr.bf16.mxu0 %v2845
        %3786 = vmatpush1.bf16.msra.mxu0 %v2844
        %3787 = vmatprep.subr.bf16.mxu0 %v2849
        %3788 = vmatpush1.bf16.msra.mxu0 %v2848
        %3789 = vmatprep.subr.bf16.mxu0 %v2853
        %3790 = vmatpush1.bf16.msra.mxu0 %v2852
        %3791 = vmatprep.subr.bf16.mxu0 %v2857
        %3792 = vmatpush1.bf16.msra.mxu0 %v2856
        %3793 = vmatprep.subr.bf16.mxu0 %v2861
        %3794 = vmatpush1.bf16.msra.mxu0 %v2860
        %3795 = vmatprep.subr.bf16.mxu0 %v2865
        %3796 = vmatpush1.bf16.msra.mxu0 %v2864
        %3797 = vmatprep.subr.bf16.mxu0 %v2869
        %3798 = vmatpush1.bf16.msra.mxu0 %v2868
        %3799 = vmatprep.subr.bf16.mxu0 %v2873
        %3800 = vmatpush1.bf16.msra.mxu0 %v2872
        %3801 = vmatprep.subr.bf16.mxu0 %v2877
        %3802 = vmatpush1.bf16.msra.mxu0 %v2876
        %3803 = vmatprep.mubr.bf16.mxu0 %v567
        %3804 = vmatmul.mubr.bf16.gmra.mrb[0].mxu0 %v566
        %v3805 = vpop.f32.mrb[0].mxu0
        %v3806 = vadd.f32 %v3765, %v3805
        %v3807 = vpop.f32.mrb[0].mxu0
        %v3808 = vadd.f32 %v3767, %v3807
        %v3809 = vpop.f32.mrb[0].mxu0
        %v3810 = vpop.f32.mrb[0].mxu0
        %3811 = vdwg.mxu0
        %3812 = vmatprep.subr.bf16.mxu0 %v2881
        %3813 = vmatpush1.bf16.msra.mxu0 %v2880
        %3814 = vmatprep.subr.bf16.mxu0 %v2885
        %3815 = vmatpush1.bf16.msra.mxu0 %v2884
        %3816 = vmatprep.subr.bf16.mxu0 %v2889
        %3817 = vmatpush1.bf16.msra.mxu0 %v2888
        %3818 = vmatprep.subr.bf16.mxu0 %v2893
        %3819 = vmatpush1.bf16.msra.mxu0 %v2892
        %3820 = vmatprep.subr.bf16.mxu0 %v2897
        %3821 = vmatpush1.bf16.msra.mxu0 %v2896
        %3822 = vmatprep.subr.bf16.mxu0 %v2901
        %3823 = vmatpush1.bf16.msra.mxu0 %v2900
        %3824 = vmatprep.subr.bf16.mxu0 %v2905
        %3825 = vmatpush1.bf16.msra.mxu0 %v2904
        %3826 = vmatprep.subr.bf16.mxu0 %v2909
        %3827 = vmatpush1.bf16.msra.mxu0 %v2908
        %3828 = vmatprep.subr.bf16.mxu0 %v2913
        %3829 = vmatpush1.bf16.msra.mxu0 %v2912
        %3830 = vmatprep.subr.bf16.mxu0 %v2917
        %3831 = vmatpush1.bf16.msra.mxu0 %v2916
        %3832 = vmatprep.subr.bf16.mxu0 %v2921
        %3833 = vmatpush1.bf16.msra.mxu0 %v2920
        %3834 = vmatprep.subr.bf16.mxu0 %v2925
        %3835 = vmatpush1.bf16.msra.mxu0 %v2924
        %3836 = vmatprep.subr.bf16.mxu0 %v2929
        %3837 = vmatpush1.bf16.msra.mxu0 %v2928
        %3838 = vmatprep.subr.bf16.mxu0 %v2933
        %3839 = vmatpush1.bf16.msra.mxu0 %v2932
        %3840 = vmatprep.subr.bf16.mxu0 %v2937
        %3841 = vmatpush1.bf16.msra.mxu0 %v2936
        %3842 = vmatprep.subr.bf16.mxu0 %v2941
        %3843 = vmatpush1.bf16.msra.mxu0 %v2940
        %3844 = vmatprep.mubr.bf16.mxu0 %v569
        %3845 = vmatmul.mubr.bf16.gmra.mrb[0].mxu0 %v568
        %v3846 = vpop.f32.mrb[0].mxu0
        %v3847 = vadd.f32 %v3806, %v3846
        %v3848 = vpop.f32.mrb[0].mxu0
        %v3849 = vadd.f32 %v3808, %v3848
        %v3850 = vpop.f32.mrb[0].mxu0
        %v3851 = vpop.f32.mrb[0].mxu0
        %3852 = vdwg.mxu0
        %3853 = vmatprep.subr.bf16.mxu0 %v2945
        %3854 = vmatpush1.bf16.msra.mxu0 %v2944
        %3855 = vmatprep.subr.bf16.mxu0 %v2949
        %3856 = vmatpush1.bf16.msra.mxu0 %v2948
        %3857 = vmatprep.subr.bf16.mxu0 %v2953
        %3858 = vmatpush1.bf16.msra.mxu0 %v2952
        %3859 = vmatprep.subr.bf16.mxu0 %v2957
        %3860 = vmatpush1.bf16.msra.mxu0 %v2956
        %3861 = vmatprep.subr.bf16.mxu0 %v2961
        %3862 = vmatpush1.bf16.msra.mxu0 %v2960
        %3863 = vmatprep.subr.bf16.mxu0 %v2965
        %3864 = vmatpush1.bf16.msra.mxu0 %v2964
        %3865 = vmatprep.subr.bf16.mxu0 %v2969
        %3866 = vmatpush1.bf16.msra.mxu0 %v2968
        %3867 = vmatprep.subr.bf16.mxu0 %v2973
        %3868 = vmatpush1.bf16.msra.mxu0 %v2972
        %3869 = vmatprep.subr.bf16.mxu0 %v2977
        %3870 = vmatpush1.bf16.msra.mxu0 %v2976
        %3871 = vmatprep.subr.bf16.mxu0 %v2981
        %3872 = vmatpush1.bf16.msra.mxu0 %v2980
        %3873 = vmatprep.subr.bf16.mxu0 %v2985
        %3874 = vmatpush1.bf16.msra.mxu0 %v2984
        %3875 = vmatprep.subr.bf16.mxu0 %v2989
        %3876 = vmatpush1.bf16.msra.mxu0 %v2988
        %3877 = vmatprep.subr.bf16.mxu0 %v2993
        %3878 = vmatpush1.bf16.msra.mxu0 %v2992
        %3879 = vmatprep.subr.bf16.mxu0 %v2997
        %3880 = vmatpush1.bf16.msra.mxu0 %v2996
        %3881 = vmatprep.subr.bf16.mxu0 %v3001
        %3882 = vmatpush1.bf16.msra.mxu0 %v3000
        %3883 = vmatprep.subr.bf16.mxu0 %v3005
        %3884 = vmatpush1.bf16.msra.mxu0 %v3004
        %3885 = vmatprep.mubr.bf16.mxu0 %v571
        %3886 = vmatmul.mubr.bf16.gmra.mrb[0].mxu0 %v570
        %v3887 = vpop.f32.mrb[0].mxu0
        %v3888 = vadd.f32 %v3847, %v3887
        %v3889 = vpop.f32.mrb[0].mxu0
        %v3890 = vadd.f32 %v3849, %v3889
        %v3891 = vpop.f32.mrb[0].mxu0
        %v3892 = vpop.f32.mrb[0].mxu0
        %3893 = vdwg.mxu0
        %3894 = vmatprep.subr.bf16.mxu0 %v3009
        %3895 = vmatpush1.bf16.msra.mxu0 %v3008
        %3896 = vmatprep.subr.bf16.mxu0 %v3013
        %3897 = vmatpush1.bf16.msra.mxu0 %v3012
        %3898 = vmatprep.subr.bf16.mxu0 %v3017
        %3899 = vmatpush1.bf16.msra.mxu0 %v3016
        %3900 = vmatprep.subr.bf16.mxu0 %v3021
        %3901 = vmatpush1.bf16.msra.mxu0 %v3020
        %3902 = vmatprep.subr.bf16.mxu0 %v3025
        %3903 = vmatpush1.bf16.msra.mxu0 %v3024
        %3904 = vmatprep.subr.bf16.mxu0 %v3029
        %3905 = vmatpush1.bf16.msra.mxu0 %v3028
        %3906 = vmatprep.subr.bf16.mxu0 %v3033
        %3907 = vmatpush1.bf16.msra.mxu0 %v3032
        %3908 = vmatprep.subr.bf16.mxu0 %v3037
        %3909 = vmatpush1.bf16.msra.mxu0 %v3036
        %3910 = vmatprep.subr.bf16.mxu0 %v3041
        %3911 = vmatpush1.bf16.msra.mxu0 %v3040
        %3912 = vmatprep.subr.bf16.mxu0 %v3045
        %3913 = vmatpush1.bf16.msra.mxu0 %v3044
        %3914 = vmatprep.subr.bf16.mxu0 %v3049
        %3915 = vmatpush1.bf16.msra.mxu0 %v3048
        %3916 = vmatprep.subr.bf16.mxu0 %v3053
        %3917 = vmatpush1.bf16.msra.mxu0 %v3052
        %3918 = vmatprep.subr.bf16.mxu0 %v3057
        %3919 = vmatpush1.bf16.msra.mxu0 %v3056
        %3920 = vmatprep.subr.bf16.mxu0 %v3061
        %3921 = vmatpush1.bf16.msra.mxu0 %v3060
        %3922 = vmatprep.subr.bf16.mxu0 %v3065
        %3923 = vmatpush1.bf16.msra.mxu0 %v3064
        %3924 = vmatprep.subr.bf16.mxu0 %v3069
        %3925 = vmatpush1.bf16.msra.mxu0 %v3068
        %3926 = vmatprep.mubr.bf16.mxu0 %v573
        %3927 = vmatmul.mubr.bf16.gmra.mrb[0].mxu0 %v572
        %v3928 = vpop.f32.mrb[0].mxu0
        %v3929 = vadd.f32 %v3888, %v3928
        %v3930 = vpop.f32.mrb[0].mxu0
        %v3931 = vadd.f32 %v3890, %v3930
        %v3932 = vpop.f32.mrb[0].mxu0
        %v3933 = vpop.f32.mrb[0].mxu0
        %3934 = vdwg.mxu0
        %3935 = vmatprep.subr.bf16.mxu0 %v3073
        %3936 = vmatpush1.bf16.msra.mxu0 %v3072
        %3937 = vmatprep.subr.bf16.mxu0 %v3077
        %3938 = vmatpush1.bf16.msra.mxu0 %v3076
        %3939 = vmatprep.subr.bf16.mxu0 %v3081
        %3940 = vmatpush1.bf16.msra.mxu0 %v3080
        %3941 = vmatprep.subr.bf16.mxu0 %v3085
        %3942 = vmatpush1.bf16.msra.mxu0 %v3084
        %3943 = vmatprep.subr.bf16.mxu0 %v3089
        %3944 = vmatpush1.bf16.msra.mxu0 %v3088
        %3945 = vmatprep.subr.bf16.mxu0 %v3093
        %3946 = vmatpush1.bf16.msra.mxu0 %v3092
        %3947 = vmatprep.subr.bf16.mxu0 %v3097
        %3948 = vmatpush1.bf16.msra.mxu0 %v3096
        %3949 = vmatprep.subr.bf16.mxu0 %v3101
        %3950 = vmatpush1.bf16.msra.mxu0 %v3100
        %3951 = vmatprep.subr.bf16.mxu0 %v3105
        %3952 = vmatpush1.bf16.msra.mxu0 %v3104
        %3953 = vmatprep.subr.bf16.mxu0 %v3109
        %3954 = vmatpush1.bf16.msra.mxu0 %v3108
        %3955 = vmatprep.subr.bf16.mxu0 %v3113
        %3956 = vmatpush1.bf16.msra.mxu0 %v3112
        %3957 = vmatprep.subr.bf16.mxu0 %v3117
        %3958 = vmatpush1.bf16.msra.mxu0 %v3116
        %3959 = vmatprep.subr.bf16.mxu0 %v3121
        %3960 = vmatpush1.bf16.msra.mxu0 %v3120
        %3961 = vmatprep.subr.bf16.mxu0 %v3125
        %3962 = vmatpush1.bf16.msra.mxu0 %v3124
        %3963 = vmatprep.subr.bf16.mxu0 %v3129
        %3964 = vmatpush1.bf16.msra.mxu0 %v3128
        %3965 = vmatprep.subr.bf16.mxu0 %v3133
        %3966 = vmatpush1.bf16.msra.mxu0 %v3132
        %3967 = vmatprep.mubr.bf16.mxu0 %v575
        %3968 = vmatmul.mubr.bf16.gmra.mrb[0].mxu0 %v574
        %v3969 = vpop.f32.mrb[0].mxu0
        %v3970 = vadd.f32 %v3929, %v3969
        %v3971 = vpop.f32.mrb[0].mxu0
        %v3972 = vadd.f32 %v3931, %v3971
        %v3973 = vpop.f32.mrb[0].mxu0
        %v3974 = vpop.f32.mrb[0].mxu0
        %3975 = vdwg.mxu0
        %3976 = vmatprep.subr.bf16.mxu0 %v2627
        %3977 = vmatpush1.bf16.msra.mxu0 %v2626
        %3978 = vmatprep.subr.bf16.mxu0 %v2631
        %3979 = vmatpush1.bf16.msra.mxu0 %v2630
        %3980 = vmatprep.subr.bf16.mxu0 %v2635
        %3981 = vmatpush1.bf16.msra.mxu0 %v2634
        %3982 = vmatprep.subr.bf16.mxu0 %v2639
        %3983 = vmatpush1.bf16.msra.mxu0 %v2638
        %3984 = vmatprep.subr.bf16.mxu0 %v2643
        %3985 = vmatpush1.bf16.msra.mxu0 %v2642
        %3986 = vmatprep.subr.bf16.mxu0 %v2647
        %3987 = vmatpush1.bf16.msra.mxu0 %v2646
        %3988 = vmatprep.subr.bf16.mxu0 %v2651
        %3989 = vmatpush1.bf16.msra.mxu0 %v2650
        %3990 = vmatprep.subr.bf16.mxu0 %v2655
        %3991 = vmatpush1.bf16.msra.mxu0 %v2654
        %3992 = vmatprep.subr.bf16.mxu0 %v2659
        %3993 = vmatpush1.bf16.msra.mxu0 %v2658
        %3994 = vmatprep.subr.bf16.mxu0 %v2663
        %3995 = vmatpush1.bf16.msra.mxu0 %v2662
        %3996 = vmatprep.subr.bf16.mxu0 %v2667
        %3997 = vmatpush1.bf16.msra.mxu0 %v2666
        %3998 = vmatprep.subr.bf16.mxu0 %v2671
        %3999 = vmatpush1.bf16.msra.mxu0 %v2670
        %4000 = vmatprep.subr.bf16.mxu0 %v2675
        %4001 = vmatpush1.bf16.msra.mxu0 %v2674
        %4002 = vmatprep.subr.bf16.mxu0 %v2679
        %4003 = vmatpush1.bf16.msra.mxu0 %v2678
        %4004 = vmatprep.subr.bf16.mxu0 %v2683
        %4005 = vmatpush1.bf16.msra.mxu0 %v2682
        %4006 = vmatprep.subr.bf16.mxu0 %v2687
        %4007 = vmatpush1.bf16.msra.mxu0 %v2686
        %4008 = vmatprep.mubr.bf16.mxu0 %v561
        %4009 = vmatmul.mubr.bf16.gmra.mrb[0].mxu0 %v560
        %v4010 = vpop.f32.mrb[0].mxu0
        %v4011 = vadd.f32 0.0, %v4010
        %v4012 = vpop.f32.mrb[0].mxu0
        %v4013 = vadd.f32 0.0, %v4012
        %v4014 = vpop.f32.mrb[0].mxu0
        %v4015 = vpop.f32.mrb[0].mxu0
        %4016 = vdwg.mxu0
        %4017 = vmatprep.subr.bf16.mxu0 %v2691
        %4018 = vmatpush1.bf16.msra.mxu0 %v2690
        %4019 = vmatprep.subr.bf16.mxu0 %v2695
        %4020 = vmatpush1.bf16.msra.mxu0 %v2694
        %4021 = vmatprep.subr.bf16.mxu0 %v2699
        %4022 = vmatpush1.bf16.msra.mxu0 %v2698
        %4023 = vmatprep.subr.bf16.mxu0 %v2703
        %4024 = vmatpush1.bf16.msra.mxu0 %v2702
        %4025 = vmatprep.subr.bf16.mxu0 %v2707
        %4026 = vmatpush1.bf16.msra.mxu0 %v2706
        %4027 = vmatprep.subr.bf16.mxu0 %v2711
        %4028 = vmatpush1.bf16.msra.mxu0 %v2710
        %4029 = vmatprep.subr.bf16.mxu0 %v2715
        %4030 = vmatpush1.bf16.msra.mxu0 %v2714
        %4031 = vmatprep.subr.bf16.mxu0 %v2719
        %4032 = vmatpush1.bf16.msra.mxu0 %v2718
        %4033 = vmatprep.subr.bf16.mxu0 %v2723
        %4034 = vmatpush1.bf16.msra.mxu0 %v2722
        %4035 = vmatprep.subr.bf16.mxu0 %v2727
        %4036 = vmatpush1.bf16.msra.mxu0 %v2726
        %4037 = vmatprep.subr.bf16.mxu0 %v2731
        %4038 = vmatpush1.bf16.msra.mxu0 %v2730
        %4039 = vmatprep.subr.bf16.mxu0 %v2735
        %4040 = vmatpush1.bf16.msra.mxu0 %v2734
        %4041 = vmatprep.subr.bf16.mxu0 %v2739
        %4042 = vmatpush1.bf16.msra.mxu0 %v2738
        %4043 = vmatprep.subr.bf16.mxu0 %v2743
        %4044 = vmatpush1.bf16.msra.mxu0 %v2742
        %4045 = vmatprep.subr.bf16.mxu0 %v2747
        %4046 = vmatpush1.bf16.msra.mxu0 %v2746
        %4047 = vmatprep.subr.bf16.mxu0 %v2751
        %4048 = vmatpush1.bf16.msra.mxu0 %v2750
        %4049 = vmatprep.mubr.bf16.mxu0 %v563
        %4050 = vmatmul.mubr.bf16.gmra.mrb[0].mxu0 %v562
        %v4051 = vpop.f32.mrb[0].mxu0
        %v4052 = vadd.f32 %v4011, %v4051
        %v4053 = vpop.f32.mrb[0].mxu0
        %v4054 = vadd.f32 %v4013, %v4053
        %v4055 = vpop.f32.mrb[0].mxu0
        %v4056 = vpop.f32.mrb[0].mxu0
        %4057 = vdwg.mxu0
        %4058 = vmatprep.subr.bf16.mxu0 %v2755
        %4059 = vmatpush1.bf16.msra.mxu0 %v2754
        %4060 = vmatprep.subr.bf16.mxu0 %v2759
        %4061 = vmatpush1.bf16.msra.mxu0 %v2758
        %4062 = vmatprep.subr.bf16.mxu0 %v2763
        %4063 = vmatpush1.bf16.msra.mxu0 %v2762
        %4064 = vmatprep.subr.bf16.mxu0 %v2767
        %4065 = vmatpush1.bf16.msra.mxu0 %v2766
        %4066 = vmatprep.subr.bf16.mxu0 %v2771
        %4067 = vmatpush1.bf16.msra.mxu0 %v2770
        %4068 = vmatprep.subr.bf16.mxu0 %v2775
        %4069 = vmatpush1.bf16.msra.mxu0 %v2774
        %4070 = vmatprep.subr.bf16.mxu0 %v2779
        %4071 = vmatpush1.bf16.msra.mxu0 %v2778
        %4072 = vmatprep.subr.bf16.mxu0 %v2783
        %4073 = vmatpush1.bf16.msra.mxu0 %v2782
        %4074 = vmatprep.subr.bf16.mxu0 %v2787
        %4075 = vmatpush1.bf16.msra.mxu0 %v2786
        %4076 = vmatprep.subr.bf16.mxu0 %v2791
        %4077 = vmatpush1.bf16.msra.mxu0 %v2790
        %4078 = vmatprep.subr.bf16.mxu0 %v2795
        %4079 = vmatpush1.bf16.msra.mxu0 %v2794
        %4080 = vmatprep.subr.bf16.mxu0 %v2799
        %4081 = vmatpush1.bf16.msra.mxu0 %v2798
        %4082 = vmatprep.subr.bf16.mxu0 %v2803
        %4083 = vmatpush1.bf16.msra.mxu0 %v2802
        %4084 = vmatprep.subr.bf16.mxu0 %v2807
        %4085 = vmatpush1.bf16.msra.mxu0 %v2806
        %4086 = vmatprep.subr.bf16.mxu0 %v2811
        %4087 = vmatpush1.bf16.msra.mxu0 %v2810
        %4088 = vmatprep.subr.bf16.mxu0 %v2815
        %4089 = vmatpush1.bf16.msra.mxu0 %v2814
        %4090 = vmatprep.mubr.bf16.mxu0 %v565
        %4091 = vmatmul.mubr.bf16.gmra.mrb[0].mxu0 %v564
        %v4092 = vpop.f32.mrb[0].mxu0
        %v4093 = vadd.f32 %v4052, %v4092
        %v4094 = vpop.f32.mrb[0].mxu0
        %v4095 = vadd.f32 %v4054, %v4094
        %v4096 = vpop.f32.mrb[0].mxu0
        %v4097 = vpop.f32.mrb[0].mxu0
        %4098 = vdwg.mxu0
        %4099 = vmatprep.subr.bf16.mxu0 %v2819
        %4100 = vmatpush1.bf16.msra.mxu0 %v2818
        %4101 = vmatprep.subr.bf16.mxu0 %v2823
        %4102 = vmatpush1.bf16.msra.mxu0 %v2822
        %4103 = vmatprep.subr.bf16.mxu0 %v2827
        %4104 = vmatpush1.bf16.msra.mxu0 %v2826
        %4105 = vmatprep.subr.bf16.mxu0 %v2831
        %4106 = vmatpush1.bf16.msra.mxu0 %v2830
        %4107 = vmatprep.subr.bf16.mxu0 %v2835
        %4108 = vmatpush1.bf16.msra.mxu0 %v2834
        %4109 = vmatprep.subr.bf16.mxu0 %v2839
        %4110 = vmatpush1.bf16.msra.mxu0 %v2838
        %4111 = vmatprep.subr.bf16.mxu0 %v2843
        %4112 = vmatpush1.bf16.msra.mxu0 %v2842
        %4113 = vmatprep.subr.bf16.mxu0 %v2847
        %4114 = vmatpush1.bf16.msra.mxu0 %v2846
        %4115 = vmatprep.subr.bf16.mxu0 %v2851
        %4116 = vmatpush1.bf16.msra.mxu0 %v2850
        %4117 = vmatprep.subr.bf16.mxu0 %v2855
        %4118 = vmatpush1.bf16.msra.mxu0 %v2854
        %4119 = vmatprep.subr.bf16.mxu0 %v2859
        %4120 = vmatpush1.bf16.msra.mxu0 %v2858
        %4121 = vmatprep.subr.bf16.mxu0 %v2863
        %4122 = vmatpush1.bf16.msra.mxu0 %v2862
        %4123 = vmatprep.subr.bf16.mxu0 %v2867
        %4124 = vmatpush1.bf16.msra.mxu0 %v2866
        %4125 = vmatprep.subr.bf16.mxu0 %v2871
        %4126 = vmatpush1.bf16.msra.mxu0 %v2870
        %4127 = vmatprep.subr.bf16.mxu0 %v2875
        %4128 = vmatpush1.bf16.msra.mxu0 %v2874
        %4129 = vmatprep.subr.bf16.mxu0 %v2879
        %4130 = vmatpush1.bf16.msra.mxu0 %v2878
        %4131 = vmatprep.mubr.bf16.mxu0 %v567
        %4132 = vmatmul.mubr.bf16.gmra.mrb[0].mxu0 %v566
        %v4133 = vpop.f32.mrb[0].mxu0
        %v4134 = vadd.f32 %v4093, %v4133
        %v4135 = vpop.f32.mrb[0].mxu0
        %v4136 = vadd.f32 %v4095, %v4135
        %v4137 = vpop.f32.mrb[0].mxu0
        %v4138 = vpop.f32.mrb[0].mxu0
        %4139 = vdwg.mxu0
        %4140 = vmatprep.subr.bf16.mxu0 %v2883
        %4141 = vmatpush1.bf16.msra.mxu0 %v2882
        %4142 = vmatprep.subr.bf16.mxu0 %v2887
        %4143 = vmatpush1.bf16.msra.mxu0 %v2886
        %4144 = vmatprep.subr.bf16.mxu0 %v2891
        %4145 = vmatpush1.bf16.msra.mxu0 %v2890
        %4146 = vmatprep.subr.bf16.mxu0 %v2895
        %4147 = vmatpush1.bf16.msra.mxu0 %v2894
        %4148 = vmatprep.subr.bf16.mxu0 %v2899
        %4149 = vmatpush1.bf16.msra.mxu0 %v2898
        %4150 = vmatprep.subr.bf16.mxu0 %v2903
        %4151 = vmatpush1.bf16.msra.mxu0 %v2902
        %4152 = vmatprep.subr.bf16.mxu0 %v2907
        %4153 = vmatpush1.bf16.msra.mxu0 %v2906
        %4154 = vmatprep.subr.bf16.mxu0 %v2911
        %4155 = vmatpush1.bf16.msra.mxu0 %v2910
        %4156 = vmatprep.subr.bf16.mxu0 %v2915
        %4157 = vmatpush1.bf16.msra.mxu0 %v2914
        %4158 = vmatprep.subr.bf16.mxu0 %v2919
        %4159 = vmatpush1.bf16.msra.mxu0 %v2918
        %4160 = vmatprep.subr.bf16.mxu0 %v2923
        %4161 = vmatpush1.bf16.msra.mxu0 %v2922
        %4162 = vmatprep.subr.bf16.mxu0 %v2927
        %4163 = vmatpush1.bf16.msra.mxu0 %v2926
        %4164 = vmatprep.subr.bf16.mxu0 %v2931
        %4165 = vmatpush1.bf16.msra.mxu0 %v2930
        %4166 = vmatprep.subr.bf16.mxu0 %v2935
        %4167 = vmatpush1.bf16.msra.mxu0 %v2934
        %4168 = vmatprep.subr.bf16.mxu0 %v2939
        %4169 = vmatpush1.bf16.msra.mxu0 %v2938
        %4170 = vmatprep.subr.bf16.mxu0 %v2943
        %4171 = vmatpush1.bf16.msra.mxu0 %v2942
        %4172 = vmatprep.mubr.bf16.mxu0 %v569
        %4173 = vmatmul.mubr.bf16.gmra.mrb[0].mxu0 %v568
        %v4174 = vpop.f32.mrb[0].mxu0
        %v4175 = vadd.f32 %v4134, %v4174
        %v4176 = vpop.f32.mrb[0].mxu0
        %v4177 = vadd.f32 %v4136, %v4176
        %v4178 = vpop.f32.mrb[0].mxu0
        %v4179 = vpop.f32.mrb[0].mxu0
        %4180 = vdwg.mxu0
        %4181 = vmatprep.subr.bf16.mxu0 %v2947
        %4182 = vmatpush1.bf16.msra.mxu0 %v2946
        %4183 = vmatprep.subr.bf16.mxu0 %v2951
        %4184 = vmatpush1.bf16.msra.mxu0 %v2950
        %4185 = vmatprep.subr.bf16.mxu0 %v2955
        %4186 = vmatpush1.bf16.msra.mxu0 %v2954
        %4187 = vmatprep.subr.bf16.mxu0 %v2959
        %4188 = vmatpush1.bf16.msra.mxu0 %v2958
        %4189 = vmatprep.subr.bf16.mxu0 %v2963
        %4190 = vmatpush1.bf16.msra.mxu0 %v2962
        %4191 = vmatprep.subr.bf16.mxu0 %v2967
        %4192 = vmatpush1.bf16.msra.mxu0 %v2966
        %4193 = vmatprep.subr.bf16.mxu0 %v2971
        %4194 = vmatpush1.bf16.msra.mxu0 %v2970
        %4195 = vmatprep.subr.bf16.mxu0 %v2975
        %4196 = vmatpush1.bf16.msra.mxu0 %v2974
        %4197 = vmatprep.subr.bf16.mxu0 %v2979
        %4198 = vmatpush1.bf16.msra.mxu0 %v2978
        %4199 = vmatprep.subr.bf16.mxu0 %v2983
        %4200 = vmatpush1.bf16.msra.mxu0 %v2982
        %4201 = vmatprep.subr.bf16.mxu0 %v2987
        %4202 = vmatpush1.bf16.msra.mxu0 %v2986
        %4203 = vmatprep.subr.bf16.mxu0 %v2991
        %4204 = vmatpush1.bf16.msra.mxu0 %v2990
        %4205 = vmatprep.subr.bf16.mxu0 %v2995
        %4206 = vmatpush1.bf16.msra.mxu0 %v2994
        %4207 = vmatprep.subr.bf16.mxu0 %v2999
        %4208 = vmatpush1.bf16.msra.mxu0 %v2998
        %4209 = vmatprep.subr.bf16.mxu0 %v3003
        %4210 = vmatpush1.bf16.msra.mxu0 %v3002
        %4211 = vmatprep.subr.bf16.mxu0 %v3007
        %4212 = vmatpush1.bf16.msra.mxu0 %v3006
        %4213 = vmatprep.mubr.bf16.mxu0 %v571
        %4214 = vmatmul.mubr.bf16.gmra.mrb[0].mxu0 %v570
        %v4215 = vpop.f32.mrb[0].mxu0
        %v4216 = vadd.f32 %v4175, %v4215
        %v4217 = vpop.f32.mrb[0].mxu0
        %v4218 = vadd.f32 %v4177, %v4217
        %v4219 = vpop.f32.mrb[0].mxu0
        %v4220 = vpop.f32.mrb[0].mxu0
        %4221 = vdwg.mxu0
        %4222 = vmatprep.subr.bf16.mxu0 %v3011
        %4223 = vmatpush1.bf16.msra.mxu0 %v3010
        %4224 = vmatprep.subr.bf16.mxu0 %v3015
        %4225 = vmatpush1.bf16.msra.mxu0 %v3014
        %4226 = vmatprep.subr.bf16.mxu0 %v3019
        %4227 = vmatpush1.bf16.msra.mxu0 %v3018
        %4228 = vmatprep.subr.bf16.mxu0 %v3023
        %4229 = vmatpush1.bf16.msra.mxu0 %v3022
        %4230 = vmatprep.subr.bf16.mxu0 %v3027
        %4231 = vmatpush1.bf16.msra.mxu0 %v3026
        %4232 = vmatprep.subr.bf16.mxu0 %v3031
        %4233 = vmatpush1.bf16.msra.mxu0 %v3030
        %4234 = vmatprep.subr.bf16.mxu0 %v3035
        %4235 = vmatpush1.bf16.msra.mxu0 %v3034
        %4236 = vmatprep.subr.bf16.mxu0 %v3039
        %4237 = vmatpush1.bf16.msra.mxu0 %v3038
        %4238 = vmatprep.subr.bf16.mxu0 %v3043
        %4239 = vmatpush1.bf16.msra.mxu0 %v3042
        %4240 = vmatprep.subr.bf16.mxu0 %v3047
        %4241 = vmatpush1.bf16.msra.mxu0 %v3046
        %4242 = vmatprep.subr.bf16.mxu0 %v3051
        %4243 = vmatpush1.bf16.msra.mxu0 %v3050
        %4244 = vmatprep.subr.bf16.mxu0 %v3055
        %4245 = vmatpush1.bf16.msra.mxu0 %v3054
        %4246 = vmatprep.subr.bf16.mxu0 %v3059
        %4247 = vmatpush1.bf16.msra.mxu0 %v3058
        %4248 = vmatprep.subr.bf16.mxu0 %v3063
        %4249 = vmatpush1.bf16.msra.mxu0 %v3062
        %4250 = vmatprep.subr.bf16.mxu0 %v3067
        %4251 = vmatpush1.bf16.msra.mxu0 %v3066
        %4252 = vmatprep.subr.bf16.mxu0 %v3071
        %4253 = vmatpush1.bf16.msra.mxu0 %v3070
        %4254 = vmatprep.mubr.bf16.mxu0 %v573
        %4255 = vmatmul.mubr.bf16.gmra.mrb[0].mxu0 %v572
        %v4256 = vpop.f32.mrb[0].mxu0
        %v4257 = vadd.f32 %v4216, %v4256
        %v4258 = vpop.f32.mrb[0].mxu0
        %v4259 = vadd.f32 %v4218, %v4258
        %v4260 = vpop.f32.mrb[0].mxu0
        %v4261 = vpop.f32.mrb[0].mxu0
        %4262 = vdwg.mxu0
        %4263 = vmatprep.subr.bf16.mxu0 %v3075
        %4264 = vmatpush1.bf16.msra.mxu0 %v3074
        %4265 = vmatprep.subr.bf16.mxu0 %v3079
        %4266 = vmatpush1.bf16.msra.mxu0 %v3078
        %4267 = vmatprep.subr.bf16.mxu0 %v3083
        %4268 = vmatpush1.bf16.msra.mxu0 %v3082
        %4269 = vmatprep.subr.bf16.mxu0 %v3087
        %4270 = vmatpush1.bf16.msra.mxu0 %v3086
        %4271 = vmatprep.subr.bf16.mxu0 %v3091
        %4272 = vmatpush1.bf16.msra.mxu0 %v3090
        %4273 = vmatprep.subr.bf16.mxu0 %v3095
        %4274 = vmatpush1.bf16.msra.mxu0 %v3094
        %4275 = vmatprep.subr.bf16.mxu0 %v3099
        %4276 = vmatpush1.bf16.msra.mxu0 %v3098
        %4277 = vmatprep.subr.bf16.mxu0 %v3103
        %4278 = vmatpush1.bf16.msra.mxu0 %v3102
        %4279 = vmatprep.subr.bf16.mxu0 %v3107
        %4280 = vmatpush1.bf16.msra.mxu0 %v3106
        %4281 = vmatprep.subr.bf16.mxu0 %v3111
        %4282 = vmatpush1.bf16.msra.mxu0 %v3110
        %4283 = vmatprep.subr.bf16.mxu0 %v3115
        %4284 = vmatpush1.bf16.msra.mxu0 %v3114
        %4285 = vmatprep.subr.bf16.mxu0 %v3119
        %4286 = vmatpush1.bf16.msra.mxu0 %v3118
        %4287 = vmatprep.subr.bf16.mxu0 %v3123
        %4288 = vmatpush1.bf16.msra.mxu0 %v3122
        %4289 = vmatprep.subr.bf16.mxu0 %v3127
        %4290 = vmatpush1.bf16.msra.mxu0 %v3126
        %4291 = vmatprep.subr.bf16.mxu0 %v3131
        %4292 = vmatpush1.bf16.msra.mxu0 %v3130
        %4293 = vmatprep.subr.bf16.mxu0 %v3135
        %4294 = vmatpush1.bf16.msra.mxu0 %v3134
        %4295 = vmatprep.mubr.bf16.mxu0 %v575
        %4296 = vmatmul.mubr.bf16.gmra.mrb[0].mxu0 %v574
        %v4297 = vpop.f32.mrb[0].mxu0
        %v4298 = vadd.f32 %v4257, %v4297
        %v4299 = vpop.f32.mrb[0].mxu0
        %v4300 = vadd.f32 %v4259, %v4299
        %v4301 = vpop.f32.mrb[0].mxu0
        %v4302 = vpop.f32.mrb[0].mxu0
        %4303 = vdwg.mxu0
        %v4304 = vadd.f32 %v540, %v3970
        %v4305 = vadd.f32 %v541, %v3972
        %v4306 = vadd.f32 %v542, %v4298
        %v4307 = vadd.f32 %v543, %v4300
        %4308 = vst [vmem:[#allocation2] sm:$0xff] %v4304
        %4309 = vst [vmem:[#allocation2 + $0x8] sm:$0xff] %v4305
        %4310 = vst [vmem:[#allocation2 + $0x10] sm:$0xff] %v4306
        %4311 = vst [vmem:[#allocation2 + $0x18] sm:$0xff] %v4307
        %p4312 = scmp.eq.s32.totalorder %s37, 1
        // Predicated region
        $region105: #{tpu_custom_call.1} parent=59 // pred_check
          %p4313 = pneg %p4312
        $region106: #{tpu_custom_call.1} parent=59 // pred_check_branch
          %4315 = sbr.rel (%p4313) target = $region108
        $region107: #{tpu_custom_call.1} parent=59 // pred_region
          %v4316 = vld [vmem:[#allocation2] sm:$0xff]
          %v4317 = vld [vmem:[#allocation2 + $0x8] sm:$0xff]
          %v4318 = vld [vmem:[#allocation2 + $0x10] sm:$0xff]
          %v4319 = vld [vmem:[#allocation2 + $0x18] sm:$0xff]
          %v4320 = vpack.c.bf16 %v4316, %v4316
          %v4321 = vpack.c.bf16 %v4317, %v4317
          %v4322 = vpack.c.bf16 %v4318, %v4318
          %v4323 = vpack.c.bf16 %v4319, %v4319
          %v4324 = vld [vmem:[#allocation8] sm:$0xff]
          %v4325 = vld [vmem:[#allocation8 + $0x8] sm:$0xff]
          %v4326 = vld [vmem:[#allocation8 + $0x10] sm:$0xff]
          %v4327 = vld [vmem:[#allocation8 + $0x18] sm:$0xff]
          %v4328 = vld [vmem:[#allocation8 + $0x20] sm:$0xff]
          %v4329 = vld [vmem:[#allocation8 + $0x28] sm:$0xff]
          %v4330 = vld [vmem:[#allocation8 + $0x30] sm:$0xff]
          %v4331 = vld [vmem:[#allocation8 + $0x38] sm:$0xff]
          %v4332 = vld [vmem:[#allocation8 + $0x40] sm:$0xff]
          %v4333 = vld [vmem:[#allocation8 + $0x48] sm:$0xff]
          %v4334 = vld [vmem:[#allocation8 + $0x50] sm:$0xff]
          %v4335 = vld [vmem:[#allocation8 + $0x58] sm:$0xff]
          %v4336 = vld [vmem:[#allocation8 + $0x60] sm:$0xff]
          %v4337 = vld [vmem:[#allocation8 + $0x68] sm:$0xff]
          %v4338 = vld [vmem:[#allocation8 + $0x70] sm:$0xff]
          %v4339 = vld [vmem:[#allocation8 + $0x78] sm:$0xff]
          %v4340 = vld [vmem:[#allocation8 + $0x80] sm:$0xff]
          %v4341 = vld [vmem:[#allocation8 + $0x88] sm:$0xff]
          %v4342 = vld [vmem:[#allocation8 + $0x90] sm:$0xff]
          %v4343 = vld [vmem:[#allocation8 + $0x98] sm:$0xff]
          %v4344 = vld [vmem:[#allocation8 + $0xa0] sm:$0xff]
          %v4345 = vld [vmem:[#allocation8 + $0xa8] sm:$0xff]
          %v4346 = vld [vmem:[#allocation8 + $0xb0] sm:$0xff]
          %v4347 = vld [vmem:[#allocation8 + $0xb8] sm:$0xff]
          %v4348 = vld [vmem:[#allocation8 + $0xc0] sm:$0xff]
          %v4349 = vld [vmem:[#allocation8 + $0xc8] sm:$0xff]
          %v4350 = vld [vmem:[#allocation8 + $0xd0] sm:$0xff]
          %v4351 = vld [vmem:[#allocation8 + $0xd8] sm:$0xff]
          %v4352 = vld [vmem:[#allocation8 + $0xe0] sm:$0xff]
          %v4353 = vld [vmem:[#allocation8 + $0xe8] sm:$0xff]
          %v4354 = vld [vmem:[#allocation8 + $0xf0] sm:$0xff]
          %v4355 = vld [vmem:[#allocation8 + $0xf8] sm:$0xff]
          %v4356 = vld [vmem:[#allocation8 + $0x100] sm:$0xff]
          %v4357 = vld [vmem:[#allocation8 + $0x108] sm:$0xff]
          %v4358 = vld [vmem:[#allocation8 + $0x110] sm:$0xff]
          %v4359 = vld [vmem:[#allocation8 + $0x118] sm:$0xff]
          %v4360 = vld [vmem:[#allocation8 + $0x120] sm:$0xff]
          %v4361 = vld [vmem:[#allocation8 + $0x128] sm:$0xff]
          %v4362 = vld [vmem:[#allocation8 + $0x130] sm:$0xff]
          %v4363 = vld [vmem:[#allocation8 + $0x138] sm:$0xff]
          %v4364 = vld [vmem:[#allocation8 + $0x140] sm:$0xff]
          %v4365 = vld [vmem:[#allocation8 + $0x148] sm:$0xff]
          %v4366 = vld [vmem:[#allocation8 + $0x150] sm:$0xff]
          %v4367 = vld [vmem:[#allocation8 + $0x158] sm:$0xff]
          %v4368 = vld [vmem:[#allocation8 + $0x160] sm:$0xff]
          %v4369 = vld [vmem:[#allocation8 + $0x168] sm:$0xff]
          %v4370 = vld [vmem:[#allocation8 + $0x170] sm:$0xff]
          %v4371 = vld [vmem:[#allocation8 + $0x178] sm:$0xff]
          %v4372 = vld [vmem:[#allocation8 + $0x180] sm:$0xff]
          %v4373 = vld [vmem:[#allocation8 + $0x188] sm:$0xff]
          %v4374 = vld [vmem:[#allocation8 + $0x190] sm:$0xff]
          %v4375 = vld [vmem:[#allocation8 + $0x198] sm:$0xff]
          %v4376 = vld [vmem:[#allocation8 + $0x1a0] sm:$0xff]
          %v4377 = vld [vmem:[#allocation8 + $0x1a8] sm:$0xff]
          %v4378 = vld [vmem:[#allocation8 + $0x1b0] sm:$0xff]
          %v4379 = vld [vmem:[#allocation8 + $0x1b8] sm:$0xff]
          %v4380 = vld [vmem:[#allocation8 + $0x1c0] sm:$0xff]
          %v4381 = vld [vmem:[#allocation8 + $0x1c8] sm:$0xff]
          %v4382 = vld [vmem:[#allocation8 + $0x1d0] sm:$0xff]
          %v4383 = vld [vmem:[#allocation8 + $0x1d8] sm:$0xff]
          %v4384 = vld [vmem:[#allocation8 + $0x1e0] sm:$0xff]
          %v4385 = vld [vmem:[#allocation8 + $0x1e8] sm:$0xff]
          %v4386 = vld [vmem:[#allocation8 + $0x1f0] sm:$0xff]
          %v4387 = vld [vmem:[#allocation8 + $0x1f8] sm:$0xff]
          %v4388 = vld [vmem:[#allocation9] sm:$0x3]
          %v4390 = vlaneseq
          %v4391 = vshrl.u32 %v4390, 7
          %v4392 = vsub.s32 0, %v4391
          %v4393 = vrot.slane %v4388, %v4392
          %v4394 = vlaneseq
          %v4395 = vshrl.u32 %v4394, 7
          %v4396 = vsub.s32 1, %v4395
          %v4397 = vrot.slane %v4388, %v4396
          %v4464 = vunpack.c.l.b16 %v4324
          %v4465 = vunpack.c.h.b16 %v4324
          %v4466 = vunpack.c.l.b16 %v4325
          %v4467 = vunpack.c.h.b16 %v4325
          %v4468 = vunpack.c.l.b16 %v4326
          %v4469 = vunpack.c.h.b16 %v4326
          %v4470 = vunpack.c.l.b16 %v4327
          %v4471 = vunpack.c.h.b16 %v4327
          %v4472 = vunpack.c.l.b16 %v4328
          %v4473 = vunpack.c.h.b16 %v4328
          %v4474 = vunpack.c.l.b16 %v4329
          %v4475 = vunpack.c.h.b16 %v4329
          %v4476 = vunpack.c.l.b16 %v4330
          %v4477 = vunpack.c.h.b16 %v4330
          %v4478 = vunpack.c.l.b16 %v4331
          %v4479 = vunpack.c.h.b16 %v4331
          %v4480 = vunpack.c.l.b16 %v4332
          %v4481 = vunpack.c.h.b16 %v4332
          %v4482 = vunpack.c.l.b16 %v4333
          %v4483 = vunpack.c.h.b16 %v4333
          %v4484 = vunpack.c.l.b16 %v4334
          %v4485 = vunpack.c.h.b16 %v4334
          %v4486 = vunpack.c.l.b16 %v4335
          %v4487 = vunpack.c.h.b16 %v4335
          %v4488 = vunpack.c.l.b16 %v4336
          %v4489 = vunpack.c.h.b16 %v4336
          %v4490 = vunpack.c.l.b16 %v4337
          %v4491 = vunpack.c.h.b16 %v4337
          %v4492 = vunpack.c.l.b16 %v4338
          %v4493 = vunpack.c.h.b16 %v4338
          %v4494 = vunpack.c.l.b16 %v4339
          %v4495 = vunpack.c.h.b16 %v4339
          %v4496 = vunpack.c.l.b16 %v4340
          %v4497 = vunpack.c.h.b16 %v4340
          %v4498 = vunpack.c.l.b16 %v4341
          %v4499 = vunpack.c.h.b16 %v4341
          %v4500 = vunpack.c.l.b16 %v4342
          %v4501 = vunpack.c.h.b16 %v4342
          %v4502 = vunpack.c.l.b16 %v4343
          %v4503 = vunpack.c.h.b16 %v4343
          %v4504 = vunpack.c.l.b16 %v4344
          %v4505 = vunpack.c.h.b16 %v4344
          %v4506 = vunpack.c.l.b16 %v4345
          %v4507 = vunpack.c.h.b16 %v4345
          %v4508 = vunpack.c.l.b16 %v4346
          %v4509 = vunpack.c.h.b16 %v4346
          %v4510 = vunpack.c.l.b16 %v4347
          %v4511 = vunpack.c.h.b16 %v4347
          %v4512 = vunpack.c.l.b16 %v4348
          %v4513 = vunpack.c.h.b16 %v4348
          %v4514 = vunpack.c.l.b16 %v4349
          %v4515 = vunpack.c.h.b16 %v4349
          %v4516 = vunpack.c.l.b16 %v4350
          %v4517 = vunpack.c.h.b16 %v4350
          %v4518 = vunpack.c.l.b16 %v4351
          %v4519 = vunpack.c.h.b16 %v4351
          %v4520 = vunpack.c.l.b16 %v4352
          %v4521 = vunpack.c.h.b16 %v4352
          %v4522 = vunpack.c.l.b16 %v4353
          %v4523 = vunpack.c.h.b16 %v4353
          %v4524 = vunpack.c.l.b16 %v4354
          %v4525 = vunpack.c.h.b16 %v4354
          %v4526 = vunpack.c.l.b16 %v4355
          %v4527 = vunpack.c.h.b16 %v4355
          %v4528 = vunpack.c.l.b16 %v4356
          %v4529 = vunpack.c.h.b16 %v4356
          %v4530 = vunpack.c.l.b16 %v4357
          %v4531 = vunpack.c.h.b16 %v4357
          %v4532 = vunpack.c.l.b16 %v4358
          %v4533 = vunpack.c.h.b16 %v4358
          %v4534 = vunpack.c.l.b16 %v4359
          %v4535 = vunpack.c.h.b16 %v4359
          %v4536 = vunpack.c.l.b16 %v4360
          %v4537 = vunpack.c.h.b16 %v4360
          %v4538 = vunpack.c.l.b16 %v4361
          %v4539 = vunpack.c.h.b16 %v4361
          %v4540 = vunpack.c.l.b16 %v4362
          %v4541 = vunpack.c.h.b16 %v4362
          %v4542 = vunpack.c.l.b16 %v4363
          %v4543 = vunpack.c.h.b16 %v4363
          %v4544 = vunpack.c.l.b16 %v4364
          %v4545 = vunpack.c.h.b16 %v4364
          %v4546 = vunpack.c.l.b16 %v4365
          %v4547 = vunpack.c.h.b16 %v4365
          %v4548 = vunpack.c.l.b16 %v4366
          %v4549 = vunpack.c.h.b16 %v4366
          %v4550 = vunpack.c.l.b16 %v4367
          %v4551 = vunpack.c.h.b16 %v4367
          %v4552 = vunpack.c.l.b16 %v4368
          %v4553 = vunpack.c.h.b16 %v4368
          %v4554 = vunpack.c.l.b16 %v4369
          %v4555 = vunpack.c.h.b16 %v4369
          %v4556 = vunpack.c.l.b16 %v4370
          %v4557 = vunpack.c.h.b16 %v4370
          %v4558 = vunpack.c.l.b16 %v4371
          %v4559 = vunpack.c.h.b16 %v4371
          %v4560 = vunpack.c.l.b16 %v4372
          %v4561 = vunpack.c.h.b16 %v4372
          %v4562 = vunpack.c.l.b16 %v4373
          %v4563 = vunpack.c.h.b16 %v4373
          %v4564 = vunpack.c.l.b16 %v4374
          %v4565 = vunpack.c.h.b16 %v4374
          %v4566 = vunpack.c.l.b16 %v4375
          %v4567 = vunpack.c.h.b16 %v4375
          %v4568 = vunpack.c.l.b16 %v4376
          %v4569 = vunpack.c.h.b16 %v4376
          %v4570 = vunpack.c.l.b16 %v4377
          %v4571 = vunpack.c.h.b16 %v4377
          %v4572 = vunpack.c.l.b16 %v4378
          %v4573 = vunpack.c.h.b16 %v4378
          %v4574 = vunpack.c.l.b16 %v4379
          %v4575 = vunpack.c.h.b16 %v4379
          %v4576 = vunpack.c.l.b16 %v4380
          %v4577 = vunpack.c.h.b16 %v4380
          %v4578 = vunpack.c.l.b16 %v4381
          %v4579 = vunpack.c.h.b16 %v4381
          %v4580 = vunpack.c.l.b16 %v4382
          %v4581 = vunpack.c.h.b16 %v4382
          %v4582 = vunpack.c.l.b16 %v4383
          %v4583 = vunpack.c.h.b16 %v4383
          %v4584 = vunpack.c.l.b16 %v4384
          %v4585 = vunpack.c.h.b16 %v4384
          %v4586 = vunpack.c.l.b16 %v4385
          %v4587 = vunpack.c.h.b16 %v4385
          %v4588 = vunpack.c.l.b16 %v4386
          %v4589 = vunpack.c.h.b16 %v4386
          %v4590 = vunpack.c.l.b16 %v4387
          %v4591 = vunpack.c.h.b16 %v4387
          %v4592 = vpack.c.b16 %v4466, %v4464
          %v4593 = vpack.c.b16 %v4467, %v4465
          %v4594 = vpack.c.b16 %v4470, %v4468
          %v4595 = vpack.c.b16 %v4471, %v4469
          %v4596 = vpack.c.b16 %v4474, %v4472
          %v4597 = vpack.c.b16 %v4475, %v4473
          %v4598 = vpack.c.b16 %v4478, %v4476
          %v4599 = vpack.c.b16 %v4479, %v4477
          %v4600 = vpack.c.b16 %v4482, %v4480
          %v4601 = vpack.c.b16 %v4483, %v4481
          %v4602 = vpack.c.b16 %v4486, %v4484
          %v4603 = vpack.c.b16 %v4487, %v4485
          %v4604 = vpack.c.b16 %v4490, %v4488
          %v4605 = vpack.c.b16 %v4491, %v4489
          %v4606 = vpack.c.b16 %v4494, %v4492
          %v4607 = vpack.c.b16 %v4495, %v4493
          %v4608 = vpack.c.b16 %v4498, %v4496
          %v4609 = vpack.c.b16 %v4499, %v4497
          %v4610 = vpack.c.b16 %v4502, %v4500
          %v4611 = vpack.c.b16 %v4503, %v4501
          %v4612 = vpack.c.b16 %v4506, %v4504
          %v4613 = vpack.c.b16 %v4507, %v4505
          %v4614 = vpack.c.b16 %v4510, %v4508
          %v4615 = vpack.c.b16 %v4511, %v4509
          %v4616 = vpack.c.b16 %v4514, %v4512
          %v4617 = vpack.c.b16 %v4515, %v4513
          %v4618 = vpack.c.b16 %v4518, %v4516
          %v4619 = vpack.c.b16 %v4519, %v4517
          %v4620 = vpack.c.b16 %v4522, %v4520
          %v4621 = vpack.c.b16 %v4523, %v4521
          %v4622 = vpack.c.b16 %v4526, %v4524
          %v4623 = vpack.c.b16 %v4527, %v4525
          %v4624 = vpack.c.b16 %v4530, %v4528
          %v4625 = vpack.c.b16 %v4531, %v4529
          %v4626 = vpack.c.b16 %v4534, %v4532
          %v4627 = vpack.c.b16 %v4535, %v4533
          %v4628 = vpack.c.b16 %v4538, %v4536
          %v4629 = vpack.c.b16 %v4539, %v4537
          %v4630 = vpack.c.b16 %v4542, %v4540
          %v4631 = vpack.c.b16 %v4543, %v4541
          %v4632 = vpack.c.b16 %v4546, %v4544
          %v4633 = vpack.c.b16 %v4547, %v4545
          %v4634 = vpack.c.b16 %v4550, %v4548
          %v4635 = vpack.c.b16 %v4551, %v4549
          %v4636 = vpack.c.b16 %v4554, %v4552
          %v4637 = vpack.c.b16 %v4555, %v4553
          %v4638 = vpack.c.b16 %v4558, %v4556
          %v4639 = vpack.c.b16 %v4559, %v4557
          %v4640 = vpack.c.b16 %v4562, %v4560
          %v4641 = vpack.c.b16 %v4563, %v4561
          %v4642 = vpack.c.b16 %v4566, %v4564
          %v4643 = vpack.c.b16 %v4567, %v4565
          %v4644 = vpack.c.b16 %v4570, %v4568
          %v4645 = vpack.c.b16 %v4571, %v4569
          %v4646 = vpack.c.b16 %v4574, %v4572
          %v4647 = vpack.c.b16 %v4575, %v4573
          %v4648 = vpack.c.b16 %v4578, %v4576
          %v4649 = vpack.c.b16 %v4579, %v4577
          %v4650 = vpack.c.b16 %v4582, %v4580
          %v4651 = vpack.c.b16 %v4583, %v4581
          %v4652 = vpack.c.b16 %v4586, %v4584
          %v4653 = vpack.c.b16 %v4587, %v4585
          %v4654 = vpack.c.b16 %v4590, %v4588
          %v4655 = vpack.c.b16 %v4591, %v4589
          %4720 = vmatprep.subr.bf16.mxu0 %v4593
          %4721 = vmatpush1.bf16.msra.mxu0 %v4592
          %4722 = vmatprep.subr.bf16.mxu0 %v4595
          %4723 = vmatpush1.bf16.msra.mxu0 %v4594
          %4724 = vmatprep.subr.bf16.mxu0 %v4597
          %4725 = vmatpush1.bf16.msra.mxu0 %v4596
          %4726 = vmatprep.subr.bf16.mxu0 %v4599
          %4727 = vmatpush1.bf16.msra.mxu0 %v4598
          %4728 = vmatprep.subr.bf16.mxu0 %v4601
          %4729 = vmatpush1.bf16.msra.mxu0 %v4600
          %4730 = vmatprep.subr.bf16.mxu0 %v4603
          %4731 = vmatpush1.bf16.msra.mxu0 %v4602
          %4732 = vmatprep.subr.bf16.mxu0 %v4605
          %4733 = vmatpush1.bf16.msra.mxu0 %v4604
          %4734 = vmatprep.subr.bf16.mxu0 %v4607
          %4735 = vmatpush1.bf16.msra.mxu0 %v4606
          %4736 = vmatprep.subr.bf16.mxu0 %v4609
          %4737 = vmatpush1.bf16.msra.mxu0 %v4608
          %4738 = vmatprep.subr.bf16.mxu0 %v4611
          %4739 = vmatpush1.bf16.msra.mxu0 %v4610
          %4740 = vmatprep.subr.bf16.mxu0 %v4613
          %4741 = vmatpush1.bf16.msra.mxu0 %v4612
          %4742 = vmatprep.subr.bf16.mxu0 %v4615
          %4743 = vmatpush1.bf16.msra.mxu0 %v4614
          %4744 = vmatprep.subr.bf16.mxu0 %v4617
          %4745 = vmatpush1.bf16.msra.mxu0 %v4616
          %4746 = vmatprep.subr.bf16.mxu0 %v4619
          %4747 = vmatpush1.bf16.msra.mxu0 %v4618
          %4748 = vmatprep.subr.bf16.mxu0 %v4621
          %4749 = vmatpush1.bf16.msra.mxu0 %v4620
          %4750 = vmatprep.subr.bf16.mxu0 %v4623
          %4751 = vmatpush1.bf16.msra.mxu0 %v4622
          %4752 = vmatprep.mubr.bf16.mxu0 %v4321
          %4753 = vmatmul.mubr.bf16.gmra.mrb[0].mxu0 %v4320
          %v4754 = vpop.f32.mrb[0].mxu0
          %v4755 = vadd.f32 %v4393, %v4754
          %v4756 = vpop.f32.mrb[0].mxu0
          %v4757 = vadd.f32 %v4397, %v4756
          %v4758 = vpop.f32.mrb[0].mxu0
          %v4759 = vpop.f32.mrb[0].mxu0
          %4760 = vdwg.mxu0
          %4761 = vmatprep.subr.bf16.mxu0 %v4625
          %4762 = vmatpush1.bf16.msra.mxu0 %v4624
          %4763 = vmatprep.subr.bf16.mxu0 %v4627
          %4764 = vmatpush1.bf16.msra.mxu0 %v4626
          %4765 = vmatprep.subr.bf16.mxu0 %v4629
          %4766 = vmatpush1.bf16.msra.mxu0 %v4628
          %4767 = vmatprep.subr.bf16.mxu0 %v4631
          %4768 = vmatpush1.bf16.msra.mxu0 %v4630
          %4769 = vmatprep.subr.bf16.mxu0 %v4633
          %4770 = vmatpush1.bf16.msra.mxu0 %v4632
          %4771 = vmatprep.subr.bf16.mxu0 %v4635
          %4772 = vmatpush1.bf16.msra.mxu0 %v4634
          %4773 = vmatprep.subr.bf16.mxu0 %v4637
          %4774 = vmatpush1.bf16.msra.mxu0 %v4636
          %4775 = vmatprep.subr.bf16.mxu0 %v4639
          %4776 = vmatpush1.bf16.msra.mxu0 %v4638
          %4777 = vmatprep.subr.bf16.mxu0 %v4641
          %4778 = vmatpush1.bf16.msra.mxu0 %v4640
          %4779 = vmatprep.subr.bf16.mxu0 %v4643
          %4780 = vmatpush1.bf16.msra.mxu0 %v4642
          %4781 = vmatprep.subr.bf16.mxu0 %v4645
          %4782 = vmatpush1.bf16.msra.mxu0 %v4644
          %4783 = vmatprep.subr.bf16.mxu0 %v4647
          %4784 = vmatpush1.bf16.msra.mxu0 %v4646
          %4785 = vmatprep.subr.bf16.mxu0 %v4649
          %4786 = vmatpush1.bf16.msra.mxu0 %v4648
          %4787 = vmatprep.subr.bf16.mxu0 %v4651
          %4788 = vmatpush1.bf16.msra.mxu0 %v4650
          %4789 = vmatprep.subr.bf16.mxu0 %v4653
          %4790 = vmatpush1.bf16.msra.mxu0 %v4652
          %4791 = vmatprep.subr.bf16.mxu0 %v4655
          %4792 = vmatpush1.bf16.msra.mxu0 %v4654
          %4793 = vmatprep.mubr.bf16.mxu0 %v4323
          %4794 = vmatmul.mubr.bf16.gmra.mrb[0].mxu0 %v4322
          %v4795 = vpop.f32.mrb[0].mxu0
          %v4796 = vadd.f32 %v4755, %v4795
          %v4797 = vpop.f32.mrb[0].mxu0
          %v4798 = vadd.f32 %v4757, %v4797
          %v4799 = vpop.f32.mrb[0].mxu0
          %v4800 = vpop.f32.mrb[0].mxu0
          %4801 = vdwg.mxu0
          %v4802 = vadd.f32 %v4796, %v4798
          %4803 = vadd.xlane.f32.xlu0 %v4802
          %v4804 = vpop.xlane.xlu0 %4803
          %v4805 = vrcp.pop 256.0
          %v4806 = vmul.f32 %v4804, %v4805
          %v4807 = vmul.f32 %v4796, %v4796
          %v4808 = vmul.f32 %v4798, %v4798
          %v4809 = vadd.f32 %v4807, %v4808
          %4810 = vadd.xlane.f32.xlu0 %v4809
          %v4811 = vpop.xlane.xlu0 %4810
          %v4812 = vmul.f32 %v4811, %v4805
          %v4813 = vmul.f32 %v4806, %v4806
          %v4814 = vsub.f32 %v4812, %v4813
          %v4815 = vmax.f32 %v4814, 0.0
          %v4816 = vsub.f32 %v4796, %v4806
          %v4817 = vsub.f32 %v4798, %v4806
          %v4818 = vadd.f32 %v4815, 1e-05
          %v4819 = vrsqrt.pop %v4818
          %v4820 = vmul.f32 %v4816, %v4819
          %v4821 = vmul.f32 %v4817, %v4819
          %v4822 = vld [vmem:[#allocation11] sm:$0x3]
          %v4824 = vlaneseq
          %v4825 = vshrl.u32 %v4824, 7
          %v4826 = vsub.s32 0, %v4825
          %v4827 = vrot.slane %v4822, %v4826
          %v4828 = vlaneseq
          %v4829 = vshrl.u32 %v4828, 7
          %v4830 = vsub.s32 1, %v4829
          %v4831 = vrot.slane %v4822, %v4830
          %v4834 = vmul.f32 %v4820, %v4827
          %v4835 = vmul.f32 %v4821, %v4831
          %v4836 = vld [vmem:[#allocation12] sm:$0x3]
          %v4838 = vlaneseq
          %v4839 = vshrl.u32 %v4838, 7
          %v4840 = vsub.s32 0, %v4839
          %v4841 = vrot.slane %v4836, %v4840
          %v4842 = vlaneseq
          %v4843 = vshrl.u32 %v4842, 7
          %v4844 = vsub.s32 1, %v4843
          %v4845 = vrot.slane %v4836, %v4844
          %v4848 = vadd.f32 %v4834, %v4841
          %v4849 = vadd.f32 %v4835, %v4845
          %v4850 = vxor.u32 %v4848, 2147483648
          %v4851 = vxor.u32 %v4849, 2147483648
          %v4852 = vmul.f32 %v4850, 1.442695
          %v4853 = vpow.pop %v4852
          %v4854 = vmul.f32 %v4851, 1.442695
          %v4855 = vpow.pop %v4854
          %v4856 = vadd.f32 %v4853, 1.0
          %v4857 = vadd.f32 %v4855, 1.0
          %v4858 = vrcp.pop %v4856
          %v4859 = vmul.f32 1.0, %v4858
          %v4860 = vrcp.pop %v4857
          %v4861 = vmul.f32 1.0, %v4860
          %v4862 = vmul.f32 %v4848, %v4859
          %v4863 = vmul.f32 %v4849, %v4861
          %v4864 = vpack.c.bf16 %v4862, %v4862
          %v4865 = vpack.c.bf16 %v4863, %v4863
          %v4866 = vld [vmem:[#allocation14] sm:$0xff]
          %v4867 = vld [vmem:[#allocation14 + $0x8] sm:$0xff]
          %v4868 = vld [vmem:[#allocation14 + $0x10] sm:$0xff]
          %v4869 = vld [vmem:[#allocation14 + $0x18] sm:$0xff]
          %v4870 = vld [vmem:[#allocation14 + $0x20] sm:$0xff]
          %v4871 = vld [vmem:[#allocation14 + $0x28] sm:$0xff]
          %v4872 = vld [vmem:[#allocation14 + $0x30] sm:$0xff]
          %v4873 = vld [vmem:[#allocation14 + $0x38] sm:$0xff]
          %v4874 = vld [vmem:[#allocation14 + $0x40] sm:$0xff]
          %v4875 = vld [vmem:[#allocation14 + $0x48] sm:$0xff]
          %v4876 = vld [vmem:[#allocation14 + $0x50] sm:$0xff]
          %v4877 = vld [vmem:[#allocation14 + $0x58] sm:$0xff]
          %v4878 = vld [vmem:[#allocation14 + $0x60] sm:$0xff]
          %v4879 = vld [vmem:[#allocation14 + $0x68] sm:$0xff]
          %v4880 = vld [vmem:[#allocation14 + $0x70] sm:$0xff]
          %v4881 = vld [vmem:[#allocation14 + $0x78] sm:$0xff]
          %v4882 = vld [vmem:[#allocation14 + $0x80] sm:$0xff]
          %v4883 = vld [vmem:[#allocation14 + $0x88] sm:$0xff]
          %v4884 = vld [vmem:[#allocation14 + $0x90] sm:$0xff]
          %v4885 = vld [vmem:[#allocation14 + $0x98] sm:$0xff]
          %v4886 = vld [vmem:[#allocation14 + $0xa0] sm:$0xff]
          %v4887 = vld [vmem:[#allocation14 + $0xa8] sm:$0xff]
          %v4888 = vld [vmem:[#allocation14 + $0xb0] sm:$0xff]
          %v4889 = vld [vmem:[#allocation14 + $0xb8] sm:$0xff]
          %v4890 = vld [vmem:[#allocation14 + $0xc0] sm:$0xff]
          %v4891 = vld [vmem:[#allocation14 + $0xc8] sm:$0xff]
          %v4892 = vld [vmem:[#allocation14 + $0xd0] sm:$0xff]
          %v4893 = vld [vmem:[#allocation14 + $0xd8] sm:$0xff]
          %v4894 = vld [vmem:[#allocation14 + $0xe0] sm:$0xff]
          %v4895 = vld [vmem:[#allocation14 + $0xe8] sm:$0xff]
          %v4896 = vld [vmem:[#allocation14 + $0xf0] sm:$0xff]
          %v4897 = vld [vmem:[#allocation14 + $0xf8] sm:$0xff]
          %v4898 = vld [vmem:[#allocation15] sm:$0x3]
          %v4900 = vlaneseq
          %v4901 = vshrl.u32 %v4900, 7
          %v4902 = vsub.s32 0, %v4901
          %v4903 = vrot.slane %v4898, %v4902
          %v4904 = vlaneseq
          %v4905 = vshrl.u32 %v4904, 7
          %v4906 = vsub.s32 1, %v4905
          %v4907 = vrot.slane %v4898, %v4906
          %v4942 = vunpack.c.l.b16 %v4866
          %v4943 = vunpack.c.h.b16 %v4866
          %v4944 = vunpack.c.l.b16 %v4867
          %v4945 = vunpack.c.h.b16 %v4867
          %v4946 = vunpack.c.l.b16 %v4868
          %v4947 = vunpack.c.h.b16 %v4868
          %v4948 = vunpack.c.l.b16 %v4869
          %v4949 = vunpack.c.h.b16 %v4869
          %v4950 = vunpack.c.l.b16 %v4870
          %v4951 = vunpack.c.h.b16 %v4870
          %v4952 = vunpack.c.l.b16 %v4871
          %v4953 = vunpack.c.h.b16 %v4871
          %v4954 = vunpack.c.l.b16 %v4872
          %v4955 = vunpack.c.h.b16 %v4872
          %v4956 = vunpack.c.l.b16 %v4873
          %v4957 = vunpack.c.h.b16 %v4873
          %v4958 = vunpack.c.l.b16 %v4874
          %v4959 = vunpack.c.h.b16 %v4874
          %v4960 = vunpack.c.l.b16 %v4875
          %v4961 = vunpack.c.h.b16 %v4875
          %v4962 = vunpack.c.l.b16 %v4876
          %v4963 = vunpack.c.h.b16 %v4876
          %v4964 = vunpack.c.l.b16 %v4877
          %v4965 = vunpack.c.h.b16 %v4877
          %v4966 = vunpack.c.l.b16 %v4878
          %v4967 = vunpack.c.h.b16 %v4878
          %v4968 = vunpack.c.l.b16 %v4879
          %v4969 = vunpack.c.h.b16 %v4879
          %v4970 = vunpack.c.l.b16 %v4880
          %v4971 = vunpack.c.h.b16 %v4880
          %v4972 = vunpack.c.l.b16 %v4881
          %v4973 = vunpack.c.h.b16 %v4881
          %v4974 = vunpack.c.l.b16 %v4882
          %v4975 = vunpack.c.h.b16 %v4882
          %v4976 = vunpack.c.l.b16 %v4883
          %v4977 = vunpack.c.h.b16 %v4883
          %v4978 = vunpack.c.l.b16 %v4884
          %v4979 = vunpack.c.h.b16 %v4884
          %v4980 = vunpack.c.l.b16 %v4885
          %v4981 = vunpack.c.h.b16 %v4885
          %v4982 = vunpack.c.l.b16 %v4886
          %v4983 = vunpack.c.h.b16 %v4886
          %v4984 = vunpack.c.l.b16 %v4887
          %v4985 = vunpack.c.h.b16 %v4887
          %v4986 = vunpack.c.l.b16 %v4888
          %v4987 = vunpack.c.h.b16 %v4888
          %v4988 = vunpack.c.l.b16 %v4889
          %v4989 = vunpack.c.h.b16 %v4889
          %v4990 = vunpack.c.l.b16 %v4890
          %v4991 = vunpack.c.h.b16 %v4890
          %v4992 = vunpack.c.l.b16 %v4891
          %v4993 = vunpack.c.h.b16 %v4891
          %v4994 = vunpack.c.l.b16 %v4892
          %v4995 = vunpack.c.h.b16 %v4892
          %v4996 = vunpack.c.l.b16 %v4893
          %v4997 = vunpack.c.h.b16 %v4893
          %v4998 = vunpack.c.l.b16 %v4894
          %v4999 = vunpack.c.h.b16 %v4894
          %v5000 = vunpack.c.l.b16 %v4895
          %v5001 = vunpack.c.h.b16 %v4895
          %v5002 = vunpack.c.l.b16 %v4896
          %v5003 = vunpack.c.h.b16 %v4896
          %v5004 = vunpack.c.l.b16 %v4897
          %v5005 = vunpack.c.h.b16 %v4897
          %v5006 = vpack.c.b16 %v4944, %v4942
          %v5007 = vpack.c.b16 %v4945, %v4943
          %v5008 = vpack.c.b16 %v4948, %v4946
          %v5009 = vpack.c.b16 %v4949, %v4947
          %v5010 = vpack.c.b16 %v4952, %v4950
          %v5011 = vpack.c.b16 %v4953, %v4951
          %v5012 = vpack.c.b16 %v4956, %v4954
          %v5013 = vpack.c.b16 %v4957, %v4955
          %v5014 = vpack.c.b16 %v4960, %v4958
          %v5015 = vpack.c.b16 %v4961, %v4959
          %v5016 = vpack.c.b16 %v4964, %v4962
          %v5017 = vpack.c.b16 %v4965, %v4963
          %v5018 = vpack.c.b16 %v4968, %v4966
          %v5019 = vpack.c.b16 %v4969, %v4967
          %v5020 = vpack.c.b16 %v4972, %v4970
          %v5021 = vpack.c.b16 %v4973, %v4971
          %v5022 = vpack.c.b16 %v4976, %v4974
          %v5023 = vpack.c.b16 %v4977, %v4975
          %v5024 = vpack.c.b16 %v4980, %v4978
          %v5025 = vpack.c.b16 %v4981, %v4979
          %v5026 = vpack.c.b16 %v4984, %v4982
          %v5027 = vpack.c.b16 %v4985, %v4983
          %v5028 = vpack.c.b16 %v4988, %v4986
          %v5029 = vpack.c.b16 %v4989, %v4987
          %v5030 = vpack.c.b16 %v4992, %v4990
          %v5031 = vpack.c.b16 %v4993, %v4991
          %v5032 = vpack.c.b16 %v4996, %v4994
          %v5033 = vpack.c.b16 %v4997, %v4995
          %v5034 = vpack.c.b16 %v5000, %v4998
          %v5035 = vpack.c.b16 %v5001, %v4999
          %v5036 = vpack.c.b16 %v5004, %v5002
          %v5037 = vpack.c.b16 %v5005, %v5003
          %5070 = vmatprep.subr.bf16.mxu0 %v5007
          %5071 = vmatpush1.bf16.msra.mxu0 %v5006
          %5072 = vmatprep.subr.bf16.mxu0 %v5009
          %5073 = vmatpush1.bf16.msra.mxu0 %v5008
          %5074 = vmatprep.subr.bf16.mxu0 %v5011
          %5075 = vmatpush1.bf16.msra.mxu0 %v5010
          %5076 = vmatprep.subr.bf16.mxu0 %v5013
          %5077 = vmatpush1.bf16.msra.mxu0 %v5012
          %5078 = vmatprep.subr.bf16.mxu0 %v5015
          %5079 = vmatpush1.bf16.msra.mxu0 %v5014
          %5080 = vmatprep.subr.bf16.mxu0 %v5017
          %5081 = vmatpush1.bf16.msra.mxu0 %v5016
          %5082 = vmatprep.subr.bf16.mxu0 %v5019
          %5083 = vmatpush1.bf16.msra.mxu0 %v5018
          %5084 = vmatprep.subr.bf16.mxu0 %v5021
          %5085 = vmatpush1.bf16.msra.mxu0 %v5020
          %5086 = vmatprep.subr.bf16.mxu0 %v5023
          %5087 = vmatpush1.bf16.msra.mxu0 %v5022
          %5088 = vmatprep.subr.bf16.mxu0 %v5025
          %5089 = vmatpush1.bf16.msra.mxu0 %v5024
          %5090 = vmatprep.subr.bf16.mxu0 %v5027
          %5091 = vmatpush1.bf16.msra.mxu0 %v5026
          %5092 = vmatprep.subr.bf16.mxu0 %v5029
          %5093 = vmatpush1.bf16.msra.mxu0 %v5028
          %5094 = vmatprep.subr.bf16.mxu0 %v5031
          %5095 = vmatpush1.bf16.msra.mxu0 %v5030
          %5096 = vmatprep.subr.bf16.mxu0 %v5033
          %5097 = vmatpush1.bf16.msra.mxu0 %v5032
          %5098 = vmatprep.subr.bf16.mxu0 %v5035
          %5099 = vmatpush1.bf16.msra.mxu0 %v5034
          %5100 = vmatprep.subr.bf16.mxu0 %v5037
          %5101 = vmatpush1.bf16.msra.mxu0 %v5036
          %5102 = vmatprep.mubr.bf16.mxu0 %v4865
          %5103 = vmatmul.mubr.bf16.gmra.mrb[0].mxu0 %v4864
          %v5104 = vpop.f32.mrb[0].mxu0
          %v5105 = vadd.f32 %v4903, %v5104
          %v5106 = vpop.f32.mrb[0].mxu0
          %v5107 = vadd.f32 %v4907, %v5106
          %v5108 = vpop.f32.mrb[0].mxu0
          %v5109 = vpop.f32.mrb[0].mxu0
          %5110 = vdwg.mxu0
          %v5111 = vadd.f32 %v5105, %v5107
          %5112 = vadd.xlane.f32.xlu0 %v5111
          %v5113 = vpop.xlane.xlu0 %5112
          %v5114 = vmul.f32 %v5113, %v4805
          %v5115 = vmul.f32 %v5105, %v5105
          %v5116 = vmul.f32 %v5107, %v5107
          %v5117 = vadd.f32 %v5115, %v5116
          %5118 = vadd.xlane.f32.xlu0 %v5117
          %v5119 = vpop.xlane.xlu0 %5118
          %v5120 = vmul.f32 %v5119, %v4805
          %v5121 = vmul.f32 %v5114, %v5114
          %v5122 = vsub.f32 %v5120, %v5121
          %v5123 = vmax.f32 %v5122, 0.0
          %v5124 = vsub.f32 %v5105, %v5114
          %v5125 = vsub.f32 %v5107, %v5114
          %v5126 = vadd.f32 %v5123, 1e-05
          %v5127 = vrsqrt.pop %v5126
          %v5128 = vmul.f32 %v5124, %v5127
          %v5129 = vmul.f32 %v5125, %v5127
          %v5130 = vld [vmem:[#allocation17] sm:$0x3]
          %v5132 = vlaneseq
          %v5133 = vshrl.u32 %v5132, 7
          %v5134 = vsub.s32 0, %v5133
          %v5135 = vrot.slane %v5130, %v5134
          %v5136 = vlaneseq
          %v5137 = vshrl.u32 %v5136, 7
          %v5138 = vsub.s32 1, %v5137
          %v5139 = vrot.slane %v5130, %v5138
          %v5142 = vmul.f32 %v5128, %v5135
          %v5143 = vmul.f32 %v5129, %v5139
          %v5144 = vld [vmem:[#allocation18] sm:$0x3]
          %v5146 = vlaneseq
          %v5147 = vshrl.u32 %v5146, 7
          %v5148 = vsub.s32 0, %v5147
          %v5149 = vrot.slane %v5144, %v5148
          %v5150 = vlaneseq
          %v5151 = vshrl.u32 %v5150, 7
          %v5152 = vsub.s32 1, %v5151
          %v5153 = vrot.slane %v5144, %v5152
          %v5156 = vadd.f32 %v5142, %v5149
          %v5157 = vadd.f32 %v5143, %v5153
          %5158 = vst [vmem:[#allocation20] sm:$0xff] %v5156
          %5159 = vst [vmem:[#allocation20 + $0x8] sm:$0xff] %v5157
        $region108: #{tpu_custom_call.1} parent=59 // pred_fallthru
          _
        // Predicated region
        $region109: #{tpu_custom_call.1} parent=59 // pred_check
          %p5160 = pneg %p284
        $region110: #{tpu_custom_call.1} parent=59 // pred_check_branch
          %5162 = sbr.rel (%p5160) target = $region112
        $region111: #{tpu_custom_call.1} parent=59 // pred_region
          %s5164 = ssub.s32 256, 256
          %5165 = vsyncadd [#allocation5], %s5164
          %s5166 = smul.addr %s36, 2
          %s5167 = smul.addr %s5166, 128
          %s5168 = scalar_lea.hbm %s10, %s5167
          %s5170 = sshll.u32 [#allocation20], 4
          %s5171 = int_to_ptr.vmem [resolvable:$true] %s5170
          %5173 = dma.vmem_to_hbm [thread:$0]  %s5171, 256, %s5168, [#allocation5]
        $region112: #{tpu_custom_call.1} parent=59 // pred_fallthru
          _
        // Predicated region
        $region113: #{tpu_custom_call.1} parent=59 // pred_check
          %p5174 = pneg %p284
        $region114: #{tpu_custom_call.1} parent=59 // pred_check_branch
          %5176 = sbr.rel (%p5174) target = $region116
        $region115: #{tpu_custom_call.1} parent=59 // pred_region
          %5177 = dma.done [#allocation5], 256
        $region116: #{tpu_custom_call.1} parent=59 // pred_fallthru
          _
      $region60: #{tpu_custom_call.1} parent=5 // pred_fallthru
        _
      %p5178 = scmp.le.s32.totalorder 2, %s27
      // Predicated region
      $region117: #{tpu_custom_call.1} parent=5 // pred_check
        %p5179 = pneg %p5178
      $region118: #{tpu_custom_call.1} parent=5 // pred_check_branch
        %5181 = sbr.rel (%p5179) target = $region120
      $region119: #{tpu_custom_call.1} parent=5 // pred_region
        %s5182 = ssub.s32 %s27, 2
      $region120: #{tpu_custom_call.1} parent=5 // pred_fallthru
        _
    $region6: #{tpu_custom_call.1} parent=1 // loop_footer
      %s31 = sadd.s32 1, %s27
    $region7: #{tpu_custom_call.1} parent=1 // loop_footer_branch
      %26 = sbr.rel target = $region3
    $region8: #{tpu_custom_call.1} parent=1 // loop_exit
      _
    %5183 = vsyncpa [#allocation4], 1
    %s5184 = scalar_lea.sflag [#allocation4], 1
    %5185 = vsyncpa %s5184, 1
    %5186 = vsyncpa [#allocation7], 1
    %s5187 = scalar_lea.sflag [#allocation7], 1
    %5188 = vsyncpa %s5187, 1
    %5189 = vsyncpa [#allocation10], 1
    %5190 = vsyncpa [#allocation13], 1
    %5191 = vsyncpa [#allocation16], 1
    %5192 = vsyncpa [#allocation19], 1
    %5193 = vsyncpa [#allocation5], 1
    %s5194 = scalar_lea.sflag [#allocation5], 1
    %5195 = vsyncpa %s5194, 1

</llo_original>
